<compile_context>
chip_gen: v7x
topology: tpu7x:2x2x1
jax: 0.10.0
libtpu: 0.0.40
codegen_flags: <defaults>
</compile_context>

<pallas_src>
import functools

import jax
import jax.numpy as jnp
from jax.experimental import pallas as pl
from jax.experimental.pallas import tpu as pltpu

EPS = 1e-5
LANES = 128


def _round_up(n, m):
    return ((n + m - 1) // m) * m


def _siamese_arm_kernel(
    xp_ref, wconv_ref, cg_ref, cb_ref,
    w1_ref, g1_ref, b1_ref,
    w2_ref, g2_ref, b2_ref,
    w3_ref,
    out_ref,
    sum_ref, ssq_ref, ycache_ref,
    *, H, W, n_images,
):
    img = pl.program_id(0)          # image index within the batch
    C = xp_ref.shape[-1]
    DQ = wconv_ref.shape[-1]        # lane-padded encoder width
    hw = H * W
    n_rows = n_images * hw          # BN2d statistics are taken over (N, H, W)

    @pl.when(img == 0)
    def _init():
        sum_ref[...] = jnp.zeros_like(sum_ref)
        ssq_ref[...] = jnp.zeros_like(ssq_ref)

    # 3x3 / stride-1 / pad-1 conv for this image as 9 shifted [H*W, C] x [C, DQ]
    # bf16 matmuls accumulated in f32.  Shifted patches are sliced in VMEM from
    # the halo-padded NHWC block, so no im2col array is ever materialized in HBM.
    acc = jnp.zeros((hw, DQ), jnp.float32)
    for k in range(9):
        dh, dw = divmod(k, 3)
        xs = xp_ref[0, dh:dh + H, dw:dw + W, :].reshape(hw, C)        # bf16
        acc = acc + jnp.dot(xs, wconv_ref[k],
                            preferred_element_type=jnp.float32)

    # One-pass BN2d batch statistics: var = E[y^2] - mean^2 (clamped >= 0).
    sum_ref[...] += jnp.sum(acc, axis=0, keepdims=True)
    ssq_ref[...] += jnp.sum(acc * acc, axis=0, keepdims=True)
    # Cache the raw conv activations so they are never recomputed.
    ycache_ref[img] = acc

    @pl.when(img == n_images - 1)
    def _normalize_pool_project():
        mean = sum_ref[...] * (1.0 / n_rows)
        var = jnp.maximum(ssq_ref[...] * (1.0 / n_rows) - mean * mean, 0.0)
        # Fold BN2d affine into a single FMA per element.
        scale = jax.lax.rsqrt(var + EPS) * cg_ref[...]
        shift = cb_ref[...] - mean * scale

        gaps = []
        for i in range(n_images):                       # static unroll (small B)
            yhat = jnp.maximum(ycache_ref[i] * scale + shift, 0.0)    # BN + ReLU
            gaps.append(jnp.sum(yhat, axis=0, keepdims=True) * (1.0 / hw))
        pooled = jnp.concatenate(gaps, axis=0)          # [B, DQ] f32 (GAP)

        def linear_bn(h, w_ref, g_ref, bt_ref, relu):
            z = jnp.dot(h.astype(jnp.bfloat16), w_ref[...],
                        preferred_element_type=jnp.float32)
            m = jnp.mean(z, axis=0, keepdims=True)
            v = jnp.maximum(jnp.mean(z * z, axis=0, keepdims=True) - m * m, 0.0)
            zh = (z - m) * jax.lax.rsqrt(v + EPS)
            if g_ref is not None:                       # affine BN
                zh = zh * g_ref[...] + bt_ref[...]
            if relu:
                zh = jnp.maximum(zh, 0.0)
            return zh

        h = linear_bn(pooled, w1_ref, g1_ref, b1_ref, relu=True)
        h = linear_bn(h, w2_ref, g2_ref, b2_ref, relu=True)
        h = linear_bn(h, w3_ref, None, None, relu=False)   # BN1d affine=False
        out_ref[...] = h.astype(out_ref.dtype)


def make_params(key, c_in=4, d_enc=32, hidden=32, out_dim=32):
    ks = jax.random.split(key, 4)
    s = 0.05
    return {
        "conv_w": s * jax.random.normal(ks[0], (9 * c_in, d_enc), jnp.float32),
        "conv_gamma": jnp.ones((d_enc,), jnp.float32),
        "conv_beta": jnp.zeros((d_enc,), jnp.float32),
        "w1": s * jax.random.normal(ks[1], (d_enc, hidden), jnp.float32),
        "g1": jnp.ones((hidden,), jnp.float32),
        "b1": jnp.zeros((hidden,), jnp.float32),
        "w2": s * jax.random.normal(ks[2], (hidden, hidden), jnp.float32),
        "g2": jnp.ones((hidden,), jnp.float32),
        "b2": jnp.zeros((hidden,), jnp.float32),
        "w3": s * jax.random.normal(ks[3], (hidden, out_dim), jnp.float32),
    }


def prepare_params(params, c_in):
    """Pad/pack params once: 128-lane feature dims, bf16 matmul weights."""
    d_enc = params["conv_w"].shape[1]
    hidden = params["w1"].shape[1]
    out_dim = params["w3"].shape[1]
    DQ, HQ, OQ = (_round_up(d, LANES) for d in (d_enc, hidden, out_dim))

    def mat(a, rows, cols):
        return jnp.pad(a, ((0, rows - a.shape[0]),
                           (0, cols - a.shape[1]))).astype(jnp.bfloat16)

    def vec(a, n):
        return jnp.pad(a, (0, n - a.shape[0])).reshape(1, n).astype(jnp.float32)

    wconv = params["conv_w"].reshape(9, c_in, d_enc)
    wconv = jnp.pad(wconv, ((0, 0), (0, 0), (0, DQ - d_enc))).astype(jnp.bfloat16)
    kp = {
        "wconv": wconv,
        "cg": vec(params["conv_gamma"], DQ), "cb": vec(params["conv_beta"], DQ),
        "w1": mat(params["w1"], DQ, HQ),
        "g1": vec(params["g1"], HQ), "b1": vec(params["b1"], HQ),
        "w2": mat(params["w2"], HQ, HQ),
        "g2": vec(params["g2"], HQ), "b2": vec(params["b2"], HQ),
        "w3": mat(params["w3"], HQ, OQ),
    }
    dims = {"d_enc": d_enc, "hidden": hidden, "out_dim": out_dim,
            "DQ": DQ, "HQ": HQ, "OQ": OQ}
    return kp, dims


def siamese_arm_forward(x_nchw, kernel_params, dims):
    B, C, H, W = x_nchw.shape
    DQ, HQ, OQ = dims["DQ"], dims["HQ"], dims["OQ"]

    # NCHW -> NHWC, bf16 (halves conv-input HBM bytes; BN/ReLU math stays f32
    # in-kernel), plus a 1-pixel halo pad for the 3x3 convolution.
    x = jnp.transpose(x_nchw, (0, 2, 3, 1)).astype(jnp.bfloat16)
    xp = jnp.pad(x, ((0, 0), (1, 1), (1, 1), (0, 0)))

    kernel = functools.partial(_siamese_arm_kernel, H=H, W=W, n_images=B)
    kp = kernel_params
    out_padded = pl.pallas_call(
        kernel,
        out_shape=jax.ShapeDtypeStruct((B, OQ), jnp.float32),
        grid=(B,),                    # one step per image; last step finalizes
        in_specs=[
            pl.BlockSpec((1, H + 2, W + 2, C), lambda b: (b, 0, 0, 0)),   # xp
            pl.BlockSpec((9, C, DQ), lambda b: (0, 0, 0)),                # conv W
            pl.BlockSpec((1, DQ), lambda b: (0, 0)),                      # conv gamma
            pl.BlockSpec((1, DQ), lambda b: (0, 0)),                      # conv beta
            pl.BlockSpec((DQ, HQ), lambda b: (0, 0)),                     # w1
            pl.BlockSpec((1, HQ), lambda b: (0, 0)),                      # g1
            pl.BlockSpec((1, HQ), lambda b: (0, 0)),                      # b1
            pl.BlockSpec((HQ, HQ), lambda b: (0, 0)),                     # w2
            pl.BlockSpec((1, HQ), lambda b: (0, 0)),                      # g2
            pl.BlockSpec((1, HQ), lambda b: (0, 0)),                      # b2
            pl.BlockSpec((HQ, OQ), lambda b: (0, 0)),                     # w3
        ],
        out_specs=pl.BlockSpec((B, OQ), lambda b: (0, 0)),
        scratch_shapes=[
            pltpu.VMEM((1, DQ), jnp.float32),         # per-channel sum
            pltpu.VMEM((1, DQ), jnp.float32),         # per-channel sum of squares
            pltpu.VMEM((B, H * W, DQ), jnp.float32),  # cached conv activations
        ],
        compiler_params=pltpu.CompilerParams(
            # The single grid axis carries BN statistics / the activation cache
            # across steps, so it is sequential.  VMEM budget far under v7x's
            # 64 MiB / TC at these shapes (~0.4 MiB of scratch + weights).
            dimension_semantics=("arbitrary",),
            vmem_limit_bytes=32 * 1024 * 1024,
        ),
    )(xp, kp["wconv"], kp["cg"], kp["cb"],
      kp["w1"], kp["g1"], kp["b1"],
      kp["w2"], kp["g2"], kp["b2"],
      kp["w3"])

    # Drop the zero-padded lanes to return the logical output width.
    return out_padded[:, :dims["out_dim"]]


if __name__ == "__main__":
    key = jax.random.PRNGKey(0)
    k_x, k_p = jax.random.split(key)
    B, C, H, W = 2, 4, 16, 16                       # small, NCHW like PyTorch
    x = jax.random.normal(k_x, (B, C, H, W), jnp.float32)
    params = make_params(k_p, c_in=C, d_enc=32, hidden=32, out_dim=32)
    kernel_params, dims = prepare_params(params, c_in=C)

    out = siamese_arm_forward(x, kernel_params, dims)
    out = jax.block_until_ready(out)
    assert out.shape == (B, 32) and out.dtype == jnp.float32
    assert bool(jnp.all(jnp.isfinite(out)))
    print("KERNEL_OK")
</pallas_src>

<mosaic_0001>
module attributes {stable_mosaic.version = 11 : i64} {
  func.func @_siamese_arm_kernel(%arg0: i32, %arg1: memref<1x18x18x4xbf16, #tpu.memory_space<vmem>>, %arg2: memref<9x4x128xbf16, #tpu.memory_space<vmem>>, %arg3: memref<1x128xf32, #tpu.memory_space<vmem>>, %arg4: memref<1x128xf32, #tpu.memory_space<vmem>>, %arg5: memref<128x128xbf16, #tpu.memory_space<vmem>>, %arg6: memref<1x128xf32, #tpu.memory_space<vmem>>, %arg7: memref<1x128xf32, #tpu.memory_space<vmem>>, %arg8: memref<128x128xbf16, #tpu.memory_space<vmem>>, %arg9: memref<1x128xf32, #tpu.memory_space<vmem>>, %arg10: memref<1x128xf32, #tpu.memory_space<vmem>>, %arg11: memref<128x128xbf16, #tpu.memory_space<vmem>>, %arg12: memref<2x128xf32, #tpu.memory_space<vmem>>, %arg13: memref<1x128xf32, #tpu.memory_space<vmem>>, %arg14: memref<1x128xf32, #tpu.memory_space<vmem>>, %arg15: memref<2x256x128xf32, #tpu.memory_space<vmem>>) attributes {dimension_semantics = [#tpu.dimension_semantics<arbitrary>], iteration_bounds = array<i64: 2>, scalar_prefetch = 0 : i64, scratch_operands = 3 : i64, tpu.core_type = #tpu.core_type<tc>, window_params = [{transform_indices = @transform_0, window_bounds = array<i64: 1, 18, 18, 4>}, {pipeline_mode = #tpu.pipeline_mode<synchronous>, transform_indices = @transform_1, window_bounds = array<i64: 9, 4, 128>}, {pipeline_mode = #tpu.pipeline_mode<synchronous>, transform_indices = @transform_2, window_bounds = array<i64: 1, 128>}, {pipeline_mode = #tpu.pipeline_mode<synchronous>, transform_indices = @transform_3, window_bounds = array<i64: 1, 128>}, {pipeline_mode = #tpu.pipeline_mode<synchronous>, transform_indices = @transform_4, window_bounds = array<i64: 128, 128>}, {pipeline_mode = #tpu.pipeline_mode<synchronous>, transform_indices = @transform_5, window_bounds = array<i64: 1, 128>}, {pipeline_mode = #tpu.pipeline_mode<synchronous>, transform_indices = @transform_6, window_bounds = array<i64: 1, 128>}, {pipeline_mode = #tpu.pipeline_mode<synchronous>, transform_indices = @transform_7, window_bounds = array<i64: 128, 128>}, {pipeline_mode = #tpu.pipeline_mode<synchronous>, transform_indices = @transform_8, window_bounds = array<i64: 1, 128>}, {pipeline_mode = #tpu.pipeline_mode<synchronous>, transform_indices = @transform_9, window_bounds = array<i64: 1, 128>}, {pipeline_mode = #tpu.pipeline_mode<synchronous>, transform_indices = @transform_10, window_bounds = array<i64: 128, 128>}, {pipeline_mode = #tpu.pipeline_mode<synchronous>, transform_indices = @transform_11, window_bounds = array<i64: 2, 128>}]} {
    %c0_i32 = arith.constant 0 : i32
    %0 = arith.cmpi eq, %arg0, %c0_i32 : i32
    %1 = arith.extui %0 : i1 to i32
    %c0_i32_0 = arith.constant 0 : i32
    %2 = arith.cmpi ne, %1, %c0_i32_0 : i32
    scf.if %2 {
      %cst_77 = arith.constant 0.000000e+00 : f32
      %85 = vector.broadcast %cst_77 : f32 to vector<1x128xf32>
      %c0_78 = arith.constant 0 : index
      %c0_79 = arith.constant 0 : index
      %86 = vector.load %arg13[%c0_78, %c0_79] : memref<1x128xf32, #tpu.memory_space<vmem>>, vector<1x128xf32>
      tpu.vector_store %arg13[%c0_78, %c0_79], %85 {strides = array<i32>} : memref<1x128xf32, #tpu.memory_space<vmem>>, vector<1x128xf32>,
      %cst_80 = arith.constant 0.000000e+00 : f32
      %87 = vector.broadcast %cst_80 : f32 to vector<1x128xf32>
      %c0_81 = arith.constant 0 : index
      %c0_82 = arith.constant 0 : index
      %88 = vector.load %arg14[%c0_81, %c0_82] : memref<1x128xf32, #tpu.memory_space<vmem>>, vector<1x128xf32>
      tpu.vector_store %arg14[%c0_81, %c0_82], %87 {strides = array<i32>} : memref<1x128xf32, #tpu.memory_space<vmem>>, vector<1x128xf32>,
    } else {
    }
    %cst = arith.constant 0.000000e+00 : f32
    %3 = vector.broadcast %cst : f32 to vector<256x128xf32>
    %c0 = arith.constant 0 : index
    %c0_1 = arith.constant 0 : index
    %c0_2 = arith.constant 0 : index
    %c0_3 = arith.constant 0 : index
    %4 = vector.load %arg1[%c0, %c0_1, %c0_2, %c0_3] : memref<1x18x18x4xbf16, #tpu.memory_space<vmem>>, vector<1x16x16x4xbf16>
    %5 = vector.shape_cast %4 : vector<1x16x16x4xbf16> to vector<16x16x4xbf16>
    %6 = vector.shape_cast %5 : vector<16x16x4xbf16> to vector<256x4xbf16>
    %c0_4 = arith.constant 0 : index
    %c0_5 = arith.constant 0 : index
    %c0_6 = arith.constant 0 : index
    %7 = vector.load %arg2[%c0_4, %c0_5, %c0_6] : memref<9x4x128xbf16, #tpu.memory_space<vmem>>, vector<1x4x128xbf16>
    %8 = vector.shape_cast %7 : vector<1x4x128xbf16> to vector<4x128xbf16>
    %cst_7 = arith.constant dense<0.000000e+00> : vector<256x128xf32>
    %9 = tpu.matmul %6, %8, %cst_7 {dimension_numbers = #tpu.dot_dimension_numbers<[1], [0], [0], [1], [0, 0, 1, 1], [], []>} : vector<256x4xbf16>, vector<4x128xbf16>, vector<256x128xf32> -> vector<256x128xf32>
    %10 = arith.addf %3, %9 : vector<256x128xf32>
    %c0_8 = arith.constant 0 : index
    %c0_9 = arith.constant 0 : index
    %c1 = arith.constant 1 : index
    %c0_10 = arith.constant 0 : index
    %11 = vector.load %arg1[%c0_8, %c0_9, %c1, %c0_10] : memref<1x18x18x4xbf16, #tpu.memory_space<vmem>>, vector<1x16x16x4xbf16>
    %12 = vector.shape_cast %11 : vector<1x16x16x4xbf16> to vector<16x16x4xbf16>
    %13 = vector.shape_cast %12 : vector<16x16x4xbf16> to vector<256x4xbf16>
    %c1_11 = arith.constant 1 : index
    %c0_12 = arith.constant 0 : index
    %c0_13 = arith.constant 0 : index
    %14 = vector.load %arg2[%c1_11, %c0_12, %c0_13] : memref<9x4x128xbf16, #tpu.memory_space<vmem>>, vector<1x4x128xbf16>
    %15 = vector.shape_cast %14 : vector<1x4x128xbf16> to vector<4x128xbf16>
    %cst_14 = arith.constant dense<0.000000e+00> : vector<256x128xf32>
    %16 = tpu.matmul %13, %15, %cst_14 {dimension_numbers = #tpu.dot_dimension_numbers<[1], [0], [0], [1], [0, 0, 1, 1], [], []>} : vector<256x4xbf16>, vector<4x128xbf16>, vector<256x128xf32> -> vector<256x128xf32>
    %17 = arith.addf %10, %16 : vector<256x128xf32>
    %c0_15 = arith.constant 0 : index
    %c0_16 = arith.constant 0 : index
    %c2 = arith.constant 2 : index
    %c0_17 = arith.constant 0 : index
    %18 = vector.load %arg1[%c0_15, %c0_16, %c2, %c0_17] : memref<1x18x18x4xbf16, #tpu.memory_space<vmem>>, vector<1x16x16x4xbf16>
    %19 = vector.shape_cast %18 : vector<1x16x16x4xbf16> to vector<16x16x4xbf16>
    %20 = vector.shape_cast %19 : vector<16x16x4xbf16> to vector<256x4xbf16>
    %c2_18 = arith.constant 2 : index
    %c0_19 = arith.constant 0 : index
    %c0_20 = arith.constant 0 : index
    %21 = vector.load %arg2[%c2_18, %c0_19, %c0_20] : memref<9x4x128xbf16, #tpu.memory_space<vmem>>, vector<1x4x128xbf16>
    %22 = vector.shape_cast %21 : vector<1x4x128xbf16> to vector<4x128xbf16>
    %cst_21 = arith.constant dense<0.000000e+00> : vector<256x128xf32>
    %23 = tpu.matmul %20, %22, %cst_21 {dimension_numbers = #tpu.dot_dimension_numbers<[1], [0], [0], [1], [0, 0, 1, 1], [], []>} : vector<256x4xbf16>, vector<4x128xbf16>, vector<256x128xf32> -> vector<256x128xf32>
    %24 = arith.addf %17, %23 : vector<256x128xf32>
    %c0_22 = arith.constant 0 : index
    %c1_23 = arith.constant 1 : index
    %c0_24 = arith.constant 0 : index
    %c0_25 = arith.constant 0 : index
    %25 = vector.load %arg1[%c0_22, %c1_23, %c0_24, %c0_25] : memref<1x18x18x4xbf16, #tpu.memory_space<vmem>>, vector<1x16x16x4xbf16>
    %26 = vector.shape_cast %25 : vector<1x16x16x4xbf16> to vector<16x16x4xbf16>
    %27 = vector.shape_cast %26 : vector<16x16x4xbf16> to vector<256x4xbf16>
    %c3 = arith.constant 3 : index
    %c0_26 = arith.constant 0 : index
    %c0_27 = arith.constant 0 : index
    %28 = vector.load %arg2[%c3, %c0_26, %c0_27] : memref<9x4x128xbf16, #tpu.memory_space<vmem>>, vector<1x4x128xbf16>
    %29 = vector.shape_cast %28 : vector<1x4x128xbf16> to vector<4x128xbf16>
    %cst_28 = arith.constant dense<0.000000e+00> : vector<256x128xf32>
    %30 = tpu.matmul %27, %29, %cst_28 {dimension_numbers = #tpu.dot_dimension_numbers<[1], [0], [0], [1], [0, 0, 1, 1], [], []>} : vector<256x4xbf16>, vector<4x128xbf16>, vector<256x128xf32> -> vector<256x128xf32>
    %31 = arith.addf %24, %30 : vector<256x128xf32>
    %c0_29 = arith.constant 0 : index
    %c1_30 = arith.constant 1 : index
    %c1_31 = arith.constant 1 : index
    %c0_32 = arith.constant 0 : index
    %32 = vector.load %arg1[%c0_29, %c1_30, %c1_31, %c0_32] : memref<1x18x18x4xbf16, #tpu.memory_space<vmem>>, vector<1x16x16x4xbf16>
    %33 = vector.shape_cast %32 : vector<1x16x16x4xbf16> to vector<16x16x4xbf16>
    %34 = vector.shape_cast %33 : vector<16x16x4xbf16> to vector<256x4xbf16>
    %c4 = arith.constant 4 : index
    %c0_33 = arith.constant 0 : index
    %c0_34 = arith.constant 0 : index
    %35 = vector.load %arg2[%c4, %c0_33, %c0_34] : memref<9x4x128xbf16, #tpu.memory_space<vmem>>, vector<1x4x128xbf16>
    %36 = vector.shape_cast %35 : vector<1x4x128xbf16> to vector<4x128xbf16>
    %cst_35 = arith.constant dense<0.000000e+00> : vector<256x128xf32>
    %37 = tpu.matmul %34, %36, %cst_35 {dimension_numbers = #tpu.dot_dimension_numbers<[1], [0], [0], [1], [0, 0, 1, 1], [], []>} : vector<256x4xbf16>, vector<4x128xbf16>, vector<256x128xf32> -> vector<256x128xf32>
    %38 = arith.addf %31, %37 : vector<256x128xf32>
    %c0_36 = arith.constant 0 : index
    %c1_37 = arith.constant 1 : index
    %c2_38 = arith.constant 2 : index
    %c0_39 = arith.constant 0 : index
    %39 = vector.load %arg1[%c0_36, %c1_37, %c2_38, %c0_39] : memref<1x18x18x4xbf16, #tpu.memory_space<vmem>>, vector<1x16x16x4xbf16>
    %40 = vector.shape_cast %39 : vector<1x16x16x4xbf16> to vector<16x16x4xbf16>
    %41 = vector.shape_cast %40 : vector<16x16x4xbf16> to vector<256x4xbf16>
    %c5 = arith.constant 5 : index
    %c0_40 = arith.constant 0 : index
    %c0_41 = arith.constant 0 : index
    %42 = vector.load %arg2[%c5, %c0_40, %c0_41] : memref<9x4x128xbf16, #tpu.memory_space<vmem>>, vector<1x4x128xbf16>
    %43 = vector.shape_cast %42 : vector<1x4x128xbf16> to vector<4x128xbf16>
    %cst_42 = arith.constant dense<0.000000e+00> : vector<256x128xf32>
    %44 = tpu.matmul %41, %43, %cst_42 {dimension_numbers = #tpu.dot_dimension_numbers<[1], [0], [0], [1], [0, 0, 1, 1], [], []>} : vector<256x4xbf16>, vector<4x128xbf16>, vector<256x128xf32> -> vector<256x128xf32>
    %45 = arith.addf %38, %44 : vector<256x128xf32>
    %c0_43 = arith.constant 0 : index
    %c2_44 = arith.constant 2 : index
    %c0_45 = arith.constant 0 : index
    %c0_46 = arith.constant 0 : index
    %46 = vector.load %arg1[%c0_43, %c2_44, %c0_45, %c0_46] : memref<1x18x18x4xbf16, #tpu.memory_space<vmem>>, vector<1x16x16x4xbf16>
    %47 = vector.shape_cast %46 : vector<1x16x16x4xbf16> to vector<16x16x4xbf16>
    %48 = vector.shape_cast %47 : vector<16x16x4xbf16> to vector<256x4xbf16>
    %c6 = arith.constant 6 : index
    %c0_47 = arith.constant 0 : index
    %c0_48 = arith.constant 0 : index
    %49 = vector.load %arg2[%c6, %c0_47, %c0_48] : memref<9x4x128xbf16, #tpu.memory_space<vmem>>, vector<1x4x128xbf16>
    %50 = vector.shape_cast %49 : vector<1x4x128xbf16> to vector<4x128xbf16>
    %cst_49 = arith.constant dense<0.000000e+00> : vector<256x128xf32>
    %51 = tpu.matmul %48, %50, %cst_49 {dimension_numbers = #tpu.dot_dimension_numbers<[1], [0], [0], [1], [0, 0, 1, 1], [], []>} : vector<256x4xbf16>, vector<4x128xbf16>, vector<256x128xf32> -> vector<256x128xf32>
    %52 = arith.addf %45, %51 : vector<256x128xf32>
    %c0_50 = arith.constant 0 : index
    %c2_51 = arith.constant 2 : index
    %c1_52 = arith.constant 1 : index
    %c0_53 = arith.constant 0 : index
    %53 = vector.load %arg1[%c0_50, %c2_51, %c1_52, %c0_53] : memref<1x18x18x4xbf16, #tpu.memory_space<vmem>>, vector<1x16x16x4xbf16>
    %54 = vector.shape_cast %53 : vector<1x16x16x4xbf16> to vector<16x16x4xbf16>
    %55 = vector.shape_cast %54 : vector<16x16x4xbf16> to vector<256x4xbf16>
    %c7 = arith.constant 7 : index
    %c0_54 = arith.constant 0 : index
    %c0_55 = arith.constant 0 : index
    %56 = vector.load %arg2[%c7, %c0_54, %c0_55] : memref<9x4x128xbf16, #tpu.memory_space<vmem>>, vector<1x4x128xbf16>
    %57 = vector.shape_cast %56 : vector<1x4x128xbf16> to vector<4x128xbf16>
    %cst_56 = arith.constant dense<0.000000e+00> : vector<256x128xf32>
    %58 = tpu.matmul %55, %57, %cst_56 {dimension_numbers = #tpu.dot_dimension_numbers<[1], [0], [0], [1], [0, 0, 1, 1], [], []>} : vector<256x4xbf16>, vector<4x128xbf16>, vector<256x128xf32> -> vector<256x128xf32>
    %59 = arith.addf %52, %58 : vector<256x128xf32>
    %c0_57 = arith.constant 0 : index
    %c2_58 = arith.constant 2 : index
    %c2_59 = arith.constant 2 : index
    %c0_60 = arith.constant 0 : index
    %60 = vector.load %arg1[%c0_57, %c2_58, %c2_59, %c0_60] : memref<1x18x18x4xbf16, #tpu.memory_space<vmem>>, vector<1x16x16x4xbf16>
    %61 = vector.shape_cast %60 : vector<1x16x16x4xbf16> to vector<16x16x4xbf16>
    %62 = vector.shape_cast %61 : vector<16x16x4xbf16> to vector<256x4xbf16>
    %c8 = arith.constant 8 : index
    %c0_61 = arith.constant 0 : index
    %c0_62 = arith.constant 0 : index
    %63 = vector.load %arg2[%c8, %c0_61, %c0_62] : memref<9x4x128xbf16, #tpu.memory_space<vmem>>, vector<1x4x128xbf16>
    %64 = vector.shape_cast %63 : vector<1x4x128xbf16> to vector<4x128xbf16>
    %cst_63 = arith.constant dense<0.000000e+00> : vector<256x128xf32>
    %65 = tpu.matmul %62, %64, %cst_63 {dimension_numbers = #tpu.dot_dimension_numbers<[1], [0], [0], [1], [0, 0, 1, 1], [], []>} : vector<256x4xbf16>, vector<4x128xbf16>, vector<256x128xf32> -> vector<256x128xf32>
    %66 = arith.addf %59, %65 : vector<256x128xf32>
    %c0_64 = arith.constant 0 : index
    %c0_65 = arith.constant 0 : index
    %67 = vector.load %arg13[%c0_64, %c0_65] : memref<1x128xf32, #tpu.memory_space<vmem>>, vector<1x128xf32>
    %cst_66 = arith.constant dense<0.000000e+00> : vector<128xf32>
    %68 = vector.multi_reduction <add>, %66, %cst_66 [0] : vector<256x128xf32> to vector<128xf32>
    %69 = vector.shape_cast %68 : vector<128xf32> to vector<1x128xf32>
    %70 = arith.addf %67, %69 : vector<1x128xf32>
    %c0_67 = arith.constant 0 : index
    %c0_68 = arith.constant 0 : index
    %71 = vector.load %arg13[%c0_67, %c0_68] : memref<1x128xf32, #tpu.memory_space<vmem>>, vector<1x128xf32>
    tpu.vector_store %arg13[%c0_67, %c0_68], %70 {strides = array<i32>} : memref<1x128xf32, #tpu.memory_space<vmem>>, vector<1x128xf32>,
    %c0_69 = arith.constant 0 : index
    %c0_70 = arith.constant 0 : index
    %72 = vector.load %arg14[%c0_69, %c0_70] : memref<1x128xf32, #tpu.memory_space<vmem>>, vector<1x128xf32>
    %73 = arith.mulf %66, %66 : vector<256x128xf32>
    %cst_71 = arith.constant dense<0.000000e+00> : vector<128xf32>
    %74 = vector.multi_reduction <add>, %73, %cst_71 [0] : vector<256x128xf32> to vector<128xf32>
    %75 = vector.shape_cast %74 : vector<128xf32> to vector<1x128xf32>
    %76 = arith.addf %72, %75 : vector<1x128xf32>
    %c0_72 = arith.constant 0 : index
    %c0_73 = arith.constant 0 : index
    %77 = vector.load %arg14[%c0_72, %c0_73] : memref<1x128xf32, #tpu.memory_space<vmem>>, vector<1x128xf32>
    tpu.vector_store %arg14[%c0_72, %c0_73], %76 {strides = array<i32>} : memref<1x128xf32, #tpu.memory_space<vmem>>, vector<1x128xf32>,
    %78 = arith.index_cast %arg0 : i32 to index
    %c0_74 = arith.constant 0 : index
    %c0_75 = arith.constant 0 : index
    %79 = vector.load %arg15[%78, %c0_74, %c0_75] : memref<2x256x128xf32, #tpu.memory_space<vmem>>, vector<1x256x128xf32>
    %80 = vector.shape_cast %79 : vector<1x256x128xf32> to vector<256x128xf32>
    %81 = vector.shape_cast %66 : vector<256x128xf32> to vector<1x256x128xf32>
    tpu.vector_store %arg15[%78, %c0_74, %c0_75], %81 {strides = array<i32>} : memref<2x256x128xf32, #tpu.memory_space<vmem>>, vector<1x256x128xf32>,
    %c1_i32 = arith.constant 1 : i32
    %82 = arith.cmpi eq, %arg0, %c1_i32 : i32
    %83 = arith.extui %82 : i1 to i32
    %c0_i32_76 = arith.constant 0 : i32
    %84 = arith.cmpi ne, %83, %c0_i32_76 : i32
    scf.if %84 {
      %c0_77 = arith.constant 0 : index
      %c0_78 = arith.constant 0 : index
      %85 = vector.load %arg13[%c0_77, %c0_78] : memref<1x128xf32, #tpu.memory_space<vmem>>, vector<1x128xf32>
      %cst_79 = arith.constant 0.001953125 : f32
      %86 = vector.broadcast %cst_79 : f32 to vector<1x128xf32>
      %87 = arith.mulf %85, %86 : vector<1x128xf32>
      %c0_80 = arith.constant 0 : index
      %c0_81 = arith.constant 0 : index
      %88 = vector.load %arg14[%c0_80, %c0_81] : memref<1x128xf32, #tpu.memory_space<vmem>>, vector<1x128xf32>
      %cst_82 = arith.constant 0.001953125 : f32
      %89 = vector.broadcast %cst_82 : f32 to vector<1x128xf32>
      %90 = arith.mulf %88, %89 : vector<1x128xf32>
      %91 = arith.mulf %87, %87 : vector<1x128xf32>
      %92 = arith.subf %90, %91 : vector<1x128xf32>
      %cst_83 = arith.constant 0.000000e+00 : f32
      %93 = vector.broadcast %cst_83 : f32 to vector<1x128xf32>
      %94 = arith.maximumf %92, %93 : vector<1x128xf32>
      %cst_84 = arith.constant 9.99999974E-6 : f32
      %95 = vector.broadcast %cst_84 : f32 to vector<1x128xf32>
      %96 = arith.addf %94, %95 : vector<1x128xf32>
      %97 = math.rsqrt %96 : vector<1x128xf32>
      %c0_85 = arith.constant 0 : index
      %c0_86 = arith.constant 0 : index
      %98 = vector.load %arg3[%c0_85, %c0_86] : memref<1x128xf32, #tpu.memory_space<vmem>>, vector<1x128xf32>
      %99 = arith.mulf %97, %98 : vector<1x128xf32>
      %c0_87 = arith.constant 0 : index
      %c0_88 = arith.constant 0 : index
      %100 = vector.load %arg4[%c0_87, %c0_88] : memref<1x128xf32, #tpu.memory_space<vmem>>, vector<1x128xf32>
      %101 = arith.mulf %87, %99 : vector<1x128xf32>
      %102 = arith.subf %100, %101 : vector<1x128xf32>
      %c0_89 = arith.constant 0 : index
      %c0_90 = arith.constant 0 : index
      %c0_91 = arith.constant 0 : index
      %103 = vector.load %arg15[%c0_89, %c0_90, %c0_91] : memref<2x256x128xf32, #tpu.memory_space<vmem>>, vector<1x256x128xf32>
      %104 = vector.shape_cast %103 : vector<1x256x128xf32> to vector<256x128xf32>
      %105 = vector.broadcast %99 : vector<1x128xf32> to vector<256x128xf32>
      %106 = arith.mulf %104, %105 : vector<256x128xf32>
      %107 = vector.broadcast %102 : vector<1x128xf32> to vector<256x128xf32>
      %108 = arith.addf %106, %107 : vector<256x128xf32>
      %cst_92 = arith.constant 0.000000e+00 : f32
      %109 = vector.broadcast %cst_92 : f32 to vector<256x128xf32>
      %110 = arith.maximumf %108, %109 : vector<256x128xf32>
      %cst_93 = arith.constant dense<0.000000e+00> : vector<128xf32>
      %111 = vector.multi_reduction <add>, %110, %cst_93 [0] : vector<256x128xf32> to vector<128xf32>
      %112 = vector.shape_cast %111 : vector<128xf32> to vector<1x128xf32>
      %cst_94 = arith.constant 3.906250e-03 : f32
      %113 = vector.broadcast %cst_94 : f32 to vector<1x128xf32>
      %114 = arith.mulf %112, %113 : vector<1x128xf32>
      %c1_95 = arith.constant 1 : index
      %c0_96 = arith.constant 0 : index
      %c0_97 = arith.constant 0 : index
      %115 = vector.load %arg15[%c1_95, %c0_96, %c0_97] : memref<2x256x128xf32, #tpu.memory_space<vmem>>, vector<1x256x128xf32>
      %116 = vector.shape_cast %115 : vector<1x256x128xf32> to vector<256x128xf32>
      %117 = vector.broadcast %99 : vector<1x128xf32> to vector<256x128xf32>
      %118 = arith.mulf %116, %117 : vector<256x128xf32>
      %119 = vector.broadcast %102 : vector<1x128xf32> to vector<256x128xf32>
      %120 = arith.addf %118, %119 : vector<256x128xf32>
      %cst_98 = arith.constant 0.000000e+00 : f32
      %121 = vector.broadcast %cst_98 : f32 to vector<256x128xf32>
      %122 = arith.maximumf %120, %121 : vector<256x128xf32>
      %cst_99 = arith.constant dense<0.000000e+00> : vector<128xf32>
      %123 = vector.multi_reduction <add>, %122, %cst_99 [0] : vector<256x128xf32> to vector<128xf32>
      %124 = vector.shape_cast %123 : vector<128xf32> to vector<1x128xf32>
      %cst_100 = arith.constant 3.906250e-03 : f32
      %125 = vector.broadcast %cst_100 : f32 to vector<1x128xf32>
      %126 = arith.mulf %124, %125 : vector<1x128xf32>
      %127 = tpu.concatenate %114, %126 in 0 : vector<1x128xf32>, vector<1x128xf32> -> vector<2x128xf32>
      %128 = arith.truncf %127 : vector<2x128xf32> to vector<2x128xbf16>
      %c0_101 = arith.constant 0 : index
      %c0_102 = arith.constant 0 : index
      %129 = vector.load %arg5[%c0_101, %c0_102] : memref<128x128xbf16, #tpu.memory_space<vmem>>, vector<128x128xbf16>
      %cst_103 = arith.constant dense<0.000000e+00> : vector<2x128xf32>
      %130 = tpu.matmul %128, %129, %cst_103 {dimension_numbers = #tpu.dot_dimension_numbers<[1], [0], [0], [1], [0, 0, 1, 1], [], []>} : vector<2x128xbf16>, vector<128x128xbf16>, vector<2x128xf32> -> vector<2x128xf32>
      %cst_104 = arith.constant dense<0.000000e+00> : vector<128xf32>
      %131 = vector.multi_reduction <add>, %130, %cst_104 [0] : vector<2x128xf32> to vector<128xf32>
      %132 = vector.shape_cast %131 : vector<128xf32> to vector<1x128xf32>
      %cst_105 = arith.constant 2.000000e+00 : f32
      %133 = vector.broadcast %cst_105 : f32 to vector<1x128xf32>
      %134 = arith.divf %132, %133 : vector<1x128xf32>
      %135 = arith.mulf %130, %130 : vector<2x128xf32>
      %cst_106 = arith.constant dense<0.000000e+00> : vector<128xf32>
      %136 = vector.multi_reduction <add>, %135, %cst_106 [0] : vector<2x128xf32> to vector<128xf32>
      %137 = vector.shape_cast %136 : vector<128xf32> to vector<1x128xf32>
      %cst_107 = arith.constant 2.000000e+00 : f32
      %138 = vector.broadcast %cst_107 : f32 to vector<1x128xf32>
      %139 = arith.divf %137, %138 : vector<1x128xf32>
      %140 = arith.mulf %134, %134 : vector<1x128xf32>
      %141 = arith.subf %139, %140 : vector<1x128xf32>
      %cst_108 = arith.constant 0.000000e+00 : f32
      %142 = vector.broadcast %cst_108 : f32 to vector<1x128xf32>
      %143 = arith.maximumf %141, %142 : vector<1x128xf32>
      %144 = vector.broadcast %134 : vector<1x128xf32> to vector<2x128xf32>
      %145 = arith.subf %130, %144 : vector<2x128xf32>
      %cst_109 = arith.constant 9.99999974E-6 : f32
      %146 = vector.broadcast %cst_109 : f32 to vector<1x128xf32>
      %147 = arith.addf %143, %146 : vector<1x128xf32>
      %148 = math.rsqrt %147 : vector<1x128xf32>
      %149 = vector.broadcast %148 : vector<1x128xf32> to vector<2x128xf32>
      %150 = arith.mulf %145, %149 : vector<2x128xf32>
      %c0_110 = arith.constant 0 : index
      %c0_111 = arith.constant 0 : index
      %151 = vector.load %arg6[%c0_110, %c0_111] : memref<1x128xf32, #tpu.memory_space<vmem>>, vector<1x128xf32>
      %152 = vector.broadcast %151 : vector<1x128xf32> to vector<2x128xf32>
      %153 = arith.mulf %150, %152 : vector<2x128xf32>
      %c0_112 = arith.constant 0 : index
      %c0_113 = arith.constant 0 : index
      %154 = vector.load %arg7[%c0_112, %c0_113] : memref<1x128xf32, #tpu.memory_space<vmem>>, vector<1x128xf32>
      %155 = vector.broadcast %154 : vector<1x128xf32> to vector<2x128xf32>
      %156 = arith.addf %153, %155 : vector<2x128xf32>
      %cst_114 = arith.constant 0.000000e+00 : f32
      %157 = vector.broadcast %cst_114 : f32 to vector<2x128xf32>
      %158 = arith.maximumf %156, %157 : vector<2x128xf32>
      %159 = arith.truncf %158 : vector<2x128xf32> to vector<2x128xbf16>
      %c0_115 = arith.constant 0 : index
      %c0_116 = arith.constant 0 : index
      %160 = vector.load %arg8[%c0_115, %c0_116] : memref<128x128xbf16, #tpu.memory_space<vmem>>, vector<128x128xbf16>
      %cst_117 = arith.constant dense<0.000000e+00> : vector<2x128xf32>
      %161 = tpu.matmul %159, %160, %cst_117 {dimension_numbers = #tpu.dot_dimension_numbers<[1], [0], [0], [1], [0, 0, 1, 1], [], []>} : vector<2x128xbf16>, vector<128x128xbf16>, vector<2x128xf32> -> vector<2x128xf32>
      %cst_118 = arith.constant dense<0.000000e+00> : vector<128xf32>
      %162 = vector.multi_reduction <add>, %161, %cst_118 [0] : vector<2x128xf32> to vector<128xf32>
      %163 = vector.shape_cast %162 : vector<128xf32> to vector<1x128xf32>
      %cst_119 = arith.constant 2.000000e+00 : f32
      %164 = vector.broadcast %cst_119 : f32 to vector<1x128xf32>
      %165 = arith.divf %163, %164 : vector<1x128xf32>
      %166 = arith.mulf %161, %161 : vector<2x128xf32>
      %cst_120 = arith.constant dense<0.000000e+00> : vector<128xf32>
      %167 = vector.multi_reduction <add>, %166, %cst_120 [0] : vector<2x128xf32> to vector<128xf32>
      %168 = vector.shape_cast %167 : vector<128xf32> to vector<1x128xf32>
      %cst_121 = arith.constant 2.000000e+00 : f32
      %169 = vector.broadcast %cst_121 : f32 to vector<1x128xf32>
      %170 = arith.divf %168, %169 : vector<1x128xf32>
      %171 = arith.mulf %165, %165 : vector<1x128xf32>
      %172 = arith.subf %170, %171 : vector<1x128xf32>
      %cst_122 = arith.constant 0.000000e+00 : f32
      %173 = vector.broadcast %cst_122 : f32 to vector<1x128xf32>
      %174 = arith.maximumf %172, %173 : vector<1x128xf32>
      %175 = vector.broadcast %165 : vector<1x128xf32> to vector<2x128xf32>
      %176 = arith.subf %161, %175 : vector<2x128xf32>
      %cst_123 = arith.constant 9.99999974E-6 : f32
      %177 = vector.broadcast %cst_123 : f32 to vector<1x128xf32>
      %178 = arith.addf %174, %177 : vector<1x128xf32>
      %179 = math.rsqrt %178 : vector<1x128xf32>
      %180 = vector.broadcast %179 : vector<1x128xf32> to vector<2x128xf32>
      %181 = arith.mulf %176, %180 : vector<2x128xf32>
      %c0_124 = arith.constant 0 : index
      %c0_125 = arith.constant 0 : index
      %182 = vector.load %arg9[%c0_124, %c0_125] : memref<1x128xf32, #tpu.memory_space<vmem>>, vector<1x128xf32>
      %183 = vector.broadcast %182 : vector<1x128xf32> to vector<2x128xf32>
      %184 = arith.mulf %181, %183 : vector<2x128xf32>
      %c0_126 = arith.constant 0 : index
      %c0_127 = arith.constant 0 : index
      %185 = vector.load %arg10[%c0_126, %c0_127] : memref<1x128xf32, #tpu.memory_space<vmem>>, vector<1x128xf32>
      %186 = vector.broadcast %185 : vector<1x128xf32> to vector<2x128xf32>
      %187 = arith.addf %184, %186 : vector<2x128xf32>
      %cst_128 = arith.constant 0.000000e+00 : f32
      %188 = vector.broadcast %cst_128 : f32 to vector<2x128xf32>
      %189 = arith.maximumf %187, %188 : vector<2x128xf32>
      %190 = arith.truncf %189 : vector<2x128xf32> to vector<2x128xbf16>
      %c0_129 = arith.constant 0 : index
      %c0_130 = arith.constant 0 : index
      %191 = vector.load %arg11[%c0_129, %c0_130] : memref<128x128xbf16, #tpu.memory_space<vmem>>, vector<128x128xbf16>
      %cst_131 = arith.constant dense<0.000000e+00> : vector<2x128xf32>
      %192 = tpu.matmul %190, %191, %cst_131 {dimension_numbers = #tpu.dot_dimension_numbers<[1], [0], [0], [1], [0, 0, 1, 1], [], []>} : vector<2x128xbf16>, vector<128x128xbf16>, vector<2x128xf32> -> vector<2x128xf32>
      %cst_132 = arith.constant dense<0.000000e+00> : vector<128xf32>
      %193 = vector.multi_reduction <add>, %192, %cst_132 [0] : vector<2x128xf32> to vector<128xf32>
      %194 = vector.shape_cast %193 : vector<128xf32> to vector<1x128xf32>
      %cst_133 = arith.constant 2.000000e+00 : f32
      %195 = vector.broadcast %cst_133 : f32 to vector<1x128xf32>
      %196 = arith.divf %194, %195 : vector<1x128xf32>
      %197 = arith.mulf %192, %192 : vector<2x128xf32>
      %cst_134 = arith.constant dense<0.000000e+00> : vector<128xf32>
      %198 = vector.multi_reduction <add>, %197, %cst_134 [0] : vector<2x128xf32> to vector<128xf32>
      %199 = vector.shape_cast %198 : vector<128xf32> to vector<1x128xf32>
      %cst_135 = arith.constant 2.000000e+00 : f32
      %200 = vector.broadcast %cst_135 : f32 to vector<1x128xf32>
      %201 = arith.divf %199, %200 : vector<1x128xf32>
      %202 = arith.mulf %196, %196 : vector<1x128xf32>
      %203 = arith.subf %201, %202 : vector<1x128xf32>
      %cst_136 = arith.constant 0.000000e+00 : f32
      %204 = vector.broadcast %cst_136 : f32 to vector<1x128xf32>
      %205 = arith.maximumf %203, %204 : vector<1x128xf32>
      %206 = vector.broadcast %196 : vector<1x128xf32> to vector<2x128xf32>
      %207 = arith.subf %192, %206 : vector<2x128xf32>
      %cst_137 = arith.constant 9.99999974E-6 : f32
      %208 = vector.broadcast %cst_137 : f32 to vector<1x128xf32>
      %209 = arith.addf %205, %208 : vector<1x128xf32>
      %210 = math.rsqrt %209 : vector<1x128xf32>
      %211 = vector.broadcast %210 : vector<1x128xf32> to vector<2x128xf32>
      %212 = arith.mulf %207, %211 : vector<2x128xf32>
      %c0_138 = arith.constant 0 : index
      %c0_139 = arith.constant 0 : index
      %213 = vector.load %arg12[%c0_138, %c0_139] : memref<2x128xf32, #tpu.memory_space<vmem>>, vector<2x128xf32>
      tpu.vector_store %arg12[%c0_138, %c0_139], %212 {strides = array<i32>} : memref<2x128xf32, #tpu.memory_space<vmem>>, vector<2x128xf32>,
    } else {
    }
    return
  }
  func.func @transform_0(%arg0: i32) -> (i32, i32, i32, i32) {
    %c0_i32 = arith.constant 0 : i32
    %c0_i32_0 = arith.constant 0 : i32
    %c0_i32_1 = arith.constant 0 : i32
    %c0_i32_2 = arith.constant 0 : i32
    return %arg0, %c0_i32, %c0_i32_0, %c0_i32_1 : i32, i32, i32, i32
  }
  func.func @transform_1(%arg0: i32) -> (i32, i32, i32) {
    %c0_i32 = arith.constant 0 : i32
    %c0_i32_0 = arith.constant 0 : i32
    %c0_i32_1 = arith.constant 0 : i32
    %c0_i32_2 = arith.constant 0 : i32
    return %c0_i32, %c0_i32_0, %c0_i32_1 : i32, i32, i32
  }
  func.func @transform_2(%arg0: i32) -> (i32, i32) {
    %c0_i32 = arith.constant 0 : i32
    %c0_i32_0 = arith.constant 0 : i32
    %c0_i32_1 = arith.constant 0 : i32
    return %c0_i32, %c0_i32_0 : i32, i32
  }
  func.func @transform_3(%arg0: i32) -> (i32, i32) {
    %c0_i32 = arith.constant 0 : i32
    %c0_i32_0 = arith.constant 0 : i32
    %c0_i32_1 = arith.constant 0 : i32
    return %c0_i32, %c0_i32_0 : i32, i32
  }
  func.func @transform_4(%arg0: i32) -> (i32, i32) {
    %c0_i32 = arith.constant 0 : i32
    %c0_i32_0 = arith.constant 0 : i32
    %c0_i32_1 = arith.constant 0 : i32
    return %c0_i32, %c0_i32_0 : i32, i32
  }
  func.func @transform_5(%arg0: i32) -> (i32, i32) {
    %c0_i32 = arith.constant 0 : i32
    %c0_i32_0 = arith.constant 0 : i32
    %c0_i32_1 = arith.constant 0 : i32
    return %c0_i32, %c0_i32_0 : i32, i32
  }
  func.func @transform_6(%arg0: i32) -> (i32, i32) {
    %c0_i32 = arith.constant 0 : i32
    %c0_i32_0 = arith.constant 0 : i32
    %c0_i32_1 = arith.constant 0 : i32
    return %c0_i32, %c0_i32_0 : i32, i32
  }
  func.func @transform_7(%arg0: i32) -> (i32, i32) {
    %c0_i32 = arith.constant 0 : i32
    %c0_i32_0 = arith.constant 0 : i32
    %c0_i32_1 = arith.constant 0 : i32
    return %c0_i32, %c0_i32_0 : i32, i32
  }
  func.func @transform_8(%arg0: i32) -> (i32, i32) {
    %c0_i32 = arith.constant 0 : i32
    %c0_i32_0 = arith.constant 0 : i32
    %c0_i32_1 = arith.constant 0 : i32
    return %c0_i32, %c0_i32_0 : i32, i32
  }
  func.func @transform_9(%arg0: i32) -> (i32, i32) {
    %c0_i32 = arith.constant 0 : i32
    %c0_i32_0 = arith.constant 0 : i32
    %c0_i32_1 = arith.constant 0 : i32
    return %c0_i32, %c0_i32_0 : i32, i32
  }
  func.func @transform_10(%arg0: i32) -> (i32, i32) {
    %c0_i32 = arith.constant 0 : i32
    %c0_i32_0 = arith.constant 0 : i32
    %c0_i32_1 = arith.constant 0 : i32
    return %c0_i32, %c0_i32_0 : i32, i32
  }
  func.func @transform_11(%arg0: i32) -> (i32, i32) {
    %c0_i32 = arith.constant 0 : i32
    %c0_i32_0 = arith.constant 0 : i32
    %c0_i32_1 = arith.constant 0 : i32
    return %c0_i32, %c0_i32_0 : i32, i32
  }
}

</mosaic_0001>

<llo_original>
// kernel: tpu_custom_call.1
$region0: #{tpu_custom_call.1}
  #allocation0 [shape = 'u32[]', space=smem, size = 0x4, offset = 0x4, fixed_abs, tag = 'smem constant byte address 0x4 - core index']
  #allocation1 [shape = 'u32[144,128]{1,0:T(1,128)}', space=vmem, size = 0x12000, scoped, tag = 'internal scratch']
  #allocation2 [shape = 'f32[1,128]{1,0:T(1,128)}', space=vmem, size = 0x200, scoped, tag = 'scratch operand']
  #allocation3 [shape = 'f32[1,128]{1,0:T(1,128)}', space=vmem, size = 0x200, scoped, tag = 'scratch operand']
  #allocation4 [shape = 'f32[2,256,128]{2,1,0:T(8,128)}', space=vmem, size = 0x40000, scoped, tag = 'scratch operand']
  %s0 = inlined_call_operand.vmem [shape: bf16[2,18,18,4], index: 0, kind: input, shape index: {}]
  %s1 = inlined_call_operand.vmem [shape: bf16[9,4,128], index: 1, kind: input, shape index: {}]
  %s2 = inlined_call_operand.vmem [shape: f32[1,128], index: 2, kind: input, shape index: {}]
  %s3 = inlined_call_operand.vmem [shape: f32[1,128], index: 3, kind: input, shape index: {}]
  %s4 = inlined_call_operand.vmem [shape: bf16[128,128], index: 4, kind: input, shape index: {}]
  %s5 = inlined_call_operand.vmem [shape: f32[1,128], index: 5, kind: input, shape index: {}]
  %s6 = inlined_call_operand.vmem [shape: f32[1,128], index: 6, kind: input, shape index: {}]
  %s7 = inlined_call_operand.vmem [shape: bf16[128,128], index: 7, kind: input, shape index: {}]
  %s8 = inlined_call_operand.vmem [shape: f32[1,128], index: 8, kind: input, shape index: {}]
  %s9 = inlined_call_operand.vmem [shape: f32[1,128], index: 9, kind: input, shape index: {}]
  %s10 = inlined_call_operand.vmem [shape: bf16[128,128], index: 10, kind: input, shape index: {}]
  %s11 = inlined_call_operand.hbm [shape: f32[2,128], index: 11, kind: output, shape index: {}]
  %s12 = sld [smem:[#allocation0]]
  $region85: #{tpu_custom_call.1} parent=0
    _
  %s14 = ssub.s32 1, %s12
  %s15 = scalar_select 0, %s14, %s12
  $region1: #{tpu_custom_call.1} parent=0
    #allocation5 [shape = 'u8[1024]{0}', space=vmem, size = 0x400, scoped, tag = 'output window, operand 0, single buffered']
    #allocation6 [shape = 's32[2]{0}', space=sflag, size = 0x8, scoped, tag = 'scoped memory for tpu_custom_call.1']
    %16 = vsyncpa [#allocation6], 0
    loop: start=0, step=1, limit=4
    $region2: #{tpu_custom_call.1} parent=1 // loop_pre_header
      _
    $region3: #{tpu_custom_call.1} parent=1 // loop_header
      %s18 = sphi 0, %s22
      %p19 = scmp.ge.s32.totalorder %s18, 4
      %s28 = sphi 0, %s30
      %s31 = sphi 0, %s28
      %s32 = sphi 0, %s31
      %s48 = sphi 0, %s32
      %s52 = sphi 0, %s52
      %s54 = sphi 0, %s52
      %s55 = sphi 0, %s54
      %s69 = sphi 0, %s55
      %s73 = sphi 0, %s73
      %s75 = sphi 0, %s73
      %s76 = sphi 0, %s75
      %s90 = sphi 0, %s76
      %s94 = sphi 0, %s94
      %s96 = sphi 0, %s94
      %s97 = sphi 0, %s96
      %s111 = sphi 0, %s97
      %s115 = sphi 0, %s115
      %s117 = sphi 0, %s115
      %s118 = sphi 0, %s117
      %s132 = sphi 0, %s118
      %s136 = sphi 0, %s136
      %s138 = sphi 0, %s136
      %s139 = sphi 0, %s138
      %s153 = sphi 0, %s139
      %s157 = sphi 0, %s157
      %s159 = sphi 0, %s157
      %s160 = sphi 0, %s159
      %s174 = sphi 0, %s160
      %s178 = sphi 0, %s178
      %s180 = sphi 0, %s178
      %s181 = sphi 0, %s180
      %s195 = sphi 0, %s181
      %s199 = sphi 0, %s199
      %s201 = sphi 0, %s199
      %s202 = sphi 0, %s201
      %s216 = sphi 0, %s202
      %s220 = sphi 0, %s220
      %s222 = sphi 0, %s220
      %s223 = sphi 0, %s222
      %s237 = sphi 0, %s223
      %s241 = sphi 0, %s241
      %s243 = sphi 0, %s241
      %s244 = sphi 0, %s243
      %s258 = sphi 0, %s244
      %s262 = sphi 0, %s262
      %s264 = sphi 0, %s262
      %s265 = sphi 0, %s264
      %s279 = sphi 0, %s265
    $region4: #{tpu_custom_call.1} parent=1 // loop_header_branch
      %21 = sbr.rel (%p19) target = $region8
    $region5: #{tpu_custom_call.1} parent=1 // loop_body
      %s23 = ssub.s32 %s18, 1
      %s24 = ssub.s32 %s18, 2
      %s25 = sadd.s32 %s18, 1
      %s26 = ssub.s32 %s18, %s25
      %p27 = scmp.eq.s32.totalorder %s26, 0
      %s29 = sadd.s32 %s28, 1
      %s30 = scalar_select %p27, %s28, %s29
      %p33 = pneg %p27
      %p34 = scmp.eq.s32.totalorder %s18, 1
      %p35 = por %p33, %p34
      %p36 = scmp.ne.s32.totalorder %s28, %s31
      %p37 = scmp.eq.s32.totalorder %s18, 0
      %p38 = por %p36, %p37
      %p39 = scmp.ne.s32.totalorder %s28, %s31
      %p40 = scmp.eq.s32.totalorder %s23, 1
      %p41 = por %p39, %p40
      %p42 = scmp.ne.s32.totalorder %s31, %s32
      %p43 = scmp.eq.s32.totalorder %s23, 0
      %p44 = por %p42, %p43
      %p45 = scmp.ne.s32.totalorder %s31, %s32
      %p46 = scmp.eq.s32.totalorder %s24, 1
      %p47 = por %p45, %p46
      %p49 = scmp.ne.s32.totalorder %s32, %s48
      %p50 = scmp.eq.s32.totalorder %s24, 0
      %p51 = por %p49, %p50
      %s53 = sadd.s32 %s52, 1
      %p56 = scmp.eq.s32.totalorder %s18, 1
      %p57 = scmp.ne.s32.totalorder %s52, %s54
      %p58 = scmp.eq.s32.totalorder %s18, 0
      %p59 = por %p57, %p58
      %p60 = scmp.ne.s32.totalorder %s52, %s54
      %p61 = scmp.eq.s32.totalorder %s23, 1
      %p62 = por %p60, %p61
      %p63 = scmp.ne.s32.totalorder %s54, %s55
      %p64 = scmp.eq.s32.totalorder %s23, 0
      %p65 = por %p63, %p64
      %p66 = scmp.ne.s32.totalorder %s54, %s55
      %p67 = scmp.eq.s32.totalorder %s24, 1
      %p68 = por %p66, %p67
      %p70 = scmp.ne.s32.totalorder %s55, %s69
      %p71 = scmp.eq.s32.totalorder %s24, 0
      %p72 = por %p70, %p71
      %s74 = sadd.s32 %s73, 1
      %p77 = scmp.eq.s32.totalorder %s18, 1
      %p78 = scmp.ne.s32.totalorder %s73, %s75
      %p79 = scmp.eq.s32.totalorder %s18, 0
      %p80 = por %p78, %p79
      %p81 = scmp.ne.s32.totalorder %s73, %s75
      %p82 = scmp.eq.s32.totalorder %s23, 1
      %p83 = por %p81, %p82
      %p84 = scmp.ne.s32.totalorder %s75, %s76
      %p85 = scmp.eq.s32.totalorder %s23, 0
      %p86 = por %p84, %p85
      %p87 = scmp.ne.s32.totalorder %s75, %s76
      %p88 = scmp.eq.s32.totalorder %s24, 1
      %p89 = por %p87, %p88
      %p91 = scmp.ne.s32.totalorder %s76, %s90
      %p92 = scmp.eq.s32.totalorder %s24, 0
      %p93 = por %p91, %p92
      %s95 = sadd.s32 %s94, 1
      %p98 = scmp.eq.s32.totalorder %s18, 1
      %p99 = scmp.ne.s32.totalorder %s94, %s96
      %p100 = scmp.eq.s32.totalorder %s18, 0
      %p101 = por %p99, %p100
      %p102 = scmp.ne.s32.totalorder %s94, %s96
      %p103 = scmp.eq.s32.totalorder %s23, 1
      %p104 = por %p102, %p103
      %p105 = scmp.ne.s32.totalorder %s96, %s97
      %p106 = scmp.eq.s32.totalorder %s23, 0
      %p107 = por %p105, %p106
      %p108 = scmp.ne.s32.totalorder %s96, %s97
      %p109 = scmp.eq.s32.totalorder %s24, 1
      %p110 = por %p108, %p109
      %p112 = scmp.ne.s32.totalorder %s97, %s111
      %p113 = scmp.eq.s32.totalorder %s24, 0
      %p114 = por %p112, %p113
      %s116 = sadd.s32 %s115, 1
      %p119 = scmp.eq.s32.totalorder %s18, 1
      %p120 = scmp.ne.s32.totalorder %s115, %s117
      %p121 = scmp.eq.s32.totalorder %s18, 0
      %p122 = por %p120, %p121
      %p123 = scmp.ne.s32.totalorder %s115, %s117
      %p124 = scmp.eq.s32.totalorder %s23, 1
      %p125 = por %p123, %p124
      %p126 = scmp.ne.s32.totalorder %s117, %s118
      %p127 = scmp.eq.s32.totalorder %s23, 0
      %p128 = por %p126, %p127
      %p129 = scmp.ne.s32.totalorder %s117, %s118
      %p130 = scmp.eq.s32.totalorder %s24, 1
      %p131 = por %p129, %p130
      %p133 = scmp.ne.s32.totalorder %s118, %s132
      %p134 = scmp.eq.s32.totalorder %s24, 0
      %p135 = por %p133, %p134
      %s137 = sadd.s32 %s136, 1
      %p140 = scmp.eq.s32.totalorder %s18, 1
      %p141 = scmp.ne.s32.totalorder %s136, %s138
      %p142 = scmp.eq.s32.totalorder %s18, 0
      %p143 = por %p141, %p142
      %p144 = scmp.ne.s32.totalorder %s136, %s138
      %p145 = scmp.eq.s32.totalorder %s23, 1
      %p146 = por %p144, %p145
      %p147 = scmp.ne.s32.totalorder %s138, %s139
      %p148 = scmp.eq.s32.totalorder %s23, 0
      %p149 = por %p147, %p148
      %p150 = scmp.ne.s32.totalorder %s138, %s139
      %p151 = scmp.eq.s32.totalorder %s24, 1
      %p152 = por %p150, %p151
      %p154 = scmp.ne.s32.totalorder %s139, %s153
      %p155 = scmp.eq.s32.totalorder %s24, 0
      %p156 = por %p154, %p155
      %s158 = sadd.s32 %s157, 1
      %p161 = scmp.eq.s32.totalorder %s18, 1
      %p162 = scmp.ne.s32.totalorder %s157, %s159
      %p163 = scmp.eq.s32.totalorder %s18, 0
      %p164 = por %p162, %p163
      %p165 = scmp.ne.s32.totalorder %s157, %s159
      %p166 = scmp.eq.s32.totalorder %s23, 1
      %p167 = por %p165, %p166
      %p168 = scmp.ne.s32.totalorder %s159, %s160
      %p169 = scmp.eq.s32.totalorder %s23, 0
      %p170 = por %p168, %p169
      %p171 = scmp.ne.s32.totalorder %s159, %s160
      %p172 = scmp.eq.s32.totalorder %s24, 1
      %p173 = por %p171, %p172
      %p175 = scmp.ne.s32.totalorder %s160, %s174
      %p176 = scmp.eq.s32.totalorder %s24, 0
      %p177 = por %p175, %p176
      %s179 = sadd.s32 %s178, 1
      %p182 = scmp.eq.s32.totalorder %s18, 1
      %p183 = scmp.ne.s32.totalorder %s178, %s180
      %p184 = scmp.eq.s32.totalorder %s18, 0
      %p185 = por %p183, %p184
      %p186 = scmp.ne.s32.totalorder %s178, %s180
      %p187 = scmp.eq.s32.totalorder %s23, 1
      %p188 = por %p186, %p187
      %p189 = scmp.ne.s32.totalorder %s180, %s181
      %p190 = scmp.eq.s32.totalorder %s23, 0
      %p191 = por %p189, %p190
      %p192 = scmp.ne.s32.totalorder %s180, %s181
      %p193 = scmp.eq.s32.totalorder %s24, 1
      %p194 = por %p192, %p193
      %p196 = scmp.ne.s32.totalorder %s181, %s195
      %p197 = scmp.eq.s32.totalorder %s24, 0
      %p198 = por %p196, %p197
      %s200 = sadd.s32 %s199, 1
      %p203 = scmp.eq.s32.totalorder %s18, 1
      %p204 = scmp.ne.s32.totalorder %s199, %s201
      %p205 = scmp.eq.s32.totalorder %s18, 0
      %p206 = por %p204, %p205
      %p207 = scmp.ne.s32.totalorder %s199, %s201
      %p208 = scmp.eq.s32.totalorder %s23, 1
      %p209 = por %p207, %p208
      %p210 = scmp.ne.s32.totalorder %s201, %s202
      %p211 = scmp.eq.s32.totalorder %s23, 0
      %p212 = por %p210, %p211
      %p213 = scmp.ne.s32.totalorder %s201, %s202
      %p214 = scmp.eq.s32.totalorder %s24, 1
      %p215 = por %p213, %p214
      %p217 = scmp.ne.s32.totalorder %s202, %s216
      %p218 = scmp.eq.s32.totalorder %s24, 0
      %p219 = por %p217, %p218
      %s221 = sadd.s32 %s220, 1
      %p224 = scmp.eq.s32.totalorder %s18, 1
      %p225 = scmp.ne.s32.totalorder %s220, %s222
      %p226 = scmp.eq.s32.totalorder %s18, 0
      %p227 = por %p225, %p226
      %p228 = scmp.ne.s32.totalorder %s220, %s222
      %p229 = scmp.eq.s32.totalorder %s23, 1
      %p230 = por %p228, %p229
      %p231 = scmp.ne.s32.totalorder %s222, %s223
      %p232 = scmp.eq.s32.totalorder %s23, 0
      %p233 = por %p231, %p232
      %p234 = scmp.ne.s32.totalorder %s222, %s223
      %p235 = scmp.eq.s32.totalorder %s24, 1
      %p236 = por %p234, %p235
      %p238 = scmp.ne.s32.totalorder %s223, %s237
      %p239 = scmp.eq.s32.totalorder %s24, 0
      %p240 = por %p238, %p239
      %s242 = sadd.s32 %s241, 1
      %p245 = scmp.eq.s32.totalorder %s18, 1
      %p246 = scmp.ne.s32.totalorder %s241, %s243
      %p247 = scmp.eq.s32.totalorder %s18, 0
      %p248 = por %p246, %p247
      %p249 = scmp.ne.s32.totalorder %s241, %s243
      %p250 = scmp.eq.s32.totalorder %s23, 1
      %p251 = por %p249, %p250
      %p252 = scmp.ne.s32.totalorder %s243, %s244
      %p253 = scmp.eq.s32.totalorder %s23, 0
      %p254 = por %p252, %p253
      %p255 = scmp.ne.s32.totalorder %s243, %s244
      %p256 = scmp.eq.s32.totalorder %s24, 1
      %p257 = por %p255, %p256
      %p259 = scmp.ne.s32.totalorder %s244, %s258
      %p260 = scmp.eq.s32.totalorder %s24, 0
      %p261 = por %p259, %p260
      %s263 = sadd.s32 %s262, 1
      %p266 = scmp.eq.s32.totalorder %s18, 1
      %p267 = scmp.ne.s32.totalorder %s262, %s264
      %p268 = scmp.eq.s32.totalorder %s18, 0
      %p269 = por %p267, %p268
      %p270 = scmp.ne.s32.totalorder %s262, %s264
      %p271 = scmp.eq.s32.totalorder %s23, 1
      %p272 = por %p270, %p271
      %p273 = scmp.ne.s32.totalorder %s264, %s265
      %p274 = scmp.eq.s32.totalorder %s23, 0
      %p275 = por %p273, %p274
      %p276 = scmp.ne.s32.totalorder %s264, %s265
      %p277 = scmp.eq.s32.totalorder %s24, 1
      %p278 = por %p276, %p277
      %p280 = scmp.ne.s32.totalorder %s265, %s279
      %p281 = scmp.eq.s32.totalorder %s24, 0
      %p282 = por %p280, %p281
      %p283 = scmp.le.s32.totalorder 1, %s18
      %p284 = scmp.lt.s32.totalorder %s18, 3
      %p285 = pnand %p283, %p284
      %p286 = pneg %p285
      // Predicated region
      $region9: #{tpu_custom_call.1} parent=5 // pred_check
        _
      $region10: #{tpu_custom_call.1} parent=5 // pred_check_branch
        %288 = sbr.rel (%p285) target = $region12
      $region11: #{tpu_custom_call.1} parent=5 // pred_region
        %s289 = ssub.s32 %s18, 1
        // Predicated region
        $region13: #{tpu_custom_call.1} parent=11 // pred_check
          %p290 = pneg %p65
        $region14: #{tpu_custom_call.1} parent=11 // pred_check_branch
          %292 = sbr.rel (%p290) target = $region16
        $region15: #{tpu_custom_call.1} parent=11 // pred_region
          _
        $region16: #{tpu_custom_call.1} parent=11 // pred_fallthru
          _
        // Predicated region
        $region17: #{tpu_custom_call.1} parent=11 // pred_check
          %p293 = pneg %p86
        $region18: #{tpu_custom_call.1} parent=11 // pred_check_branch
          %295 = sbr.rel (%p293) target = $region20
        $region19: #{tpu_custom_call.1} parent=11 // pred_region
          _
        $region20: #{tpu_custom_call.1} parent=11 // pred_fallthru
          _
        // Predicated region
        $region21: #{tpu_custom_call.1} parent=11 // pred_check
          %p296 = pneg %p107
        $region22: #{tpu_custom_call.1} parent=11 // pred_check_branch
          %298 = sbr.rel (%p296) target = $region24
        $region23: #{tpu_custom_call.1} parent=11 // pred_region
          _
        $region24: #{tpu_custom_call.1} parent=11 // pred_fallthru
          _
        // Predicated region
        $region25: #{tpu_custom_call.1} parent=11 // pred_check
          %p299 = pneg %p128
        $region26: #{tpu_custom_call.1} parent=11 // pred_check_branch
          %301 = sbr.rel (%p299) target = $region28
        $region27: #{tpu_custom_call.1} parent=11 // pred_region
          _
        $region28: #{tpu_custom_call.1} parent=11 // pred_fallthru
          _
        // Predicated region
        $region29: #{tpu_custom_call.1} parent=11 // pred_check
          %p302 = pneg %p149
        $region30: #{tpu_custom_call.1} parent=11 // pred_check_branch
          %304 = sbr.rel (%p302) target = $region32
        $region31: #{tpu_custom_call.1} parent=11 // pred_region
          _
        $region32: #{tpu_custom_call.1} parent=11 // pred_fallthru
          _
        // Predicated region
        $region33: #{tpu_custom_call.1} parent=11 // pred_check
          %p305 = pneg %p170
        $region34: #{tpu_custom_call.1} parent=11 // pred_check_branch
          %307 = sbr.rel (%p305) target = $region36
        $region35: #{tpu_custom_call.1} parent=11 // pred_region
          _
        $region36: #{tpu_custom_call.1} parent=11 // pred_fallthru
          _
        // Predicated region
        $region37: #{tpu_custom_call.1} parent=11 // pred_check
          %p308 = pneg %p191
        $region38: #{tpu_custom_call.1} parent=11 // pred_check_branch
          %310 = sbr.rel (%p308) target = $region40
        $region39: #{tpu_custom_call.1} parent=11 // pred_region
          _
        $region40: #{tpu_custom_call.1} parent=11 // pred_fallthru
          _
        // Predicated region
        $region41: #{tpu_custom_call.1} parent=11 // pred_check
          %p311 = pneg %p212
        $region42: #{tpu_custom_call.1} parent=11 // pred_check_branch
          %313 = sbr.rel (%p311) target = $region44
        $region43: #{tpu_custom_call.1} parent=11 // pred_region
          _
        $region44: #{tpu_custom_call.1} parent=11 // pred_fallthru
          _
        // Predicated region
        $region45: #{tpu_custom_call.1} parent=11 // pred_check
          %p314 = pneg %p233
        $region46: #{tpu_custom_call.1} parent=11 // pred_check_branch
          %316 = sbr.rel (%p314) target = $region48
        $region47: #{tpu_custom_call.1} parent=11 // pred_region
          _
        $region48: #{tpu_custom_call.1} parent=11 // pred_fallthru
          _
        // Predicated region
        $region49: #{tpu_custom_call.1} parent=11 // pred_check
          %p317 = pneg %p254
        $region50: #{tpu_custom_call.1} parent=11 // pred_check_branch
          %319 = sbr.rel (%p317) target = $region52
        $region51: #{tpu_custom_call.1} parent=11 // pred_region
          _
        $region52: #{tpu_custom_call.1} parent=11 // pred_fallthru
          _
      $region12: #{tpu_custom_call.1} parent=5 // pred_fallthru
        _
      %p320 = scmp.lt.s32.totalorder %s18, 2
      // Predicated region
      $region53: #{tpu_custom_call.1} parent=5 // pred_check
        %p321 = pneg %p320
      $region54: #{tpu_custom_call.1} parent=5 // pred_check_branch
        %323 = sbr.rel (%p321) target = $region56
      $region55: #{tpu_custom_call.1} parent=5 // pred_region
        // Predicated region
        $region57: #{tpu_custom_call.1} parent=55 // pred_check
          %p324 = pneg %p38
        $region58: #{tpu_custom_call.1} parent=55 // pred_check_branch
          %326 = sbr.rel (%p324) target = $region60
        $region59: #{tpu_custom_call.1} parent=55 // pred_region
          %p327 = scmp.lt.s32.totalorder %s18, 1
          %s328 = scalar_select %p327, %s18, 1
          %s329 = smul.addr %s328, 54
          %s330 = smul.addr %s329, 4
          %s331 = scalar_lea.vmem %s0, %s330
        $region60: #{tpu_custom_call.1} parent=55 // pred_fallthru
          _
      $region56: #{tpu_custom_call.1} parent=5 // pred_fallthru
        _
      %p332 = scmp.le.s32.totalorder 1, %s18
      %p333 = scmp.lt.s32.totalorder %s18, 3
      %p334 = pnand %p332, %p333
      %p335 = pneg %p334
      // Predicated region
      $region61: #{tpu_custom_call.1} parent=5 // pred_check
        _
      $region62: #{tpu_custom_call.1} parent=5 // pred_check_branch
        %337 = sbr.rel (%p334) target = $region64
      $region63: #{tpu_custom_call.1} parent=5 // pred_region
        %s338 = ssub.s32 %s18, 1
        %p339 = scmp.lt.s32.totalorder %s23, 1
        %s340 = scalar_select %p339, %s23, 1
        %s341 = smul.addr %s340, 54
        %s342 = smul.addr %s341, 4
        %s343 = scalar_lea.vmem %s0, %s342
        %p344 = pneg %p44
        %p345 = pneg %p41
        %p346 = pneg %p65
        %p347 = pneg %p62
        %p348 = pneg %p86
        %p349 = pneg %p83
        %p350 = pneg %p107
        %p351 = pneg %p104
        %p352 = pneg %p128
        %p353 = pneg %p125
        %p354 = pneg %p149
        %p355 = pneg %p146
        %p356 = pneg %p170
        %p357 = pneg %p167
        %p358 = pneg %p191
        %p359 = pneg %p188
        %p360 = pneg %p212
        %p361 = pneg %p209
        %p362 = pneg %p233
        %p363 = pneg %p230
        %p364 = pneg %p254
        %p365 = pneg %p251
        %p366 = pneg %p275
        %p367 = pneg %p272
        %p368 = scmp.lt.s32.totalorder %s23, 1
        %s369 = scalar_select %p368, %s23, 1
        %s370 = smul.addr %s369, 54
        %s371 = smul.addr %s370, 4
        %s372 = scalar_lea.vmem %s0, %s371
        %p374 = scmp.eq.s32.totalorder %s23, 0
        // Predicated region
        $region65: #{tpu_custom_call.1} parent=63 // pred_check
          %p375 = pneg %p374
        $region66: #{tpu_custom_call.1} parent=63 // pred_check_branch
          %377 = sbr.rel (%p375) target = $region68
        $region67: #{tpu_custom_call.1} parent=63 // pred_region
          %378 = vst [vmem:[#allocation2] sm:$0x1] 0.0
          %379 = vst [vmem:[#allocation3] sm:$0x1] 0.0
        $region68: #{tpu_custom_call.1} parent=63 // pred_fallthru
          _
        %v380 = vld [vmem:[%s372] sm:$0xf]
        %v381 = vld [vmem:[%s372 + $0x4] sm:$0xf]
        %v382 = vld [vmem:[%s372 + $0xc] sm:$0xf]
        %v383 = vld [vmem:[%s372 + $0x10] sm:$0xf]
        %v384 = vld [vmem:[%s372 + $0x18] sm:$0xf]
        %v385 = vld [vmem:[%s372 + $0x1c] sm:$0xf]
        %v386 = vld [vmem:[%s372 + $0x24] sm:$0xf]
        %v387 = vld [vmem:[%s372 + $0x28] sm:$0xf]
        %v388 = vld [vmem:[%s372 + $0x30] sm:$0xf]
        %v389 = vld [vmem:[%s372 + $0x34] sm:$0xf]
        %v390 = vld [vmem:[%s372 + $0x3c] sm:$0xf]
        %v391 = vld [vmem:[%s372 + $0x40] sm:$0xf]
        %v392 = vld [vmem:[%s372 + $0x48] sm:$0xf]
        %v393 = vld [vmem:[%s372 + $0x4c] sm:$0xf]
        %v394 = vld [vmem:[%s372 + $0x54] sm:$0xf]
        %v395 = vld [vmem:[%s372 + $0x58] sm:$0xf]
        %v396 = vld [vmem:[%s372 + $0x60] sm:$0xf]
        %v397 = vld [vmem:[%s372 + $0x64] sm:$0xf]
        %v398 = vld [vmem:[%s372 + $0x6c] sm:$0xf]
        %v399 = vld [vmem:[%s372 + $0x70] sm:$0xf]
        %v400 = vld [vmem:[%s372 + $0x78] sm:$0xf]
        %v401 = vld [vmem:[%s372 + $0x7c] sm:$0xf]
        %v402 = vld [vmem:[%s372 + $0x84] sm:$0xf]
        %v403 = vld [vmem:[%s372 + $0x88] sm:$0xf]
        %v404 = vld [vmem:[%s372 + $0x90] sm:$0xf]
        %v405 = vld [vmem:[%s372 + $0x94] sm:$0xf]
        %v406 = vld [vmem:[%s372 + $0x9c] sm:$0xf]
        %v407 = vld [vmem:[%s372 + $0xa0] sm:$0xf]
        %v408 = vld [vmem:[%s372 + $0xa8] sm:$0xf]
        %v409 = vld [vmem:[%s372 + $0xac] sm:$0xf]
        %v410 = vld [vmem:[%s372 + $0xb4] sm:$0xf]
        %v411 = vld [vmem:[%s372 + $0xb8] sm:$0xf]
        %v412 = vld [vmem:[%s1] sm:$0x3]
        %v413 = vld [vmem:[%s372 + $0x8] sm:$0x1]
        %v414 = vld [vmem:[%s372 + $0x14] sm:$0x1]
        %v415 = vld [vmem:[%s372 + $0x20] sm:$0x1]
        %v416 = vld [vmem:[%s372 + $0x2c] sm:$0x1]
        %v417 = vld [vmem:[%s372 + $0x38] sm:$0x1]
        %v418 = vld [vmem:[%s372 + $0x44] sm:$0x1]
        %v419 = vld [vmem:[%s372 + $0x50] sm:$0x1]
        %v420 = vld [vmem:[%s372 + $0x5c] sm:$0x1]
        %v421 = vld [vmem:[%s372 + $0x68] sm:$0x1]
        %v422 = vld [vmem:[%s372 + $0x74] sm:$0x1]
        %v423 = vld [vmem:[%s372 + $0x80] sm:$0x1]
        %v424 = vld [vmem:[%s372 + $0x8c] sm:$0x1]
        %v425 = vld [vmem:[%s372 + $0x98] sm:$0x1]
        %v426 = vld [vmem:[%s372 + $0xa4] sm:$0x1]
        %v427 = vld [vmem:[%s372 + $0xb0] sm:$0x1]
        %v428 = vld [vmem:[%s372 + $0xbc] sm:$0x1]
        %vm429 = vsmask.f32 3328
        %vm430 = vsmask.f32 7440
        %vm431 = vmor %vm429, %vm430
        %v433 = vshrl.u32 %v380, 16
        %v435 = vrot.slane %v433, 4
        %v436 = vshll.u32 %v380, 16
        %v438 = vrot.slane %v436, 5
        %v439 = vor.u32 %v435, %v438
        %v440 = vrot.slane %v439, 4
        %v442 = vshll.u32 %v381, 16
        %v444 = vrot.slane %v442, 5
        %v445 = vsel %vm431, %v440, %v444
        %v446 = vshrl.u32 %v381, 16
        %v448 = vrot.slane %v446, 4
        %v449 = vor.u32 %v448, %v444
        %v450 = vrot.slane %v449, 4
        %v452 = vshll.u32 %v413, 16
        %v454 = vrot.slane %v452, 5
        %v455 = vsel %vm431, %v450, %v454
        %v457 = vshrl.u32 %v382, 16
        %v459 = vrot.slane %v457, 4
        %v460 = vshll.u32 %v382, 16
        %v462 = vrot.slane %v460, 5
        %v463 = vor.u32 %v459, %v462
        %v464 = vrot.slane %v463, 4
        %v466 = vshll.u32 %v383, 16
        %v468 = vrot.slane %v466, 5
        %v469 = vsel %vm431, %v464, %v468
        %v470 = vshrl.u32 %v383, 16
        %v472 = vrot.slane %v470, 4
        %v473 = vor.u32 %v472, %v468
        %v474 = vrot.slane %v473, 4
        %v476 = vshll.u32 %v414, 16
        %v478 = vrot.slane %v476, 5
        %v479 = vsel %vm431, %v474, %v478
        %v481 = vshrl.u32 %v384, 16
        %v483 = vrot.slane %v481, 4
        %v484 = vshll.u32 %v384, 16
        %v486 = vrot.slane %v484, 5
        %v487 = vor.u32 %v483, %v486
        %v488 = vrot.slane %v487, 4
        %v490 = vshll.u32 %v385, 16
        %v492 = vrot.slane %v490, 5
        %v493 = vsel %vm431, %v488, %v492
        %v494 = vshrl.u32 %v385, 16
        %v496 = vrot.slane %v494, 4
        %v497 = vor.u32 %v496, %v492
        %v498 = vrot.slane %v497, 4
        %v500 = vshll.u32 %v415, 16
        %v502 = vrot.slane %v500, 5
        %v503 = vsel %vm431, %v498, %v502
        %v505 = vshrl.u32 %v386, 16
        %v507 = vrot.slane %v505, 4
        %v508 = vshll.u32 %v386, 16
        %v510 = vrot.slane %v508, 5
        %v511 = vor.u32 %v507, %v510
        %v512 = vrot.slane %v511, 4
        %v514 = vshll.u32 %v387, 16
        %v516 = vrot.slane %v514, 5
        %v517 = vsel %vm431, %v512, %v516
        %v518 = vshrl.u32 %v387, 16
        %v520 = vrot.slane %v518, 4
        %v521 = vor.u32 %v520, %v516
        %v522 = vrot.slane %v521, 4
        %v524 = vshll.u32 %v416, 16
        %v526 = vrot.slane %v524, 5
        %v527 = vsel %vm431, %v522, %v526
        %v529 = vshrl.u32 %v388, 16
        %v531 = vrot.slane %v529, 4
        %v532 = vshll.u32 %v388, 16
        %v534 = vrot.slane %v532, 5
        %v535 = vor.u32 %v531, %v534
        %v536 = vrot.slane %v535, 4
        %v538 = vshll.u32 %v389, 16
        %v540 = vrot.slane %v538, 5
        %v541 = vsel %vm431, %v536, %v540
        %v542 = vshrl.u32 %v389, 16
        %v544 = vrot.slane %v542, 4
        %v545 = vor.u32 %v544, %v540
        %v546 = vrot.slane %v545, 4
        %v548 = vshll.u32 %v417, 16
        %v550 = vrot.slane %v548, 5
        %v551 = vsel %vm431, %v546, %v550
        %v553 = vshrl.u32 %v390, 16
        %v555 = vrot.slane %v553, 4
        %v556 = vshll.u32 %v390, 16
        %v558 = vrot.slane %v556, 5
        %v559 = vor.u32 %v555, %v558
        %v560 = vrot.slane %v559, 4
        %v562 = vshll.u32 %v391, 16
        %v564 = vrot.slane %v562, 5
        %v565 = vsel %vm431, %v560, %v564
        %v566 = vshrl.u32 %v391, 16
        %v568 = vrot.slane %v566, 4
        %v569 = vor.u32 %v568, %v564
        %v570 = vrot.slane %v569, 4
        %v572 = vshll.u32 %v418, 16
        %v574 = vrot.slane %v572, 5
        %v575 = vsel %vm431, %v570, %v574
        %v577 = vshrl.u32 %v392, 16
        %v579 = vrot.slane %v577, 4
        %v580 = vshll.u32 %v392, 16
        %v582 = vrot.slane %v580, 5
        %v583 = vor.u32 %v579, %v582
        %v584 = vrot.slane %v583, 4
        %v586 = vshll.u32 %v393, 16
        %v588 = vrot.slane %v586, 5
        %v589 = vsel %vm431, %v584, %v588
        %v590 = vshrl.u32 %v393, 16
        %v592 = vrot.slane %v590, 4
        %v593 = vor.u32 %v592, %v588
        %v594 = vrot.slane %v593, 4
        %v596 = vshll.u32 %v419, 16
        %v598 = vrot.slane %v596, 5
        %v599 = vsel %vm431, %v594, %v598
        %v601 = vshrl.u32 %v394, 16
        %v603 = vrot.slane %v601, 4
        %v604 = vshll.u32 %v394, 16
        %v606 = vrot.slane %v604, 5
        %v607 = vor.u32 %v603, %v606
        %v608 = vrot.slane %v607, 4
        %v610 = vshll.u32 %v395, 16
        %v612 = vrot.slane %v610, 5
        %v613 = vsel %vm431, %v608, %v612
        %v614 = vshrl.u32 %v395, 16
        %v616 = vrot.slane %v614, 4
        %v617 = vor.u32 %v616, %v612
        %v618 = vrot.slane %v617, 4
        %v620 = vshll.u32 %v420, 16
        %v622 = vrot.slane %v620, 5
        %v623 = vsel %vm431, %v618, %v622
        %v625 = vshrl.u32 %v396, 16
        %v627 = vrot.slane %v625, 4
        %v628 = vshll.u32 %v396, 16
        %v630 = vrot.slane %v628, 5
        %v631 = vor.u32 %v627, %v630
        %v632 = vrot.slane %v631, 4
        %v634 = vshll.u32 %v397, 16
        %v636 = vrot.slane %v634, 5
        %v637 = vsel %vm431, %v632, %v636
        %v638 = vshrl.u32 %v397, 16
        %v640 = vrot.slane %v638, 4
        %v641 = vor.u32 %v640, %v636
        %v642 = vrot.slane %v641, 4
        %v644 = vshll.u32 %v421, 16
        %v646 = vrot.slane %v644, 5
        %v647 = vsel %vm431, %v642, %v646
        %v649 = vshrl.u32 %v398, 16
        %v651 = vrot.slane %v649, 4
        %v652 = vshll.u32 %v398, 16
        %v654 = vrot.slane %v652, 5
        %v655 = vor.u32 %v651, %v654
        %v656 = vrot.slane %v655, 4
        %v658 = vshll.u32 %v399, 16
        %v660 = vrot.slane %v658, 5
        %v661 = vsel %vm431, %v656, %v660
        %v662 = vshrl.u32 %v399, 16
        %v664 = vrot.slane %v662, 4
        %v665 = vor.u32 %v664, %v660
        %v666 = vrot.slane %v665, 4
        %v668 = vshll.u32 %v422, 16
        %v670 = vrot.slane %v668, 5
        %v671 = vsel %vm431, %v666, %v670
        %v673 = vshrl.u32 %v400, 16
        %v675 = vrot.slane %v673, 4
        %v676 = vshll.u32 %v400, 16
        %v678 = vrot.slane %v676, 5
        %v679 = vor.u32 %v675, %v678
        %v680 = vrot.slane %v679, 4
        %v682 = vshll.u32 %v401, 16
        %v684 = vrot.slane %v682, 5
        %v685 = vsel %vm431, %v680, %v684
        %v686 = vshrl.u32 %v401, 16
        %v688 = vrot.slane %v686, 4
        %v689 = vor.u32 %v688, %v684
        %v690 = vrot.slane %v689, 4
        %v692 = vshll.u32 %v423, 16
        %v694 = vrot.slane %v692, 5
        %v695 = vsel %vm431, %v690, %v694
        %v697 = vshrl.u32 %v402, 16
        %v699 = vrot.slane %v697, 4
        %v700 = vshll.u32 %v402, 16
        %v702 = vrot.slane %v700, 5
        %v703 = vor.u32 %v699, %v702
        %v704 = vrot.slane %v703, 4
        %v706 = vshll.u32 %v403, 16
        %v708 = vrot.slane %v706, 5
        %v709 = vsel %vm431, %v704, %v708
        %v710 = vshrl.u32 %v403, 16
        %v712 = vrot.slane %v710, 4
        %v713 = vor.u32 %v712, %v708
        %v714 = vrot.slane %v713, 4
        %v716 = vshll.u32 %v424, 16
        %v718 = vrot.slane %v716, 5
        %v719 = vsel %vm431, %v714, %v718
        %v721 = vshrl.u32 %v404, 16
        %v723 = vrot.slane %v721, 4
        %v724 = vshll.u32 %v404, 16
        %v726 = vrot.slane %v724, 5
        %v727 = vor.u32 %v723, %v726
        %v728 = vrot.slane %v727, 4
        %v730 = vshll.u32 %v405, 16
        %v732 = vrot.slane %v730, 5
        %v733 = vsel %vm431, %v728, %v732
        %v734 = vshrl.u32 %v405, 16
        %v736 = vrot.slane %v734, 4
        %v737 = vor.u32 %v736, %v732
        %v738 = vrot.slane %v737, 4
        %v740 = vshll.u32 %v425, 16
        %v742 = vrot.slane %v740, 5
        %v743 = vsel %vm431, %v738, %v742
        %v745 = vshrl.u32 %v406, 16
        %v747 = vrot.slane %v745, 4
        %v748 = vshll.u32 %v406, 16
        %v750 = vrot.slane %v748, 5
        %v751 = vor.u32 %v747, %v750
        %v752 = vrot.slane %v751, 4
        %v754 = vshll.u32 %v407, 16
        %v756 = vrot.slane %v754, 5
        %v757 = vsel %vm431, %v752, %v756
        %v758 = vshrl.u32 %v407, 16
        %v760 = vrot.slane %v758, 4
        %v761 = vor.u32 %v760, %v756
        %v762 = vrot.slane %v761, 4
        %v764 = vshll.u32 %v426, 16
        %v766 = vrot.slane %v764, 5
        %v767 = vsel %vm431, %v762, %v766
        %v769 = vshrl.u32 %v408, 16
        %v771 = vrot.slane %v769, 4
        %v772 = vshll.u32 %v408, 16
        %v774 = vrot.slane %v772, 5
        %v775 = vor.u32 %v771, %v774
        %v776 = vrot.slane %v775, 4
        %v778 = vshll.u32 %v409, 16
        %v780 = vrot.slane %v778, 5
        %v781 = vsel %vm431, %v776, %v780
        %v782 = vshrl.u32 %v409, 16
        %v784 = vrot.slane %v782, 4
        %v785 = vor.u32 %v784, %v780
        %v786 = vrot.slane %v785, 4
        %v788 = vshll.u32 %v427, 16
        %v790 = vrot.slane %v788, 5
        %v791 = vsel %vm431, %v786, %v790
        %v793 = vshrl.u32 %v410, 16
        %v795 = vrot.slane %v793, 4
        %v796 = vshll.u32 %v410, 16
        %v798 = vrot.slane %v796, 5
        %v799 = vor.u32 %v795, %v798
        %v800 = vrot.slane %v799, 4
        %v802 = vshll.u32 %v411, 16
        %v804 = vrot.slane %v802, 5
        %v805 = vsel %vm431, %v800, %v804
        %v806 = vshrl.u32 %v411, 16
        %v808 = vrot.slane %v806, 4
        %v809 = vor.u32 %v808, %v804
        %v810 = vrot.slane %v809, 4
        %v812 = vshll.u32 %v428, 16
        %v814 = vrot.slane %v812, 5
        %v815 = vsel %vm431, %v810, %v814
        %s816 = scalar_lea.vmem %s1, 2
        %v817 = vld [vmem:[%s816] sm:$0x3]
        %v818 = vunpack.c.l.b16 %v445
        %v819 = vunpack.c.l.b16 %v455
        %v820 = vunpack.c.l.b16 %v469
        %v821 = vunpack.c.l.b16 %v479
        %v822 = vunpack.c.l.b16 %v493
        %v823 = vunpack.c.l.b16 %v503
        %v824 = vunpack.c.l.b16 %v517
        %v825 = vunpack.c.l.b16 %v527
        %v826 = vunpack.c.l.b16 %v541
        %v827 = vunpack.c.l.b16 %v551
        %v828 = vunpack.c.l.b16 %v565
        %v829 = vunpack.c.l.b16 %v575
        %v830 = vunpack.c.l.b16 %v589
        %v831 = vunpack.c.l.b16 %v599
        %v832 = vunpack.c.l.b16 %v613
        %v833 = vunpack.c.l.b16 %v623
        %v834 = vunpack.c.l.b16 %v637
        %v835 = vunpack.c.l.b16 %v647
        %v836 = vunpack.c.l.b16 %v661
        %v837 = vunpack.c.l.b16 %v671
        %v838 = vunpack.c.l.b16 %v685
        %v839 = vunpack.c.l.b16 %v695
        %v840 = vunpack.c.l.b16 %v709
        %v841 = vunpack.c.l.b16 %v719
        %v842 = vunpack.c.l.b16 %v733
        %v843 = vunpack.c.l.b16 %v743
        %v844 = vunpack.c.l.b16 %v757
        %v845 = vunpack.c.l.b16 %v767
        %v846 = vunpack.c.l.b16 %v781
        %v847 = vunpack.c.l.b16 %v791
        %v848 = vunpack.c.l.b16 %v805
        %v849 = vunpack.c.l.b16 %v815
        %v850 = vpack.c.b16 %v819, %v818
        %v851 = vpack.c.b16 %v821, %v820
        %v852 = vpack.c.b16 %v823, %v822
        %v853 = vpack.c.b16 %v825, %v824
        %v854 = vpack.c.b16 %v827, %v826
        %v855 = vpack.c.b16 %v829, %v828
        %v856 = vpack.c.b16 %v831, %v830
        %v857 = vpack.c.b16 %v833, %v832
        %v858 = vpack.c.b16 %v835, %v834
        %v859 = vpack.c.b16 %v837, %v836
        %v860 = vpack.c.b16 %v839, %v838
        %v861 = vpack.c.b16 %v841, %v840
        %v862 = vpack.c.b16 %v843, %v842
        %v863 = vpack.c.b16 %v845, %v844
        %v864 = vpack.c.b16 %v847, %v846
        %v865 = vpack.c.b16 %v849, %v848
        %vm866 = vcmask 31744
        %v868 = vsel %vm866, %v850, 0
        %v871 = vsel %vm866, %v851, 0
        %v874 = vsel %vm866, %v852, 0
        %v877 = vsel %vm866, %v853, 0
        %v880 = vsel %vm866, %v854, 0
        %v883 = vsel %vm866, %v855, 0
        %v886 = vsel %vm866, %v856, 0
        %v889 = vsel %vm866, %v857, 0
        %v892 = vsel %vm866, %v858, 0
        %v895 = vsel %vm866, %v859, 0
        %v898 = vsel %vm866, %v860, 0
        %v901 = vsel %vm866, %v861, 0
        %v904 = vsel %vm866, %v862, 0
        %v907 = vsel %vm866, %v863, 0
        %v910 = vsel %vm866, %v864, 0
        %v913 = vsel %vm866, %v865, 0
        %vm915 = vcmask 1041408
        %v917 = vsel %vm915, %v817, 0
        %919 = vmatprep.subr.bf16.mxu0 0
        %920 = vmatpush1.bf16.msra.mxu0 %v917
        %921 = vmatprep.subr.bf16.mxu0 0
        %922 = vmatpush1.bf16.msra.mxu0 0
        %923 = vmatprep.subr.bf16.mxu0 0
        %924 = vmatpush1.bf16.msra.mxu0 0
        %925 = vmatprep.subr.bf16.mxu0 0
        %926 = vmatpush1.bf16.msra.mxu0 0
        %927 = vmatprep.subr.bf16.mxu0 0
        %928 = vmatpush1.bf16.msra.mxu0 0
        %929 = vmatprep.subr.bf16.mxu0 0
        %930 = vmatpush1.bf16.msra.mxu0 0
        %931 = vmatprep.subr.bf16.mxu0 0
        %932 = vmatpush1.bf16.msra.mxu0 0
        %933 = vmatprep.subr.bf16.mxu0 0
        %934 = vmatpush1.bf16.msra.mxu0 0
        %935 = vmatprep.subr.bf16.mxu0 0
        %936 = vmatpush1.bf16.msra.mxu0 0
        %937 = vmatprep.subr.bf16.mxu0 0
        %938 = vmatpush1.bf16.msra.mxu0 0
        %939 = vmatprep.subr.bf16.mxu0 0
        %940 = vmatpush1.bf16.msra.mxu0 0
        %941 = vmatprep.subr.bf16.mxu0 0
        %942 = vmatpush1.bf16.msra.mxu0 0
        %943 = vmatprep.subr.bf16.mxu0 0
        %944 = vmatpush1.bf16.msra.mxu0 0
        %945 = vmatprep.subr.bf16.mxu0 0
        %946 = vmatpush1.bf16.msra.mxu0 0
        %947 = vmatprep.subr.bf16.mxu0 0
        %948 = vmatpush1.bf16.msra.mxu0 0
        %949 = vmatprep.subr.bf16.mxu0 0
        %950 = vmatpush1.bf16.msra.mxu0 0
        %951 = vmatprep.mubr.bf16.mxu0 0
        %952 = vmatmul.mubr.bf16.gmra.mrb[0].mxu0 %v868
        %v953 = vpop.f32.mrb[0].mxu0
        %v954 = vadd.f32 0.0, %v953
        %v955 = vpop.f32.mrb[0].mxu0
        %v956 = vpop.f32.mrb[0].mxu0
        %v957 = vadd.f32 0.0, %v956
        %v958 = vpop.f32.mrb[0].mxu0
        %959 = vmatprep.mubr.bf16.mxu0 0
        %960 = vmatmul.mubr.bf16.gmra.mrb[0].mxu0 %v871
        %v961 = vpop.f32.mrb[0].mxu0
        %v962 = vadd.f32 0.0, %v961
        %v963 = vpop.f32.mrb[0].mxu0
        %v964 = vpop.f32.mrb[0].mxu0
        %v965 = vadd.f32 0.0, %v964
        %v966 = vpop.f32.mrb[0].mxu0
        %967 = vmatprep.mubr.bf16.mxu0 0
        %968 = vmatmul.mubr.bf16.gmra.mrb[0].mxu0 %v874
        %v969 = vpop.f32.mrb[0].mxu0
        %v970 = vadd.f32 0.0, %v969
        %v971 = vpop.f32.mrb[0].mxu0
        %v972 = vpop.f32.mrb[0].mxu0
        %v973 = vadd.f32 0.0, %v972
        %v974 = vpop.f32.mrb[0].mxu0
        %975 = vmatprep.mubr.bf16.mxu0 0
        %976 = vmatmul.mubr.bf16.gmra.mrb[0].mxu0 %v877
        %v977 = vpop.f32.mrb[0].mxu0
        %v978 = vadd.f32 0.0, %v977
        %v979 = vpop.f32.mrb[0].mxu0
        %v980 = vpop.f32.mrb[0].mxu0
        %v981 = vadd.f32 0.0, %v980
        %v982 = vpop.f32.mrb[0].mxu0
        %983 = vmatprep.mubr.bf16.mxu0 0
        %984 = vmatmul.mubr.bf16.gmra.mrb[0].mxu0 %v880
        %v985 = vpop.f32.mrb[0].mxu0
        %v986 = vadd.f32 0.0, %v985
        %v987 = vpop.f32.mrb[0].mxu0
        %v988 = vpop.f32.mrb[0].mxu0
        %v989 = vadd.f32 0.0, %v988
        %v990 = vpop.f32.mrb[0].mxu0
        %991 = vmatprep.mubr.bf16.mxu0 0
        %992 = vmatmul.mubr.bf16.gmra.mrb[0].mxu0 %v883
        %v993 = vpop.f32.mrb[0].mxu0
        %v994 = vadd.f32 0.0, %v993
        %v995 = vpop.f32.mrb[0].mxu0
        %v996 = vpop.f32.mrb[0].mxu0
        %v997 = vadd.f32 0.0, %v996
        %v998 = vpop.f32.mrb[0].mxu0
        %999 = vmatprep.mubr.bf16.mxu0 0
        %1000 = vmatmul.mubr.bf16.gmra.mrb[0].mxu0 %v886
        %v1001 = vpop.f32.mrb[0].mxu0
        %v1002 = vadd.f32 0.0, %v1001
        %v1003 = vpop.f32.mrb[0].mxu0
        %v1004 = vpop.f32.mrb[0].mxu0
        %v1005 = vadd.f32 0.0, %v1004
        %v1006 = vpop.f32.mrb[0].mxu0
        %1007 = vmatprep.mubr.bf16.mxu0 0
        %1008 = vmatmul.mubr.bf16.gmra.mrb[0].mxu0 %v889
        %v1009 = vpop.f32.mrb[0].mxu0
        %v1010 = vadd.f32 0.0, %v1009
        %v1011 = vpop.f32.mrb[0].mxu0
        %v1012 = vpop.f32.mrb[0].mxu0
        %v1013 = vadd.f32 0.0, %v1012
        %v1014 = vpop.f32.mrb[0].mxu0
        %1015 = vmatprep.mubr.bf16.mxu0 0
        %1016 = vmatmul.mubr.bf16.gmra.mrb[0].mxu0 %v892
        %v1017 = vpop.f32.mrb[0].mxu0
        %v1018 = vadd.f32 0.0, %v1017
        %v1019 = vpop.f32.mrb[0].mxu0
        %v1020 = vpop.f32.mrb[0].mxu0
        %v1021 = vadd.f32 0.0, %v1020
        %v1022 = vpop.f32.mrb[0].mxu0
        %1023 = vmatprep.mubr.bf16.mxu0 0
        %1024 = vmatmul.mubr.bf16.gmra.mrb[0].mxu0 %v895
        %v1025 = vpop.f32.mrb[0].mxu0
        %v1026 = vadd.f32 0.0, %v1025
        %v1027 = vpop.f32.mrb[0].mxu0
        %v1028 = vpop.f32.mrb[0].mxu0
        %v1029 = vadd.f32 0.0, %v1028
        %v1030 = vpop.f32.mrb[0].mxu0
        %1031 = vmatprep.mubr.bf16.mxu0 0
        %1032 = vmatmul.mubr.bf16.gmra.mrb[0].mxu0 %v898
        %v1033 = vpop.f32.mrb[0].mxu0
        %v1034 = vadd.f32 0.0, %v1033
        %v1035 = vpop.f32.mrb[0].mxu0
        %v1036 = vpop.f32.mrb[0].mxu0
        %v1037 = vadd.f32 0.0, %v1036
        %v1038 = vpop.f32.mrb[0].mxu0
        %1039 = vmatprep.mubr.bf16.mxu0 0
        %1040 = vmatmul.mubr.bf16.gmra.mrb[0].mxu0 %v901
        %v1041 = vpop.f32.mrb[0].mxu0
        %v1042 = vadd.f32 0.0, %v1041
        %v1043 = vpop.f32.mrb[0].mxu0
        %v1044 = vpop.f32.mrb[0].mxu0
        %v1045 = vadd.f32 0.0, %v1044
        %v1046 = vpop.f32.mrb[0].mxu0
        %1047 = vmatprep.mubr.bf16.mxu0 0
        %1048 = vmatmul.mubr.bf16.gmra.mrb[0].mxu0 %v904
        %v1049 = vpop.f32.mrb[0].mxu0
        %v1050 = vadd.f32 0.0, %v1049
        %v1051 = vpop.f32.mrb[0].mxu0
        %v1052 = vpop.f32.mrb[0].mxu0
        %v1053 = vadd.f32 0.0, %v1052
        %v1054 = vpop.f32.mrb[0].mxu0
        %1055 = vmatprep.mubr.bf16.mxu0 0
        %1056 = vmatmul.mubr.bf16.gmra.mrb[0].mxu0 %v907
        %v1057 = vpop.f32.mrb[0].mxu0
        %v1058 = vadd.f32 0.0, %v1057
        %v1059 = vpop.f32.mrb[0].mxu0
        %v1060 = vpop.f32.mrb[0].mxu0
        %v1061 = vadd.f32 0.0, %v1060
        %v1062 = vpop.f32.mrb[0].mxu0
        %1063 = vmatprep.mubr.bf16.mxu0 0
        %1064 = vmatmul.mubr.bf16.gmra.mrb[0].mxu0 %v910
        %v1065 = vpop.f32.mrb[0].mxu0
        %v1066 = vadd.f32 0.0, %v1065
        %v1067 = vpop.f32.mrb[0].mxu0
        %v1068 = vpop.f32.mrb[0].mxu0
        %v1069 = vadd.f32 0.0, %v1068
        %v1070 = vpop.f32.mrb[0].mxu0
        %1071 = vmatprep.mubr.bf16.mxu0 0
        %1072 = vmatmul.mubr.bf16.gmra.mrb[0].mxu0 %v913
        %v1073 = vpop.f32.mrb[0].mxu0
        %v1074 = vadd.f32 0.0, %v1073
        %v1075 = vpop.f32.mrb[0].mxu0
        %v1076 = vpop.f32.mrb[0].mxu0
        %v1077 = vadd.f32 0.0, %v1076
        %v1078 = vpop.f32.mrb[0].mxu0
        %1079 = vdwg.mxu0
        %v1112 = vunpack.c.l.b16 %v380
        %v1113 = vunpack.c.l.b16 %v381
        %v1114 = vunpack.c.l.b16 %v382
        %v1115 = vunpack.c.l.b16 %v383
        %v1116 = vunpack.c.l.b16 %v384
        %v1117 = vunpack.c.l.b16 %v385
        %v1118 = vunpack.c.l.b16 %v386
        %v1119 = vunpack.c.l.b16 %v387
        %v1120 = vunpack.c.l.b16 %v388
        %v1121 = vunpack.c.l.b16 %v389
        %v1122 = vunpack.c.l.b16 %v390
        %v1123 = vunpack.c.l.b16 %v391
        %v1124 = vunpack.c.l.b16 %v392
        %v1125 = vunpack.c.l.b16 %v393
        %v1126 = vunpack.c.l.b16 %v394
        %v1127 = vunpack.c.l.b16 %v395
        %v1128 = vunpack.c.l.b16 %v396
        %v1129 = vunpack.c.l.b16 %v397
        %v1130 = vunpack.c.l.b16 %v398
        %v1131 = vunpack.c.l.b16 %v399
        %v1132 = vunpack.c.l.b16 %v400
        %v1133 = vunpack.c.l.b16 %v401
        %v1134 = vunpack.c.l.b16 %v402
        %v1135 = vunpack.c.l.b16 %v403
        %v1136 = vunpack.c.l.b16 %v404
        %v1137 = vunpack.c.l.b16 %v405
        %v1138 = vunpack.c.l.b16 %v406
        %v1139 = vunpack.c.l.b16 %v407
        %v1140 = vunpack.c.l.b16 %v408
        %v1141 = vunpack.c.l.b16 %v409
        %v1142 = vunpack.c.l.b16 %v410
        %v1143 = vunpack.c.l.b16 %v411
        %v1144 = vpack.c.b16 %v1113, %v1112
        %v1145 = vpack.c.b16 %v1115, %v1114
        %v1146 = vpack.c.b16 %v1117, %v1116
        %v1147 = vpack.c.b16 %v1119, %v1118
        %v1148 = vpack.c.b16 %v1121, %v1120
        %v1149 = vpack.c.b16 %v1123, %v1122
        %v1150 = vpack.c.b16 %v1125, %v1124
        %v1151 = vpack.c.b16 %v1127, %v1126
        %v1152 = vpack.c.b16 %v1129, %v1128
        %v1153 = vpack.c.b16 %v1131, %v1130
        %v1154 = vpack.c.b16 %v1133, %v1132
        %v1155 = vpack.c.b16 %v1135, %v1134
        %v1156 = vpack.c.b16 %v1137, %v1136
        %v1157 = vpack.c.b16 %v1139, %v1138
        %v1158 = vpack.c.b16 %v1141, %v1140
        %v1159 = vpack.c.b16 %v1143, %v1142
        %v1161 = vsel %vm866, %v1144, 0
        %v1164 = vsel %vm866, %v1145, 0
        %v1167 = vsel %vm866, %v1146, 0
        %v1170 = vsel %vm866, %v1147, 0
        %v1173 = vsel %vm866, %v1148, 0
        %v1176 = vsel %vm866, %v1149, 0
        %v1179 = vsel %vm866, %v1150, 0
        %v1182 = vsel %vm866, %v1151, 0
        %v1185 = vsel %vm866, %v1152, 0
        %v1188 = vsel %vm866, %v1153, 0
        %v1191 = vsel %vm866, %v1154, 0
        %v1194 = vsel %vm866, %v1155, 0
        %v1197 = vsel %vm866, %v1156, 0
        %v1200 = vsel %vm866, %v1157, 0
        %v1203 = vsel %vm866, %v1158, 0
        %v1206 = vsel %vm866, %v1159, 0
        %v1209 = vsel %vm915, %v412, 0
        %1211 = vmatprep.subr.bf16.mxu0 0
        %1212 = vmatpush1.bf16.msra.mxu0 %v1209
        %1213 = vmatprep.subr.bf16.mxu0 0
        %1214 = vmatpush1.bf16.msra.mxu0 0
        %1215 = vmatprep.subr.bf16.mxu0 0
        %1216 = vmatpush1.bf16.msra.mxu0 0
        %1217 = vmatprep.subr.bf16.mxu0 0
        %1218 = vmatpush1.bf16.msra.mxu0 0
        %1219 = vmatprep.subr.bf16.mxu0 0
        %1220 = vmatpush1.bf16.msra.mxu0 0
        %1221 = vmatprep.subr.bf16.mxu0 0
        %1222 = vmatpush1.bf16.msra.mxu0 0
        %1223 = vmatprep.subr.bf16.mxu0 0
        %1224 = vmatpush1.bf16.msra.mxu0 0
        %1225 = vmatprep.subr.bf16.mxu0 0
        %1226 = vmatpush1.bf16.msra.mxu0 0
        %1227 = vmatprep.subr.bf16.mxu0 0
        %1228 = vmatpush1.bf16.msra.mxu0 0
        %1229 = vmatprep.subr.bf16.mxu0 0
        %1230 = vmatpush1.bf16.msra.mxu0 0
        %1231 = vmatprep.subr.bf16.mxu0 0
        %1232 = vmatpush1.bf16.msra.mxu0 0
        %1233 = vmatprep.subr.bf16.mxu0 0
        %1234 = vmatpush1.bf16.msra.mxu0 0
        %1235 = vmatprep.subr.bf16.mxu0 0
        %1236 = vmatpush1.bf16.msra.mxu0 0
        %1237 = vmatprep.subr.bf16.mxu0 0
        %1238 = vmatpush1.bf16.msra.mxu0 0
        %1239 = vmatprep.subr.bf16.mxu0 0
        %1240 = vmatpush1.bf16.msra.mxu0 0
        %1241 = vmatprep.subr.bf16.mxu0 0
        %1242 = vmatpush1.bf16.msra.mxu0 0
        %1243 = vmatprep.mubr.bf16.mxu0 0
        %1244 = vmatmul.mubr.bf16.gmra.mrb[0].mxu0 %v1161
        %v1245 = vpop.f32.mrb[0].mxu0
        %v1246 = vadd.f32 %v954, %v1245
        %v1247 = vpop.f32.mrb[0].mxu0
        %v1248 = vpop.f32.mrb[0].mxu0
        %v1249 = vadd.f32 %v957, %v1248
        %v1250 = vpop.f32.mrb[0].mxu0
        %1251 = vmatprep.mubr.bf16.mxu0 0
        %1252 = vmatmul.mubr.bf16.gmra.mrb[0].mxu0 %v1164
        %v1253 = vpop.f32.mrb[0].mxu0
        %v1254 = vadd.f32 %v962, %v1253
        %v1255 = vpop.f32.mrb[0].mxu0
        %v1256 = vpop.f32.mrb[0].mxu0
        %v1257 = vadd.f32 %v965, %v1256
        %v1258 = vpop.f32.mrb[0].mxu0
        %1259 = vmatprep.mubr.bf16.mxu0 0
        %1260 = vmatmul.mubr.bf16.gmra.mrb[0].mxu0 %v1167
        %v1261 = vpop.f32.mrb[0].mxu0
        %v1262 = vadd.f32 %v970, %v1261
        %v1263 = vpop.f32.mrb[0].mxu0
        %v1264 = vpop.f32.mrb[0].mxu0
        %v1265 = vadd.f32 %v973, %v1264
        %v1266 = vpop.f32.mrb[0].mxu0
        %1267 = vmatprep.mubr.bf16.mxu0 0
        %1268 = vmatmul.mubr.bf16.gmra.mrb[0].mxu0 %v1170
        %v1269 = vpop.f32.mrb[0].mxu0
        %v1270 = vadd.f32 %v978, %v1269
        %v1271 = vpop.f32.mrb[0].mxu0
        %v1272 = vpop.f32.mrb[0].mxu0
        %v1273 = vadd.f32 %v981, %v1272
        %v1274 = vpop.f32.mrb[0].mxu0
        %1275 = vmatprep.mubr.bf16.mxu0 0
        %1276 = vmatmul.mubr.bf16.gmra.mrb[0].mxu0 %v1173
        %v1277 = vpop.f32.mrb[0].mxu0
        %v1278 = vadd.f32 %v986, %v1277
        %v1279 = vpop.f32.mrb[0].mxu0
        %v1280 = vpop.f32.mrb[0].mxu0
        %v1281 = vadd.f32 %v989, %v1280
        %v1282 = vpop.f32.mrb[0].mxu0
        %1283 = vmatprep.mubr.bf16.mxu0 0
        %1284 = vmatmul.mubr.bf16.gmra.mrb[0].mxu0 %v1176
        %v1285 = vpop.f32.mrb[0].mxu0
        %v1286 = vadd.f32 %v994, %v1285
        %v1287 = vpop.f32.mrb[0].mxu0
        %v1288 = vpop.f32.mrb[0].mxu0
        %v1289 = vadd.f32 %v997, %v1288
        %v1290 = vpop.f32.mrb[0].mxu0
        %1291 = vmatprep.mubr.bf16.mxu0 0
        %1292 = vmatmul.mubr.bf16.gmra.mrb[0].mxu0 %v1179
        %v1293 = vpop.f32.mrb[0].mxu0
        %v1294 = vadd.f32 %v1002, %v1293
        %v1295 = vpop.f32.mrb[0].mxu0
        %v1296 = vpop.f32.mrb[0].mxu0
        %v1297 = vadd.f32 %v1005, %v1296
        %v1298 = vpop.f32.mrb[0].mxu0
        %1299 = vmatprep.mubr.bf16.mxu0 0
        %1300 = vmatmul.mubr.bf16.gmra.mrb[0].mxu0 %v1182
        %v1301 = vpop.f32.mrb[0].mxu0
        %v1302 = vadd.f32 %v1010, %v1301
        %v1303 = vpop.f32.mrb[0].mxu0
        %v1304 = vpop.f32.mrb[0].mxu0
        %v1305 = vadd.f32 %v1013, %v1304
        %v1306 = vpop.f32.mrb[0].mxu0
        %1307 = vmatprep.mubr.bf16.mxu0 0
        %1308 = vmatmul.mubr.bf16.gmra.mrb[0].mxu0 %v1185
        %v1309 = vpop.f32.mrb[0].mxu0
        %v1310 = vadd.f32 %v1018, %v1309
        %v1311 = vpop.f32.mrb[0].mxu0
        %v1312 = vpop.f32.mrb[0].mxu0
        %v1313 = vadd.f32 %v1021, %v1312
        %v1314 = vpop.f32.mrb[0].mxu0
        %1315 = vmatprep.mubr.bf16.mxu0 0
        %1316 = vmatmul.mubr.bf16.gmra.mrb[0].mxu0 %v1188
        %v1317 = vpop.f32.mrb[0].mxu0
        %v1318 = vadd.f32 %v1026, %v1317
        %v1319 = vpop.f32.mrb[0].mxu0
        %v1320 = vpop.f32.mrb[0].mxu0
        %v1321 = vadd.f32 %v1029, %v1320
        %v1322 = vpop.f32.mrb[0].mxu0
        %1323 = vmatprep.mubr.bf16.mxu0 0
        %1324 = vmatmul.mubr.bf16.gmra.mrb[0].mxu0 %v1191
        %v1325 = vpop.f32.mrb[0].mxu0
        %v1326 = vadd.f32 %v1034, %v1325
        %v1327 = vpop.f32.mrb[0].mxu0
        %v1328 = vpop.f32.mrb[0].mxu0
        %v1329 = vadd.f32 %v1037, %v1328
        %v1330 = vpop.f32.mrb[0].mxu0
        %1331 = vmatprep.mubr.bf16.mxu0 0
        %1332 = vmatmul.mubr.bf16.gmra.mrb[0].mxu0 %v1194
        %v1333 = vpop.f32.mrb[0].mxu0
        %v1334 = vadd.f32 %v1042, %v1333
        %v1335 = vpop.f32.mrb[0].mxu0
        %v1336 = vpop.f32.mrb[0].mxu0
        %v1337 = vadd.f32 %v1045, %v1336
        %v1338 = vpop.f32.mrb[0].mxu0
        %1339 = vmatprep.mubr.bf16.mxu0 0
        %1340 = vmatmul.mubr.bf16.gmra.mrb[0].mxu0 %v1197
        %v1341 = vpop.f32.mrb[0].mxu0
        %v1342 = vadd.f32 %v1050, %v1341
        %v1343 = vpop.f32.mrb[0].mxu0
        %v1344 = vpop.f32.mrb[0].mxu0
        %v1345 = vadd.f32 %v1053, %v1344
        %v1346 = vpop.f32.mrb[0].mxu0
        %1347 = vmatprep.mubr.bf16.mxu0 0
        %1348 = vmatmul.mubr.bf16.gmra.mrb[0].mxu0 %v1200
        %v1349 = vpop.f32.mrb[0].mxu0
        %v1350 = vadd.f32 %v1058, %v1349
        %v1351 = vpop.f32.mrb[0].mxu0
        %v1352 = vpop.f32.mrb[0].mxu0
        %v1353 = vadd.f32 %v1061, %v1352
        %v1354 = vpop.f32.mrb[0].mxu0
        %1355 = vmatprep.mubr.bf16.mxu0 0
        %1356 = vmatmul.mubr.bf16.gmra.mrb[0].mxu0 %v1203
        %v1357 = vpop.f32.mrb[0].mxu0
        %v1358 = vadd.f32 %v1066, %v1357
        %v1359 = vpop.f32.mrb[0].mxu0
        %v1360 = vpop.f32.mrb[0].mxu0
        %v1361 = vadd.f32 %v1069, %v1360
        %v1362 = vpop.f32.mrb[0].mxu0
        %1363 = vmatprep.mubr.bf16.mxu0 0
        %1364 = vmatmul.mubr.bf16.gmra.mrb[0].mxu0 %v1206
        %v1365 = vpop.f32.mrb[0].mxu0
        %v1366 = vadd.f32 %v1074, %v1365
        %v1367 = vpop.f32.mrb[0].mxu0
        %v1368 = vpop.f32.mrb[0].mxu0
        %v1369 = vadd.f32 %v1077, %v1368
        %v1370 = vpop.f32.mrb[0].mxu0
        %1371 = vdwg.mxu0
        %v1372 = vld [vmem:[%s372] sm:$0xe]
        %v1373 = vld [vmem:[%s372 + $0xc] sm:$0xe]
        %v1374 = vld [vmem:[%s372 + $0x18] sm:$0xe]
        %v1375 = vld [vmem:[%s372 + $0x24] sm:$0xe]
        %v1376 = vld [vmem:[%s372 + $0x30] sm:$0xe]
        %v1377 = vld [vmem:[%s372 + $0x3c] sm:$0xe]
        %v1378 = vld [vmem:[%s372 + $0x48] sm:$0xe]
        %v1379 = vld [vmem:[%s372 + $0x54] sm:$0xe]
        %v1380 = vld [vmem:[%s372 + $0x60] sm:$0xe]
        %v1381 = vld [vmem:[%s372 + $0x6c] sm:$0xe]
        %v1382 = vld [vmem:[%s372 + $0x78] sm:$0xe]
        %v1383 = vld [vmem:[%s372 + $0x84] sm:$0xe]
        %v1384 = vld [vmem:[%s372 + $0x90] sm:$0xe]
        %v1385 = vld [vmem:[%s372 + $0x9c] sm:$0xe]
        %v1386 = vld [vmem:[%s372 + $0xa8] sm:$0xe]
        %v1387 = vld [vmem:[%s372 + $0xb4] sm:$0xe]
        %vm1420 = vcmask 1042432
        %vm1421 = vcmask 1046532
        %vm1422 = vmor %vm1420, %vm1421
        %v1423 = vrot.slane %v1372, 5
        %v1424 = vrot.slane %v1423, 4
        %v1425 = vrot.slane %v381, 5
        %v1426 = vsel %vm1422, %v1424, %v1425
        %v1427 = vrot.slane %v1425, 4
        %v1428 = vrot.slane %v413, 5
        %v1429 = vsel %vm1422, %v1427, %v1428
        %v1430 = vrot.slane %v1373, 5
        %v1431 = vrot.slane %v1430, 4
        %v1432 = vrot.slane %v383, 5
        %v1433 = vsel %vm1422, %v1431, %v1432
        %v1434 = vrot.slane %v1432, 4
        %v1435 = vrot.slane %v414, 5
        %v1436 = vsel %vm1422, %v1434, %v1435
        %v1437 = vrot.slane %v1374, 5
        %v1438 = vrot.slane %v1437, 4
        %v1439 = vrot.slane %v385, 5
        %v1440 = vsel %vm1422, %v1438, %v1439
        %v1441 = vrot.slane %v1439, 4
        %v1442 = vrot.slane %v415, 5
        %v1443 = vsel %vm1422, %v1441, %v1442
        %v1444 = vrot.slane %v1375, 5
        %v1445 = vrot.slane %v1444, 4
        %v1446 = vrot.slane %v387, 5
        %v1447 = vsel %vm1422, %v1445, %v1446
        %v1448 = vrot.slane %v1446, 4
        %v1449 = vrot.slane %v416, 5
        %v1450 = vsel %vm1422, %v1448, %v1449
        %v1451 = vrot.slane %v1376, 5
        %v1452 = vrot.slane %v1451, 4
        %v1453 = vrot.slane %v389, 5
        %v1454 = vsel %vm1422, %v1452, %v1453
        %v1455 = vrot.slane %v1453, 4
        %v1456 = vrot.slane %v417, 5
        %v1457 = vsel %vm1422, %v1455, %v1456
        %v1458 = vrot.slane %v1377, 5
        %v1459 = vrot.slane %v1458, 4
        %v1460 = vrot.slane %v391, 5
        %v1461 = vsel %vm1422, %v1459, %v1460
        %v1462 = vrot.slane %v1460, 4
        %v1463 = vrot.slane %v418, 5
        %v1464 = vsel %vm1422, %v1462, %v1463
        %v1465 = vrot.slane %v1378, 5
        %v1466 = vrot.slane %v1465, 4
        %v1467 = vrot.slane %v393, 5
        %v1468 = vsel %vm1422, %v1466, %v1467
        %v1469 = vrot.slane %v1467, 4
        %v1470 = vrot.slane %v419, 5
        %v1471 = vsel %vm1422, %v1469, %v1470
        %v1472 = vrot.slane %v1379, 5
        %v1473 = vrot.slane %v1472, 4
        %v1474 = vrot.slane %v395, 5
        %v1475 = vsel %vm1422, %v1473, %v1474
        %v1476 = vrot.slane %v1474, 4
        %v1477 = vrot.slane %v420, 5
        %v1478 = vsel %vm1422, %v1476, %v1477
        %v1479 = vrot.slane %v1380, 5
        %v1480 = vrot.slane %v1479, 4
        %v1481 = vrot.slane %v397, 5
        %v1482 = vsel %vm1422, %v1480, %v1481
        %v1483 = vrot.slane %v1481, 4
        %v1484 = vrot.slane %v421, 5
        %v1485 = vsel %vm1422, %v1483, %v1484
        %v1486 = vrot.slane %v1381, 5
        %v1487 = vrot.slane %v1486, 4
        %v1488 = vrot.slane %v399, 5
        %v1489 = vsel %vm1422, %v1487, %v1488
        %v1490 = vrot.slane %v1488, 4
        %v1491 = vrot.slane %v422, 5
        %v1492 = vsel %vm1422, %v1490, %v1491
        %v1493 = vrot.slane %v1382, 5
        %v1494 = vrot.slane %v1493, 4
        %v1495 = vrot.slane %v401, 5
        %v1496 = vsel %vm1422, %v1494, %v1495
        %v1497 = vrot.slane %v1495, 4
        %v1498 = vrot.slane %v423, 5
        %v1499 = vsel %vm1422, %v1497, %v1498
        %v1500 = vrot.slane %v1383, 5
        %v1501 = vrot.slane %v1500, 4
        %v1502 = vrot.slane %v403, 5
        %v1503 = vsel %vm1422, %v1501, %v1502
        %v1504 = vrot.slane %v1502, 4
        %v1505 = vrot.slane %v424, 5
        %v1506 = vsel %vm1422, %v1504, %v1505
        %v1507 = vrot.slane %v1384, 5
        %v1508 = vrot.slane %v1507, 4
        %v1509 = vrot.slane %v405, 5
        %v1510 = vsel %vm1422, %v1508, %v1509
        %v1511 = vrot.slane %v1509, 4
        %v1512 = vrot.slane %v425, 5
        %v1513 = vsel %vm1422, %v1511, %v1512
        %v1514 = vrot.slane %v1385, 5
        %v1515 = vrot.slane %v1514, 4
        %v1516 = vrot.slane %v407, 5
        %v1517 = vsel %vm1422, %v1515, %v1516
        %v1518 = vrot.slane %v1516, 4
        %v1519 = vrot.slane %v426, 5
        %v1520 = vsel %vm1422, %v1518, %v1519
        %v1521 = vrot.slane %v1386, 5
        %v1522 = vrot.slane %v1521, 4
        %v1523 = vrot.slane %v409, 5
        %v1524 = vsel %vm1422, %v1522, %v1523
        %v1525 = vrot.slane %v1523, 4
        %v1526 = vrot.slane %v427, 5
        %v1527 = vsel %vm1422, %v1525, %v1526
        %v1528 = vrot.slane %v1387, 5
        %v1529 = vrot.slane %v1528, 4
        %v1530 = vrot.slane %v411, 5
        %v1531 = vsel %vm1422, %v1529, %v1530
        %v1532 = vrot.slane %v1530, 4
        %v1533 = vrot.slane %v428, 5
        %v1534 = vsel %vm1422, %v1532, %v1533
        %s1535 = scalar_lea.vmem %s1, 4
        %v1536 = vld [vmem:[%s1535] sm:$0x3]
        %v1537 = vunpack.c.l.b16 %v1426
        %v1538 = vunpack.c.l.b16 %v1429
        %v1539 = vunpack.c.l.b16 %v1433
        %v1540 = vunpack.c.l.b16 %v1436
        %v1541 = vunpack.c.l.b16 %v1440
        %v1542 = vunpack.c.l.b16 %v1443
        %v1543 = vunpack.c.l.b16 %v1447
        %v1544 = vunpack.c.l.b16 %v1450
        %v1545 = vunpack.c.l.b16 %v1454
        %v1546 = vunpack.c.l.b16 %v1457
        %v1547 = vunpack.c.l.b16 %v1461
        %v1548 = vunpack.c.l.b16 %v1464
        %v1549 = vunpack.c.l.b16 %v1468
        %v1550 = vunpack.c.l.b16 %v1471
        %v1551 = vunpack.c.l.b16 %v1475
        %v1552 = vunpack.c.l.b16 %v1478
        %v1553 = vunpack.c.l.b16 %v1482
        %v1554 = vunpack.c.l.b16 %v1485
        %v1555 = vunpack.c.l.b16 %v1489
        %v1556 = vunpack.c.l.b16 %v1492
        %v1557 = vunpack.c.l.b16 %v1496
        %v1558 = vunpack.c.l.b16 %v1499
        %v1559 = vunpack.c.l.b16 %v1503
        %v1560 = vunpack.c.l.b16 %v1506
        %v1561 = vunpack.c.l.b16 %v1510
        %v1562 = vunpack.c.l.b16 %v1513
        %v1563 = vunpack.c.l.b16 %v1517
        %v1564 = vunpack.c.l.b16 %v1520
        %v1565 = vunpack.c.l.b16 %v1524
        %v1566 = vunpack.c.l.b16 %v1527
        %v1567 = vunpack.c.l.b16 %v1531
        %v1568 = vunpack.c.l.b16 %v1534
        %v1569 = vpack.c.b16 %v1538, %v1537
        %v1570 = vpack.c.b16 %v1540, %v1539
        %v1571 = vpack.c.b16 %v1542, %v1541
        %v1572 = vpack.c.b16 %v1544, %v1543
        %v1573 = vpack.c.b16 %v1546, %v1545
        %v1574 = vpack.c.b16 %v1548, %v1547
        %v1575 = vpack.c.b16 %v1550, %v1549
        %v1576 = vpack.c.b16 %v1552, %v1551
        %v1577 = vpack.c.b16 %v1554, %v1553
        %v1578 = vpack.c.b16 %v1556, %v1555
        %v1579 = vpack.c.b16 %v1558, %v1557
        %v1580 = vpack.c.b16 %v1560, %v1559
        %v1581 = vpack.c.b16 %v1562, %v1561
        %v1582 = vpack.c.b16 %v1564, %v1563
        %v1583 = vpack.c.b16 %v1566, %v1565
        %v1584 = vpack.c.b16 %v1568, %v1567
        %v1586 = vsel %vm866, %v1569, 0
        %v1589 = vsel %vm866, %v1570, 0
        %v1592 = vsel %vm866, %v1571, 0
        %v1595 = vsel %vm866, %v1572, 0
        %v1598 = vsel %vm866, %v1573, 0
        %v1601 = vsel %vm866, %v1574, 0
        %v1604 = vsel %vm866, %v1575, 0
        %v1607 = vsel %vm866, %v1576, 0
        %v1610 = vsel %vm866, %v1577, 0
        %v1613 = vsel %vm866, %v1578, 0
        %v1616 = vsel %vm866, %v1579, 0
        %v1619 = vsel %vm866, %v1580, 0
        %v1622 = vsel %vm866, %v1581, 0
        %v1625 = vsel %vm866, %v1582, 0
        %v1628 = vsel %vm866, %v1583, 0
        %v1631 = vsel %vm866, %v1584, 0
        %v1634 = vsel %vm915, %v1536, 0
        %1636 = vmatprep.subr.bf16.mxu0 0
        %1637 = vmatpush1.bf16.msra.mxu0 %v1634
        %1638 = vmatprep.subr.bf16.mxu0 0
        %1639 = vmatpush1.bf16.msra.mxu0 0
        %1640 = vmatprep.subr.bf16.mxu0 0
        %1641 = vmatpush1.bf16.msra.mxu0 0
        %1642 = vmatprep.subr.bf16.mxu0 0
        %1643 = vmatpush1.bf16.msra.mxu0 0
        %1644 = vmatprep.subr.bf16.mxu0 0
        %1645 = vmatpush1.bf16.msra.mxu0 0
        %1646 = vmatprep.subr.bf16.mxu0 0
        %1647 = vmatpush1.bf16.msra.mxu0 0
        %1648 = vmatprep.subr.bf16.mxu0 0
        %1649 = vmatpush1.bf16.msra.mxu0 0
        %1650 = vmatprep.subr.bf16.mxu0 0
        %1651 = vmatpush1.bf16.msra.mxu0 0
        %1652 = vmatprep.subr.bf16.mxu0 0
        %1653 = vmatpush1.bf16.msra.mxu0 0
        %1654 = vmatprep.subr.bf16.mxu0 0
        %1655 = vmatpush1.bf16.msra.mxu0 0
        %1656 = vmatprep.subr.bf16.mxu0 0
        %1657 = vmatpush1.bf16.msra.mxu0 0
        %1658 = vmatprep.subr.bf16.mxu0 0
        %1659 = vmatpush1.bf16.msra.mxu0 0
        %1660 = vmatprep.subr.bf16.mxu0 0
        %1661 = vmatpush1.bf16.msra.mxu0 0
        %1662 = vmatprep.subr.bf16.mxu0 0
        %1663 = vmatpush1.bf16.msra.mxu0 0
        %1664 = vmatprep.subr.bf16.mxu0 0
        %1665 = vmatpush1.bf16.msra.mxu0 0
        %1666 = vmatprep.subr.bf16.mxu0 0
        %1667 = vmatpush1.bf16.msra.mxu0 0
        %1668 = vmatprep.mubr.bf16.mxu0 0
        %1669 = vmatmul.mubr.bf16.gmra.mrb[0].mxu0 %v1586
        %v1670 = vpop.f32.mrb[0].mxu0
        %v1671 = vadd.f32 0.0, %v1670
        %v1672 = vpop.f32.mrb[0].mxu0
        %v1673 = vpop.f32.mrb[0].mxu0
        %v1674 = vadd.f32 0.0, %v1673
        %v1675 = vpop.f32.mrb[0].mxu0
        %1676 = vmatprep.mubr.bf16.mxu0 0
        %1677 = vmatmul.mubr.bf16.gmra.mrb[0].mxu0 %v1589
        %v1678 = vpop.f32.mrb[0].mxu0
        %v1679 = vadd.f32 0.0, %v1678
        %v1680 = vpop.f32.mrb[0].mxu0
        %v1681 = vpop.f32.mrb[0].mxu0
        %v1682 = vadd.f32 0.0, %v1681
        %v1683 = vpop.f32.mrb[0].mxu0
        %1684 = vmatprep.mubr.bf16.mxu0 0
        %1685 = vmatmul.mubr.bf16.gmra.mrb[0].mxu0 %v1592
        %v1686 = vpop.f32.mrb[0].mxu0
        %v1687 = vadd.f32 0.0, %v1686
        %v1688 = vpop.f32.mrb[0].mxu0
        %v1689 = vpop.f32.mrb[0].mxu0
        %v1690 = vadd.f32 0.0, %v1689
        %v1691 = vpop.f32.mrb[0].mxu0
        %1692 = vmatprep.mubr.bf16.mxu0 0
        %1693 = vmatmul.mubr.bf16.gmra.mrb[0].mxu0 %v1595
        %v1694 = vpop.f32.mrb[0].mxu0
        %v1695 = vadd.f32 0.0, %v1694
        %v1696 = vpop.f32.mrb[0].mxu0
        %v1697 = vpop.f32.mrb[0].mxu0
        %v1698 = vadd.f32 0.0, %v1697
        %v1699 = vpop.f32.mrb[0].mxu0
        %1700 = vmatprep.mubr.bf16.mxu0 0
        %1701 = vmatmul.mubr.bf16.gmra.mrb[0].mxu0 %v1598
        %v1702 = vpop.f32.mrb[0].mxu0
        %v1703 = vadd.f32 0.0, %v1702
        %v1704 = vpop.f32.mrb[0].mxu0
        %v1705 = vpop.f32.mrb[0].mxu0
        %v1706 = vadd.f32 0.0, %v1705
        %v1707 = vpop.f32.mrb[0].mxu0
        %1708 = vmatprep.mubr.bf16.mxu0 0
        %1709 = vmatmul.mubr.bf16.gmra.mrb[0].mxu0 %v1601
        %v1710 = vpop.f32.mrb[0].mxu0
        %v1711 = vadd.f32 0.0, %v1710
        %v1712 = vpop.f32.mrb[0].mxu0
        %v1713 = vpop.f32.mrb[0].mxu0
        %v1714 = vadd.f32 0.0, %v1713
        %v1715 = vpop.f32.mrb[0].mxu0
        %1716 = vmatprep.mubr.bf16.mxu0 0
        %1717 = vmatmul.mubr.bf16.gmra.mrb[0].mxu0 %v1604
        %v1718 = vpop.f32.mrb[0].mxu0
        %v1719 = vadd.f32 0.0, %v1718
        %v1720 = vpop.f32.mrb[0].mxu0
        %v1721 = vpop.f32.mrb[0].mxu0
        %v1722 = vadd.f32 0.0, %v1721
        %v1723 = vpop.f32.mrb[0].mxu0
        %1724 = vmatprep.mubr.bf16.mxu0 0
        %1725 = vmatmul.mubr.bf16.gmra.mrb[0].mxu0 %v1607
        %v1726 = vpop.f32.mrb[0].mxu0
        %v1727 = vadd.f32 0.0, %v1726
        %v1728 = vpop.f32.mrb[0].mxu0
        %v1729 = vpop.f32.mrb[0].mxu0
        %v1730 = vadd.f32 0.0, %v1729
        %v1731 = vpop.f32.mrb[0].mxu0
        %1732 = vmatprep.mubr.bf16.mxu0 0
        %1733 = vmatmul.mubr.bf16.gmra.mrb[0].mxu0 %v1610
        %v1734 = vpop.f32.mrb[0].mxu0
        %v1735 = vadd.f32 0.0, %v1734
        %v1736 = vpop.f32.mrb[0].mxu0
        %v1737 = vpop.f32.mrb[0].mxu0
        %v1738 = vadd.f32 0.0, %v1737
        %v1739 = vpop.f32.mrb[0].mxu0
        %1740 = vmatprep.mubr.bf16.mxu0 0
        %1741 = vmatmul.mubr.bf16.gmra.mrb[0].mxu0 %v1613
        %v1742 = vpop.f32.mrb[0].mxu0
        %v1743 = vadd.f32 0.0, %v1742
        %v1744 = vpop.f32.mrb[0].mxu0
        %v1745 = vpop.f32.mrb[0].mxu0
        %v1746 = vadd.f32 0.0, %v1745
        %v1747 = vpop.f32.mrb[0].mxu0
        %1748 = vmatprep.mubr.bf16.mxu0 0
        %1749 = vmatmul.mubr.bf16.gmra.mrb[0].mxu0 %v1616
        %v1750 = vpop.f32.mrb[0].mxu0
        %v1751 = vadd.f32 0.0, %v1750
        %v1752 = vpop.f32.mrb[0].mxu0
        %v1753 = vpop.f32.mrb[0].mxu0
        %v1754 = vadd.f32 0.0, %v1753
        %v1755 = vpop.f32.mrb[0].mxu0
        %1756 = vmatprep.mubr.bf16.mxu0 0
        %1757 = vmatmul.mubr.bf16.gmra.mrb[0].mxu0 %v1619
        %v1758 = vpop.f32.mrb[0].mxu0
        %v1759 = vadd.f32 0.0, %v1758
        %v1760 = vpop.f32.mrb[0].mxu0
        %v1761 = vpop.f32.mrb[0].mxu0
        %v1762 = vadd.f32 0.0, %v1761
        %v1763 = vpop.f32.mrb[0].mxu0
        %1764 = vmatprep.mubr.bf16.mxu0 0
        %1765 = vmatmul.mubr.bf16.gmra.mrb[0].mxu0 %v1622
        %v1766 = vpop.f32.mrb[0].mxu0
        %v1767 = vadd.f32 0.0, %v1766
        %v1768 = vpop.f32.mrb[0].mxu0
        %v1769 = vpop.f32.mrb[0].mxu0
        %v1770 = vadd.f32 0.0, %v1769
        %v1771 = vpop.f32.mrb[0].mxu0
        %1772 = vmatprep.mubr.bf16.mxu0 0
        %1773 = vmatmul.mubr.bf16.gmra.mrb[0].mxu0 %v1625
        %v1774 = vpop.f32.mrb[0].mxu0
        %v1775 = vadd.f32 0.0, %v1774
        %v1776 = vpop.f32.mrb[0].mxu0
        %v1777 = vpop.f32.mrb[0].mxu0
        %v1778 = vadd.f32 0.0, %v1777
        %v1779 = vpop.f32.mrb[0].mxu0
        %1780 = vmatprep.mubr.bf16.mxu0 0
        %1781 = vmatmul.mubr.bf16.gmra.mrb[0].mxu0 %v1628
        %v1782 = vpop.f32.mrb[0].mxu0
        %v1783 = vadd.f32 0.0, %v1782
        %v1784 = vpop.f32.mrb[0].mxu0
        %v1785 = vpop.f32.mrb[0].mxu0
        %v1786 = vadd.f32 0.0, %v1785
        %v1787 = vpop.f32.mrb[0].mxu0
        %1788 = vmatprep.mubr.bf16.mxu0 0
        %1789 = vmatmul.mubr.bf16.gmra.mrb[0].mxu0 %v1631
        %v1790 = vpop.f32.mrb[0].mxu0
        %v1791 = vadd.f32 0.0, %v1790
        %v1792 = vpop.f32.mrb[0].mxu0
        %v1793 = vpop.f32.mrb[0].mxu0
        %v1794 = vadd.f32 0.0, %v1793
        %v1795 = vpop.f32.mrb[0].mxu0
        %1796 = vdwg.mxu0
        %v1797 = vadd.f32 %v1246, %v1671
        %v1798 = vadd.f32 %v1249, %v1674
        %v1799 = vadd.f32 %v1254, %v1679
        %v1800 = vadd.f32 %v1257, %v1682
        %v1801 = vadd.f32 %v1262, %v1687
        %v1802 = vadd.f32 %v1265, %v1690
        %v1803 = vadd.f32 %v1270, %v1695
        %v1804 = vadd.f32 %v1273, %v1698
        %v1805 = vadd.f32 %v1278, %v1703
        %v1806 = vadd.f32 %v1281, %v1706
        %v1807 = vadd.f32 %v1286, %v1711
        %v1808 = vadd.f32 %v1289, %v1714
        %v1809 = vadd.f32 %v1294, %v1719
        %v1810 = vadd.f32 %v1297, %v1722
        %v1811 = vadd.f32 %v1302, %v1727
        %v1812 = vadd.f32 %v1305, %v1730
        %v1813 = vadd.f32 %v1310, %v1735
        %v1814 = vadd.f32 %v1313, %v1738
        %v1815 = vadd.f32 %v1318, %v1743
        %v1816 = vadd.f32 %v1321, %v1746
        %v1817 = vadd.f32 %v1326, %v1751
        %v1818 = vadd.f32 %v1329, %v1754
        %v1819 = vadd.f32 %v1334, %v1759
        %v1820 = vadd.f32 %v1337, %v1762
        %v1821 = vadd.f32 %v1342, %v1767
        %v1822 = vadd.f32 %v1345, %v1770
        %v1823 = vadd.f32 %v1350, %v1775
        %v1824 = vadd.f32 %v1353, %v1778
        %v1825 = vadd.f32 %v1358, %v1783
        %v1826 = vadd.f32 %v1361, %v1786
        %v1827 = vadd.f32 %v1366, %v1791
        %v1828 = vadd.f32 %v1369, %v1794
        %s1829 = scalar_lea.vmem %s372, 12
        %v1830 = vld [vmem:[%s1829] sm:$0xf]
        %v1831 = vld [vmem:[%s1829 + $0x4] sm:$0xf]
        %v1832 = vld [vmem:[%s1829 + $0xc] sm:$0xf]
        %v1833 = vld [vmem:[%s1829 + $0x10] sm:$0xf]
        %v1834 = vld [vmem:[%s1829 + $0x18] sm:$0xf]
        %v1835 = vld [vmem:[%s1829 + $0x1c] sm:$0xf]
        %v1836 = vld [vmem:[%s1829 + $0x24] sm:$0xf]
        %v1837 = vld [vmem:[%s1829 + $0x28] sm:$0xf]
        %v1838 = vld [vmem:[%s1829 + $0x30] sm:$0xf]
        %v1839 = vld [vmem:[%s1829 + $0x34] sm:$0xf]
        %v1840 = vld [vmem:[%s1829 + $0x3c] sm:$0xf]
        %v1841 = vld [vmem:[%s1829 + $0x40] sm:$0xf]
        %v1842 = vld [vmem:[%s1829 + $0x48] sm:$0xf]
        %v1843 = vld [vmem:[%s1829 + $0x4c] sm:$0xf]
        %v1844 = vld [vmem:[%s1829 + $0x54] sm:$0xf]
        %v1845 = vld [vmem:[%s1829 + $0x58] sm:$0xf]
        %v1846 = vld [vmem:[%s1829 + $0x60] sm:$0xf]
        %v1847 = vld [vmem:[%s1829 + $0x64] sm:$0xf]
        %v1848 = vld [vmem:[%s1829 + $0x6c] sm:$0xf]
        %v1849 = vld [vmem:[%s1829 + $0x70] sm:$0xf]
        %v1850 = vld [vmem:[%s1829 + $0x78] sm:$0xf]
        %v1851 = vld [vmem:[%s1829 + $0x7c] sm:$0xf]
        %v1852 = vld [vmem:[%s1829 + $0x84] sm:$0xf]
        %v1853 = vld [vmem:[%s1829 + $0x88] sm:$0xf]
        %v1854 = vld [vmem:[%s1829 + $0x90] sm:$0xf]
        %v1855 = vld [vmem:[%s1829 + $0x94] sm:$0xf]
        %v1856 = vld [vmem:[%s1829 + $0x9c] sm:$0xf]
        %v1857 = vld [vmem:[%s1829 + $0xa0] sm:$0xf]
        %v1858 = vld [vmem:[%s1829 + $0xa8] sm:$0xf]
        %v1859 = vld [vmem:[%s1829 + $0xac] sm:$0xf]
        %v1860 = vld [vmem:[%s1829 + $0xb4] sm:$0xf]
        %v1861 = vld [vmem:[%s1829 + $0xb8] sm:$0xf]
        %s1862 = scalar_lea.vmem %s1, 6
        %v1863 = vld [vmem:[%s1862] sm:$0x3]
        %v1896 = vunpack.c.l.b16 %v1830
        %v1897 = vunpack.c.l.b16 %v1831
        %v1898 = vunpack.c.l.b16 %v1832
        %v1899 = vunpack.c.l.b16 %v1833
        %v1900 = vunpack.c.l.b16 %v1834
        %v1901 = vunpack.c.l.b16 %v1835
        %v1902 = vunpack.c.l.b16 %v1836
        %v1903 = vunpack.c.l.b16 %v1837
        %v1904 = vunpack.c.l.b16 %v1838
        %v1905 = vunpack.c.l.b16 %v1839
        %v1906 = vunpack.c.l.b16 %v1840
        %v1907 = vunpack.c.l.b16 %v1841
        %v1908 = vunpack.c.l.b16 %v1842
        %v1909 = vunpack.c.l.b16 %v1843
        %v1910 = vunpack.c.l.b16 %v1844
        %v1911 = vunpack.c.l.b16 %v1845
        %v1912 = vunpack.c.l.b16 %v1846
        %v1913 = vunpack.c.l.b16 %v1847
        %v1914 = vunpack.c.l.b16 %v1848
        %v1915 = vunpack.c.l.b16 %v1849
        %v1916 = vunpack.c.l.b16 %v1850
        %v1917 = vunpack.c.l.b16 %v1851
        %v1918 = vunpack.c.l.b16 %v1852
        %v1919 = vunpack.c.l.b16 %v1853
        %v1920 = vunpack.c.l.b16 %v1854
        %v1921 = vunpack.c.l.b16 %v1855
        %v1922 = vunpack.c.l.b16 %v1856
        %v1923 = vunpack.c.l.b16 %v1857
        %v1924 = vunpack.c.l.b16 %v1858
        %v1925 = vunpack.c.l.b16 %v1859
        %v1926 = vunpack.c.l.b16 %v1860
        %v1927 = vunpack.c.l.b16 %v1861
        %v1928 = vpack.c.b16 %v1897, %v1896
        %v1929 = vpack.c.b16 %v1899, %v1898
        %v1930 = vpack.c.b16 %v1901, %v1900
        %v1931 = vpack.c.b16 %v1903, %v1902
        %v1932 = vpack.c.b16 %v1905, %v1904
        %v1933 = vpack.c.b16 %v1907, %v1906
        %v1934 = vpack.c.b16 %v1909, %v1908
        %v1935 = vpack.c.b16 %v1911, %v1910
        %v1936 = vpack.c.b16 %v1913, %v1912
        %v1937 = vpack.c.b16 %v1915, %v1914
        %v1938 = vpack.c.b16 %v1917, %v1916
        %v1939 = vpack.c.b16 %v1919, %v1918
        %v1940 = vpack.c.b16 %v1921, %v1920
        %v1941 = vpack.c.b16 %v1923, %v1922
        %v1942 = vpack.c.b16 %v1925, %v1924
        %v1943 = vpack.c.b16 %v1927, %v1926
        %v1945 = vsel %vm866, %v1928, 0
        %v1948 = vsel %vm866, %v1929, 0
        %v1951 = vsel %vm866, %v1930, 0
        %v1954 = vsel %vm866, %v1931, 0
        %v1957 = vsel %vm866, %v1932, 0
        %v1960 = vsel %vm866, %v1933, 0
        %v1963 = vsel %vm866, %v1934, 0
        %v1966 = vsel %vm866, %v1935, 0
        %v1969 = vsel %vm866, %v1936, 0
        %v1972 = vsel %vm866, %v1937, 0
        %v1975 = vsel %vm866, %v1938, 0
        %v1978 = vsel %vm866, %v1939, 0
        %v1981 = vsel %vm866, %v1940, 0
        %v1984 = vsel %vm866, %v1941, 0
        %v1987 = vsel %vm866, %v1942, 0
        %v1990 = vsel %vm866, %v1943, 0
        %v1993 = vsel %vm915, %v1863, 0
        %1995 = vmatprep.subr.bf16.mxu0 0
        %1996 = vmatpush1.bf16.msra.mxu0 %v1993
        %1997 = vmatprep.subr.bf16.mxu0 0
        %1998 = vmatpush1.bf16.msra.mxu0 0
        %1999 = vmatprep.subr.bf16.mxu0 0
        %2000 = vmatpush1.bf16.msra.mxu0 0
        %2001 = vmatprep.subr.bf16.mxu0 0
        %2002 = vmatpush1.bf16.msra.mxu0 0
        %2003 = vmatprep.subr.bf16.mxu0 0
        %2004 = vmatpush1.bf16.msra.mxu0 0
        %2005 = vmatprep.subr.bf16.mxu0 0
        %2006 = vmatpush1.bf16.msra.mxu0 0
        %2007 = vmatprep.subr.bf16.mxu0 0
        %2008 = vmatpush1.bf16.msra.mxu0 0
        %2009 = vmatprep.subr.bf16.mxu0 0
        %2010 = vmatpush1.bf16.msra.mxu0 0
        %2011 = vmatprep.subr.bf16.mxu0 0
        %2012 = vmatpush1.bf16.msra.mxu0 0
        %2013 = vmatprep.subr.bf16.mxu0 0
        %2014 = vmatpush1.bf16.msra.mxu0 0
        %2015 = vmatprep.subr.bf16.mxu0 0
        %2016 = vmatpush1.bf16.msra.mxu0 0
        %2017 = vmatprep.subr.bf16.mxu0 0
        %2018 = vmatpush1.bf16.msra.mxu0 0
        %2019 = vmatprep.subr.bf16.mxu0 0
        %2020 = vmatpush1.bf16.msra.mxu0 0
        %2021 = vmatprep.subr.bf16.mxu0 0
        %2022 = vmatpush1.bf16.msra.mxu0 0
        %2023 = vmatprep.subr.bf16.mxu0 0
        %2024 = vmatpush1.bf16.msra.mxu0 0
        %2025 = vmatprep.subr.bf16.mxu0 0
        %2026 = vmatpush1.bf16.msra.mxu0 0
        %2027 = vmatprep.mubr.bf16.mxu0 0
        %2028 = vmatmul.mubr.bf16.gmra.mrb[0].mxu0 %v1945
        %v2029 = vpop.f32.mrb[0].mxu0
        %v2030 = vadd.f32 0.0, %v2029
        %v2031 = vpop.f32.mrb[0].mxu0
        %v2032 = vpop.f32.mrb[0].mxu0
        %v2033 = vadd.f32 0.0, %v2032
        %v2034 = vpop.f32.mrb[0].mxu0
        %2035 = vmatprep.mubr.bf16.mxu0 0
        %2036 = vmatmul.mubr.bf16.gmra.mrb[0].mxu0 %v1948
        %v2037 = vpop.f32.mrb[0].mxu0
        %v2038 = vadd.f32 0.0, %v2037
        %v2039 = vpop.f32.mrb[0].mxu0
        %v2040 = vpop.f32.mrb[0].mxu0
        %v2041 = vadd.f32 0.0, %v2040
        %v2042 = vpop.f32.mrb[0].mxu0
        %2043 = vmatprep.mubr.bf16.mxu0 0
        %2044 = vmatmul.mubr.bf16.gmra.mrb[0].mxu0 %v1951
        %v2045 = vpop.f32.mrb[0].mxu0
        %v2046 = vadd.f32 0.0, %v2045
        %v2047 = vpop.f32.mrb[0].mxu0
        %v2048 = vpop.f32.mrb[0].mxu0
        %v2049 = vadd.f32 0.0, %v2048
        %v2050 = vpop.f32.mrb[0].mxu0
        %2051 = vmatprep.mubr.bf16.mxu0 0
        %2052 = vmatmul.mubr.bf16.gmra.mrb[0].mxu0 %v1954
        %v2053 = vpop.f32.mrb[0].mxu0
        %v2054 = vadd.f32 0.0, %v2053
        %v2055 = vpop.f32.mrb[0].mxu0
        %v2056 = vpop.f32.mrb[0].mxu0
        %v2057 = vadd.f32 0.0, %v2056
        %v2058 = vpop.f32.mrb[0].mxu0
        %2059 = vmatprep.mubr.bf16.mxu0 0
        %2060 = vmatmul.mubr.bf16.gmra.mrb[0].mxu0 %v1957
        %v2061 = vpop.f32.mrb[0].mxu0
        %v2062 = vadd.f32 0.0, %v2061
        %v2063 = vpop.f32.mrb[0].mxu0
        %v2064 = vpop.f32.mrb[0].mxu0
        %v2065 = vadd.f32 0.0, %v2064
        %v2066 = vpop.f32.mrb[0].mxu0
        %2067 = vmatprep.mubr.bf16.mxu0 0
        %2068 = vmatmul.mubr.bf16.gmra.mrb[0].mxu0 %v1960
        %v2069 = vpop.f32.mrb[0].mxu0
        %v2070 = vadd.f32 0.0, %v2069
        %v2071 = vpop.f32.mrb[0].mxu0
        %v2072 = vpop.f32.mrb[0].mxu0
        %v2073 = vadd.f32 0.0, %v2072
        %v2074 = vpop.f32.mrb[0].mxu0
        %2075 = vmatprep.mubr.bf16.mxu0 0
        %2076 = vmatmul.mubr.bf16.gmra.mrb[0].mxu0 %v1963
        %v2077 = vpop.f32.mrb[0].mxu0
        %v2078 = vadd.f32 0.0, %v2077
        %v2079 = vpop.f32.mrb[0].mxu0
        %v2080 = vpop.f32.mrb[0].mxu0
        %v2081 = vadd.f32 0.0, %v2080
        %v2082 = vpop.f32.mrb[0].mxu0
        %2083 = vmatprep.mubr.bf16.mxu0 0
        %2084 = vmatmul.mubr.bf16.gmra.mrb[0].mxu0 %v1966
        %v2085 = vpop.f32.mrb[0].mxu0
        %v2086 = vadd.f32 0.0, %v2085
        %v2087 = vpop.f32.mrb[0].mxu0
        %v2088 = vpop.f32.mrb[0].mxu0
        %v2089 = vadd.f32 0.0, %v2088
        %v2090 = vpop.f32.mrb[0].mxu0
        %2091 = vmatprep.mubr.bf16.mxu0 0
        %2092 = vmatmul.mubr.bf16.gmra.mrb[0].mxu0 %v1969
        %v2093 = vpop.f32.mrb[0].mxu0
        %v2094 = vadd.f32 0.0, %v2093
        %v2095 = vpop.f32.mrb[0].mxu0
        %v2096 = vpop.f32.mrb[0].mxu0
        %v2097 = vadd.f32 0.0, %v2096
        %v2098 = vpop.f32.mrb[0].mxu0
        %2099 = vmatprep.mubr.bf16.mxu0 0
        %2100 = vmatmul.mubr.bf16.gmra.mrb[0].mxu0 %v1972
        %v2101 = vpop.f32.mrb[0].mxu0
        %v2102 = vadd.f32 0.0, %v2101
        %v2103 = vpop.f32.mrb[0].mxu0
        %v2104 = vpop.f32.mrb[0].mxu0
        %v2105 = vadd.f32 0.0, %v2104
        %v2106 = vpop.f32.mrb[0].mxu0
        %2107 = vmatprep.mubr.bf16.mxu0 0
        %2108 = vmatmul.mubr.bf16.gmra.mrb[0].mxu0 %v1975
        %v2109 = vpop.f32.mrb[0].mxu0
        %v2110 = vadd.f32 0.0, %v2109
        %v2111 = vpop.f32.mrb[0].mxu0
        %v2112 = vpop.f32.mrb[0].mxu0
        %v2113 = vadd.f32 0.0, %v2112
        %v2114 = vpop.f32.mrb[0].mxu0
        %2115 = vmatprep.mubr.bf16.mxu0 0
        %2116 = vmatmul.mubr.bf16.gmra.mrb[0].mxu0 %v1978
        %v2117 = vpop.f32.mrb[0].mxu0
        %v2118 = vadd.f32 0.0, %v2117
        %v2119 = vpop.f32.mrb[0].mxu0
        %v2120 = vpop.f32.mrb[0].mxu0
        %v2121 = vadd.f32 0.0, %v2120
        %v2122 = vpop.f32.mrb[0].mxu0
        %2123 = vmatprep.mubr.bf16.mxu0 0
        %2124 = vmatmul.mubr.bf16.gmra.mrb[0].mxu0 %v1981
        %v2125 = vpop.f32.mrb[0].mxu0
        %v2126 = vadd.f32 0.0, %v2125
        %v2127 = vpop.f32.mrb[0].mxu0
        %v2128 = vpop.f32.mrb[0].mxu0
        %v2129 = vadd.f32 0.0, %v2128
        %v2130 = vpop.f32.mrb[0].mxu0
        %2131 = vmatprep.mubr.bf16.mxu0 0
        %2132 = vmatmul.mubr.bf16.gmra.mrb[0].mxu0 %v1984
        %v2133 = vpop.f32.mrb[0].mxu0
        %v2134 = vadd.f32 0.0, %v2133
        %v2135 = vpop.f32.mrb[0].mxu0
        %v2136 = vpop.f32.mrb[0].mxu0
        %v2137 = vadd.f32 0.0, %v2136
        %v2138 = vpop.f32.mrb[0].mxu0
        %2139 = vmatprep.mubr.bf16.mxu0 0
        %2140 = vmatmul.mubr.bf16.gmra.mrb[0].mxu0 %v1987
        %v2141 = vpop.f32.mrb[0].mxu0
        %v2142 = vadd.f32 0.0, %v2141
        %v2143 = vpop.f32.mrb[0].mxu0
        %v2144 = vpop.f32.mrb[0].mxu0
        %v2145 = vadd.f32 0.0, %v2144
        %v2146 = vpop.f32.mrb[0].mxu0
        %2147 = vmatprep.mubr.bf16.mxu0 0
        %2148 = vmatmul.mubr.bf16.gmra.mrb[0].mxu0 %v1990
        %v2149 = vpop.f32.mrb[0].mxu0
        %v2150 = vadd.f32 0.0, %v2149
        %v2151 = vpop.f32.mrb[0].mxu0
        %v2152 = vpop.f32.mrb[0].mxu0
        %v2153 = vadd.f32 0.0, %v2152
        %v2154 = vpop.f32.mrb[0].mxu0
        %2155 = vdwg.mxu0
        %v2156 = vadd.f32 %v1797, %v2030
        %v2157 = vadd.f32 %v1798, %v2033
        %v2158 = vadd.f32 %v1799, %v2038
        %v2159 = vadd.f32 %v1800, %v2041
        %v2160 = vadd.f32 %v1801, %v2046
        %v2161 = vadd.f32 %v1802, %v2049
        %v2162 = vadd.f32 %v1803, %v2054
        %v2163 = vadd.f32 %v1804, %v2057
        %v2164 = vadd.f32 %v1805, %v2062
        %v2165 = vadd.f32 %v1806, %v2065
        %v2166 = vadd.f32 %v1807, %v2070
        %v2167 = vadd.f32 %v1808, %v2073
        %v2168 = vadd.f32 %v1809, %v2078
        %v2169 = vadd.f32 %v1810, %v2081
        %v2170 = vadd.f32 %v1811, %v2086
        %v2171 = vadd.f32 %v1812, %v2089
        %v2172 = vadd.f32 %v1813, %v2094
        %v2173 = vadd.f32 %v1814, %v2097
        %v2174 = vadd.f32 %v1815, %v2102
        %v2175 = vadd.f32 %v1816, %v2105
        %v2176 = vadd.f32 %v1817, %v2110
        %v2177 = vadd.f32 %v1818, %v2113
        %v2178 = vadd.f32 %v1819, %v2118
        %v2179 = vadd.f32 %v1820, %v2121
        %v2180 = vadd.f32 %v1821, %v2126
        %v2181 = vadd.f32 %v1822, %v2129
        %v2182 = vadd.f32 %v1823, %v2134
        %v2183 = vadd.f32 %v1824, %v2137
        %v2184 = vadd.f32 %v1825, %v2142
        %v2185 = vadd.f32 %v1826, %v2145
        %v2186 = vadd.f32 %v1827, %v2150
        %v2187 = vadd.f32 %v1828, %v2153
        %v2188 = vld [vmem:[%s1829] sm:$0xf]
        %v2189 = vld [vmem:[%s1829 + $0x4] sm:$0xf]
        %v2190 = vld [vmem:[%s1829 + $0x8] sm:$0x1]
        %v2191 = vld [vmem:[%s1829 + $0xc] sm:$0xf]
        %v2192 = vld [vmem:[%s1829 + $0x10] sm:$0xf]
        %v2193 = vld [vmem:[%s1829 + $0x14] sm:$0x1]
        %v2194 = vld [vmem:[%s1829 + $0x18] sm:$0xf]
        %v2195 = vld [vmem:[%s1829 + $0x1c] sm:$0xf]
        %v2196 = vld [vmem:[%s1829 + $0x20] sm:$0x1]
        %v2197 = vld [vmem:[%s1829 + $0x24] sm:$0xf]
        %v2198 = vld [vmem:[%s1829 + $0x28] sm:$0xf]
        %v2199 = vld [vmem:[%s1829 + $0x2c] sm:$0x1]
        %v2200 = vld [vmem:[%s1829 + $0x30] sm:$0xf]
        %v2201 = vld [vmem:[%s1829 + $0x34] sm:$0xf]
        %v2202 = vld [vmem:[%s1829 + $0x38] sm:$0x1]
        %v2203 = vld [vmem:[%s1829 + $0x3c] sm:$0xf]
        %v2204 = vld [vmem:[%s1829 + $0x40] sm:$0xf]
        %v2205 = vld [vmem:[%s1829 + $0x44] sm:$0x1]
        %v2206 = vld [vmem:[%s1829 + $0x48] sm:$0xf]
        %v2207 = vld [vmem:[%s1829 + $0x4c] sm:$0xf]
        %v2208 = vld [vmem:[%s1829 + $0x50] sm:$0x1]
        %v2209 = vld [vmem:[%s1829 + $0x54] sm:$0xf]
        %v2210 = vld [vmem:[%s1829 + $0x58] sm:$0xf]
        %v2211 = vld [vmem:[%s1829 + $0x5c] sm:$0x1]
        %v2212 = vld [vmem:[%s1829 + $0x60] sm:$0xf]
        %v2213 = vld [vmem:[%s1829 + $0x64] sm:$0xf]
        %v2214 = vld [vmem:[%s1829 + $0x68] sm:$0x1]
        %v2215 = vld [vmem:[%s1829 + $0x6c] sm:$0xf]
        %v2216 = vld [vmem:[%s1829 + $0x70] sm:$0xf]
        %v2217 = vld [vmem:[%s1829 + $0x74] sm:$0x1]
        %v2218 = vld [vmem:[%s1829 + $0x78] sm:$0xf]
        %v2219 = vld [vmem:[%s1829 + $0x7c] sm:$0xf]
        %v2220 = vld [vmem:[%s1829 + $0x80] sm:$0x1]
        %v2221 = vld [vmem:[%s1829 + $0x84] sm:$0xf]
        %v2222 = vld [vmem:[%s1829 + $0x88] sm:$0xf]
        %v2223 = vld [vmem:[%s1829 + $0x8c] sm:$0x1]
        %v2224 = vld [vmem:[%s1829 + $0x90] sm:$0xf]
        %v2225 = vld [vmem:[%s1829 + $0x94] sm:$0xf]
        %v2226 = vld [vmem:[%s1829 + $0x98] sm:$0x1]
        %v2227 = vld [vmem:[%s1829 + $0x9c] sm:$0xf]
        %v2228 = vld [vmem:[%s1829 + $0xa0] sm:$0xf]
        %v2229 = vld [vmem:[%s1829 + $0xa4] sm:$0x1]
        %v2230 = vld [vmem:[%s1829 + $0xa8] sm:$0xf]
        %v2231 = vld [vmem:[%s1829 + $0xac] sm:$0xf]
        %v2232 = vld [vmem:[%s1829 + $0xb0] sm:$0x1]
        %v2233 = vld [vmem:[%s1829 + $0xb4] sm:$0xf]
        %v2234 = vld [vmem:[%s1829 + $0xb8] sm:$0xf]
        %v2235 = vld [vmem:[%s1829 + $0xbc] sm:$0x1]
        %v2237 = vshrl.u32 %v2188, 16
        %v2239 = vrot.slane %v2237, 4
        %v2240 = vshll.u32 %v2188, 16
        %v2242 = vrot.slane %v2240, 5
        %v2243 = vor.u32 %v2239, %v2242
        %v2244 = vrot.slane %v2243, 4
        %v2246 = vshll.u32 %v2189, 16
        %v2248 = vrot.slane %v2246, 5
        %v2249 = vsel %vm431, %v2244, %v2248
        %v2250 = vshrl.u32 %v2189, 16
        %v2252 = vrot.slane %v2250, 4
        %v2253 = vor.u32 %v2252, %v2248
        %v2254 = vrot.slane %v2253, 4
        %v2256 = vshll.u32 %v2190, 16
        %v2258 = vrot.slane %v2256, 5
        %v2259 = vsel %vm431, %v2254, %v2258
        %v2261 = vshrl.u32 %v2191, 16
        %v2263 = vrot.slane %v2261, 4
        %v2264 = vshll.u32 %v2191, 16
        %v2266 = vrot.slane %v2264, 5
        %v2267 = vor.u32 %v2263, %v2266
        %v2268 = vrot.slane %v2267, 4
        %v2270 = vshll.u32 %v2192, 16
        %v2272 = vrot.slane %v2270, 5
        %v2273 = vsel %vm431, %v2268, %v2272
        %v2274 = vshrl.u32 %v2192, 16
        %v2276 = vrot.slane %v2274, 4
        %v2277 = vor.u32 %v2276, %v2272
        %v2278 = vrot.slane %v2277, 4
        %v2280 = vshll.u32 %v2193, 16
        %v2282 = vrot.slane %v2280, 5
        %v2283 = vsel %vm431, %v2278, %v2282
        %v2285 = vshrl.u32 %v2194, 16
        %v2287 = vrot.slane %v2285, 4
        %v2288 = vshll.u32 %v2194, 16
        %v2290 = vrot.slane %v2288, 5
        %v2291 = vor.u32 %v2287, %v2290
        %v2292 = vrot.slane %v2291, 4
        %v2294 = vshll.u32 %v2195, 16
        %v2296 = vrot.slane %v2294, 5
        %v2297 = vsel %vm431, %v2292, %v2296
        %v2298 = vshrl.u32 %v2195, 16
        %v2300 = vrot.slane %v2298, 4
        %v2301 = vor.u32 %v2300, %v2296
        %v2302 = vrot.slane %v2301, 4
        %v2304 = vshll.u32 %v2196, 16
        %v2306 = vrot.slane %v2304, 5
        %v2307 = vsel %vm431, %v2302, %v2306
        %v2309 = vshrl.u32 %v2197, 16
        %v2311 = vrot.slane %v2309, 4
        %v2312 = vshll.u32 %v2197, 16
        %v2314 = vrot.slane %v2312, 5
        %v2315 = vor.u32 %v2311, %v2314
        %v2316 = vrot.slane %v2315, 4
        %v2318 = vshll.u32 %v2198, 16
        %v2320 = vrot.slane %v2318, 5
        %v2321 = vsel %vm431, %v2316, %v2320
        %v2322 = vshrl.u32 %v2198, 16
        %v2324 = vrot.slane %v2322, 4
        %v2325 = vor.u32 %v2324, %v2320
        %v2326 = vrot.slane %v2325, 4
        %v2328 = vshll.u32 %v2199, 16
        %v2330 = vrot.slane %v2328, 5
        %v2331 = vsel %vm431, %v2326, %v2330
        %v2333 = vshrl.u32 %v2200, 16
        %v2335 = vrot.slane %v2333, 4
        %v2336 = vshll.u32 %v2200, 16
        %v2338 = vrot.slane %v2336, 5
        %v2339 = vor.u32 %v2335, %v2338
        %v2340 = vrot.slane %v2339, 4
        %v2342 = vshll.u32 %v2201, 16
        %v2344 = vrot.slane %v2342, 5
        %v2345 = vsel %vm431, %v2340, %v2344
        %v2346 = vshrl.u32 %v2201, 16
        %v2348 = vrot.slane %v2346, 4
        %v2349 = vor.u32 %v2348, %v2344
        %v2350 = vrot.slane %v2349, 4
        %v2352 = vshll.u32 %v2202, 16
        %v2354 = vrot.slane %v2352, 5
        %v2355 = vsel %vm431, %v2350, %v2354
        %v2357 = vshrl.u32 %v2203, 16
        %v2359 = vrot.slane %v2357, 4
        %v2360 = vshll.u32 %v2203, 16
        %v2362 = vrot.slane %v2360, 5
        %v2363 = vor.u32 %v2359, %v2362
        %v2364 = vrot.slane %v2363, 4
        %v2366 = vshll.u32 %v2204, 16
        %v2368 = vrot.slane %v2366, 5
        %v2369 = vsel %vm431, %v2364, %v2368
        %v2370 = vshrl.u32 %v2204, 16
        %v2372 = vrot.slane %v2370, 4
        %v2373 = vor.u32 %v2372, %v2368
        %v2374 = vrot.slane %v2373, 4
        %v2376 = vshll.u32 %v2205, 16
        %v2378 = vrot.slane %v2376, 5
        %v2379 = vsel %vm431, %v2374, %v2378
        %v2381 = vshrl.u32 %v2206, 16
        %v2383 = vrot.slane %v2381, 4
        %v2384 = vshll.u32 %v2206, 16
        %v2386 = vrot.slane %v2384, 5
        %v2387 = vor.u32 %v2383, %v2386
        %v2388 = vrot.slane %v2387, 4
        %v2390 = vshll.u32 %v2207, 16
        %v2392 = vrot.slane %v2390, 5
        %v2393 = vsel %vm431, %v2388, %v2392
        %v2394 = vshrl.u32 %v2207, 16
        %v2396 = vrot.slane %v2394, 4
        %v2397 = vor.u32 %v2396, %v2392
        %v2398 = vrot.slane %v2397, 4
        %v2400 = vshll.u32 %v2208, 16
        %v2402 = vrot.slane %v2400, 5
        %v2403 = vsel %vm431, %v2398, %v2402
        %v2405 = vshrl.u32 %v2209, 16
        %v2407 = vrot.slane %v2405, 4
        %v2408 = vshll.u32 %v2209, 16
        %v2410 = vrot.slane %v2408, 5
        %v2411 = vor.u32 %v2407, %v2410
        %v2412 = vrot.slane %v2411, 4
        %v2414 = vshll.u32 %v2210, 16
        %v2416 = vrot.slane %v2414, 5
        %v2417 = vsel %vm431, %v2412, %v2416
        %v2418 = vshrl.u32 %v2210, 16
        %v2420 = vrot.slane %v2418, 4
        %v2421 = vor.u32 %v2420, %v2416
        %v2422 = vrot.slane %v2421, 4
        %v2424 = vshll.u32 %v2211, 16
        %v2426 = vrot.slane %v2424, 5
        %v2427 = vsel %vm431, %v2422, %v2426
        %v2429 = vshrl.u32 %v2212, 16
        %v2431 = vrot.slane %v2429, 4
        %v2432 = vshll.u32 %v2212, 16
        %v2434 = vrot.slane %v2432, 5
        %v2435 = vor.u32 %v2431, %v2434
        %v2436 = vrot.slane %v2435, 4
        %v2438 = vshll.u32 %v2213, 16
        %v2440 = vrot.slane %v2438, 5
        %v2441 = vsel %vm431, %v2436, %v2440
        %v2442 = vshrl.u32 %v2213, 16
        %v2444 = vrot.slane %v2442, 4
        %v2445 = vor.u32 %v2444, %v2440
        %v2446 = vrot.slane %v2445, 4
        %v2448 = vshll.u32 %v2214, 16
        %v2450 = vrot.slane %v2448, 5
        %v2451 = vsel %vm431, %v2446, %v2450
        %v2453 = vshrl.u32 %v2215, 16
        %v2455 = vrot.slane %v2453, 4
        %v2456 = vshll.u32 %v2215, 16
        %v2458 = vrot.slane %v2456, 5
        %v2459 = vor.u32 %v2455, %v2458
        %v2460 = vrot.slane %v2459, 4
        %v2462 = vshll.u32 %v2216, 16
        %v2464 = vrot.slane %v2462, 5
        %v2465 = vsel %vm431, %v2460, %v2464
        %v2466 = vshrl.u32 %v2216, 16
        %v2468 = vrot.slane %v2466, 4
        %v2469 = vor.u32 %v2468, %v2464
        %v2470 = vrot.slane %v2469, 4
        %v2472 = vshll.u32 %v2217, 16
        %v2474 = vrot.slane %v2472, 5
        %v2475 = vsel %vm431, %v2470, %v2474
        %v2477 = vshrl.u32 %v2218, 16
        %v2479 = vrot.slane %v2477, 4
        %v2480 = vshll.u32 %v2218, 16
        %v2482 = vrot.slane %v2480, 5
        %v2483 = vor.u32 %v2479, %v2482
        %v2484 = vrot.slane %v2483, 4
        %v2486 = vshll.u32 %v2219, 16
        %v2488 = vrot.slane %v2486, 5
        %v2489 = vsel %vm431, %v2484, %v2488
        %v2490 = vshrl.u32 %v2219, 16
        %v2492 = vrot.slane %v2490, 4
        %v2493 = vor.u32 %v2492, %v2488
        %v2494 = vrot.slane %v2493, 4
        %v2496 = vshll.u32 %v2220, 16
        %v2498 = vrot.slane %v2496, 5
        %v2499 = vsel %vm431, %v2494, %v2498
        %v2501 = vshrl.u32 %v2221, 16
        %v2503 = vrot.slane %v2501, 4
        %v2504 = vshll.u32 %v2221, 16
        %v2506 = vrot.slane %v2504, 5
        %v2507 = vor.u32 %v2503, %v2506
        %v2508 = vrot.slane %v2507, 4
        %v2510 = vshll.u32 %v2222, 16
        %v2512 = vrot.slane %v2510, 5
        %v2513 = vsel %vm431, %v2508, %v2512
        %v2514 = vshrl.u32 %v2222, 16
        %v2516 = vrot.slane %v2514, 4
        %v2517 = vor.u32 %v2516, %v2512
        %v2518 = vrot.slane %v2517, 4
        %v2520 = vshll.u32 %v2223, 16
        %v2522 = vrot.slane %v2520, 5
        %v2523 = vsel %vm431, %v2518, %v2522
        %v2525 = vshrl.u32 %v2224, 16
        %v2527 = vrot.slane %v2525, 4
        %v2528 = vshll.u32 %v2224, 16
        %v2530 = vrot.slane %v2528, 5
        %v2531 = vor.u32 %v2527, %v2530
        %v2532 = vrot.slane %v2531, 4
        %v2534 = vshll.u32 %v2225, 16
        %v2536 = vrot.slane %v2534, 5
        %v2537 = vsel %vm431, %v2532, %v2536
        %v2538 = vshrl.u32 %v2225, 16
        %v2540 = vrot.slane %v2538, 4
        %v2541 = vor.u32 %v2540, %v2536
        %v2542 = vrot.slane %v2541, 4
        %v2544 = vshll.u32 %v2226, 16
        %v2546 = vrot.slane %v2544, 5
        %v2547 = vsel %vm431, %v2542, %v2546
        %v2549 = vshrl.u32 %v2227, 16
        %v2551 = vrot.slane %v2549, 4
        %v2552 = vshll.u32 %v2227, 16
        %v2554 = vrot.slane %v2552, 5
        %v2555 = vor.u32 %v2551, %v2554
        %v2556 = vrot.slane %v2555, 4
        %v2558 = vshll.u32 %v2228, 16
        %v2560 = vrot.slane %v2558, 5
        %v2561 = vsel %vm431, %v2556, %v2560
        %v2562 = vshrl.u32 %v2228, 16
        %v2564 = vrot.slane %v2562, 4
        %v2565 = vor.u32 %v2564, %v2560
        %v2566 = vrot.slane %v2565, 4
        %v2568 = vshll.u32 %v2229, 16
        %v2570 = vrot.slane %v2568, 5
        %v2571 = vsel %vm431, %v2566, %v2570
        %v2573 = vshrl.u32 %v2230, 16
        %v2575 = vrot.slane %v2573, 4
        %v2576 = vshll.u32 %v2230, 16
        %v2578 = vrot.slane %v2576, 5
        %v2579 = vor.u32 %v2575, %v2578
        %v2580 = vrot.slane %v2579, 4
        %v2582 = vshll.u32 %v2231, 16
        %v2584 = vrot.slane %v2582, 5
        %v2585 = vsel %vm431, %v2580, %v2584
        %v2586 = vshrl.u32 %v2231, 16
        %v2588 = vrot.slane %v2586, 4
        %v2589 = vor.u32 %v2588, %v2584
        %v2590 = vrot.slane %v2589, 4
        %v2592 = vshll.u32 %v2232, 16
        %v2594 = vrot.slane %v2592, 5
        %v2595 = vsel %vm431, %v2590, %v2594
        %v2597 = vshrl.u32 %v2233, 16
        %v2599 = vrot.slane %v2597, 4
        %v2600 = vshll.u32 %v2233, 16
        %v2602 = vrot.slane %v2600, 5
        %v2603 = vor.u32 %v2599, %v2602
        %v2604 = vrot.slane %v2603, 4
        %v2606 = vshll.u32 %v2234, 16
        %v2608 = vrot.slane %v2606, 5
        %v2609 = vsel %vm431, %v2604, %v2608
        %v2610 = vshrl.u32 %v2234, 16
        %v2612 = vrot.slane %v2610, 4
        %v2613 = vor.u32 %v2612, %v2608
        %v2614 = vrot.slane %v2613, 4
        %v2616 = vshll.u32 %v2235, 16
        %v2618 = vrot.slane %v2616, 5
        %v2619 = vsel %vm431, %v2614, %v2618
        %s2620 = scalar_lea.vmem %s1, 8
        %v2621 = vld [vmem:[%s2620] sm:$0x3]
        %v2622 = vunpack.c.l.b16 %v2249
        %v2623 = vunpack.c.l.b16 %v2259
        %v2624 = vunpack.c.l.b16 %v2273
        %v2625 = vunpack.c.l.b16 %v2283
        %v2626 = vunpack.c.l.b16 %v2297
        %v2627 = vunpack.c.l.b16 %v2307
        %v2628 = vunpack.c.l.b16 %v2321
        %v2629 = vunpack.c.l.b16 %v2331
        %v2630 = vunpack.c.l.b16 %v2345
        %v2631 = vunpack.c.l.b16 %v2355
        %v2632 = vunpack.c.l.b16 %v2369
        %v2633 = vunpack.c.l.b16 %v2379
        %v2634 = vunpack.c.l.b16 %v2393
        %v2635 = vunpack.c.l.b16 %v2403
        %v2636 = vunpack.c.l.b16 %v2417
        %v2637 = vunpack.c.l.b16 %v2427
        %v2638 = vunpack.c.l.b16 %v2441
        %v2639 = vunpack.c.l.b16 %v2451
        %v2640 = vunpack.c.l.b16 %v2465
        %v2641 = vunpack.c.l.b16 %v2475
        %v2642 = vunpack.c.l.b16 %v2489
        %v2643 = vunpack.c.l.b16 %v2499
        %v2644 = vunpack.c.l.b16 %v2513
        %v2645 = vunpack.c.l.b16 %v2523
        %v2646 = vunpack.c.l.b16 %v2537
        %v2647 = vunpack.c.l.b16 %v2547
        %v2648 = vunpack.c.l.b16 %v2561
        %v2649 = vunpack.c.l.b16 %v2571
        %v2650 = vunpack.c.l.b16 %v2585
        %v2651 = vunpack.c.l.b16 %v2595
        %v2652 = vunpack.c.l.b16 %v2609
        %v2653 = vunpack.c.l.b16 %v2619
        %v2654 = vpack.c.b16 %v2623, %v2622
        %v2655 = vpack.c.b16 %v2625, %v2624
        %v2656 = vpack.c.b16 %v2627, %v2626
        %v2657 = vpack.c.b16 %v2629, %v2628
        %v2658 = vpack.c.b16 %v2631, %v2630
        %v2659 = vpack.c.b16 %v2633, %v2632
        %v2660 = vpack.c.b16 %v2635, %v2634
        %v2661 = vpack.c.b16 %v2637, %v2636
        %v2662 = vpack.c.b16 %v2639, %v2638
        %v2663 = vpack.c.b16 %v2641, %v2640
        %v2664 = vpack.c.b16 %v2643, %v2642
        %v2665 = vpack.c.b16 %v2645, %v2644
        %v2666 = vpack.c.b16 %v2647, %v2646
        %v2667 = vpack.c.b16 %v2649, %v2648
        %v2668 = vpack.c.b16 %v2651, %v2650
        %v2669 = vpack.c.b16 %v2653, %v2652
        %v2671 = vsel %vm866, %v2654, 0
        %v2674 = vsel %vm866, %v2655, 0
        %v2677 = vsel %vm866, %v2656, 0
        %v2680 = vsel %vm866, %v2657, 0
        %v2683 = vsel %vm866, %v2658, 0
        %v2686 = vsel %vm866, %v2659, 0
        %v2689 = vsel %vm866, %v2660, 0
        %v2692 = vsel %vm866, %v2661, 0
        %v2695 = vsel %vm866, %v2662, 0
        %v2698 = vsel %vm866, %v2663, 0
        %v2701 = vsel %vm866, %v2664, 0
        %v2704 = vsel %vm866, %v2665, 0
        %v2707 = vsel %vm866, %v2666, 0
        %v2710 = vsel %vm866, %v2667, 0
        %v2713 = vsel %vm866, %v2668, 0
        %v2716 = vsel %vm866, %v2669, 0
        %v2719 = vsel %vm915, %v2621, 0
        %2721 = vmatprep.subr.bf16.mxu0 0
        %2722 = vmatpush1.bf16.msra.mxu0 %v2719
        %2723 = vmatprep.subr.bf16.mxu0 0
        %2724 = vmatpush1.bf16.msra.mxu0 0
        %2725 = vmatprep.subr.bf16.mxu0 0
        %2726 = vmatpush1.bf16.msra.mxu0 0
        %2727 = vmatprep.subr.bf16.mxu0 0
        %2728 = vmatpush1.bf16.msra.mxu0 0
        %2729 = vmatprep.subr.bf16.mxu0 0
        %2730 = vmatpush1.bf16.msra.mxu0 0
        %2731 = vmatprep.subr.bf16.mxu0 0
        %2732 = vmatpush1.bf16.msra.mxu0 0
        %2733 = vmatprep.subr.bf16.mxu0 0
        %2734 = vmatpush1.bf16.msra.mxu0 0
        %2735 = vmatprep.subr.bf16.mxu0 0
        %2736 = vmatpush1.bf16.msra.mxu0 0
        %2737 = vmatprep.subr.bf16.mxu0 0
        %2738 = vmatpush1.bf16.msra.mxu0 0
        %2739 = vmatprep.subr.bf16.mxu0 0
        %2740 = vmatpush1.bf16.msra.mxu0 0
        %2741 = vmatprep.subr.bf16.mxu0 0
        %2742 = vmatpush1.bf16.msra.mxu0 0
        %2743 = vmatprep.subr.bf16.mxu0 0
        %2744 = vmatpush1.bf16.msra.mxu0 0
        %2745 = vmatprep.subr.bf16.mxu0 0
        %2746 = vmatpush1.bf16.msra.mxu0 0
        %2747 = vmatprep.subr.bf16.mxu0 0
        %2748 = vmatpush1.bf16.msra.mxu0 0
        %2749 = vmatprep.subr.bf16.mxu0 0
        %2750 = vmatpush1.bf16.msra.mxu0 0
        %2751 = vmatprep.subr.bf16.mxu0 0
        %2752 = vmatpush1.bf16.msra.mxu0 0
        %2753 = vmatprep.mubr.bf16.mxu0 0
        %2754 = vmatmul.mubr.bf16.gmra.mrb[0].mxu0 %v2671
        %v2755 = vpop.f32.mrb[0].mxu0
        %v2756 = vadd.f32 0.0, %v2755
        %v2757 = vpop.f32.mrb[0].mxu0
        %v2758 = vpop.f32.mrb[0].mxu0
        %v2759 = vadd.f32 0.0, %v2758
        %v2760 = vpop.f32.mrb[0].mxu0
        %2761 = vmatprep.mubr.bf16.mxu0 0
        %2762 = vmatmul.mubr.bf16.gmra.mrb[0].mxu0 %v2674
        %v2763 = vpop.f32.mrb[0].mxu0
        %v2764 = vadd.f32 0.0, %v2763
        %v2765 = vpop.f32.mrb[0].mxu0
        %v2766 = vpop.f32.mrb[0].mxu0
        %v2767 = vadd.f32 0.0, %v2766
        %v2768 = vpop.f32.mrb[0].mxu0
        %2769 = vmatprep.mubr.bf16.mxu0 0
        %2770 = vmatmul.mubr.bf16.gmra.mrb[0].mxu0 %v2677
        %v2771 = vpop.f32.mrb[0].mxu0
        %v2772 = vadd.f32 0.0, %v2771
        %v2773 = vpop.f32.mrb[0].mxu0
        %v2774 = vpop.f32.mrb[0].mxu0
        %v2775 = vadd.f32 0.0, %v2774
        %v2776 = vpop.f32.mrb[0].mxu0
        %2777 = vmatprep.mubr.bf16.mxu0 0
        %2778 = vmatmul.mubr.bf16.gmra.mrb[0].mxu0 %v2680
        %v2779 = vpop.f32.mrb[0].mxu0
        %v2780 = vadd.f32 0.0, %v2779
        %v2781 = vpop.f32.mrb[0].mxu0
        %v2782 = vpop.f32.mrb[0].mxu0
        %v2783 = vadd.f32 0.0, %v2782
        %v2784 = vpop.f32.mrb[0].mxu0
        %2785 = vmatprep.mubr.bf16.mxu0 0
        %2786 = vmatmul.mubr.bf16.gmra.mrb[0].mxu0 %v2683
        %v2787 = vpop.f32.mrb[0].mxu0
        %v2788 = vadd.f32 0.0, %v2787
        %v2789 = vpop.f32.mrb[0].mxu0
        %v2790 = vpop.f32.mrb[0].mxu0
        %v2791 = vadd.f32 0.0, %v2790
        %v2792 = vpop.f32.mrb[0].mxu0
        %2793 = vmatprep.mubr.bf16.mxu0 0
        %2794 = vmatmul.mubr.bf16.gmra.mrb[0].mxu0 %v2686
        %v2795 = vpop.f32.mrb[0].mxu0
        %v2796 = vadd.f32 0.0, %v2795
        %v2797 = vpop.f32.mrb[0].mxu0
        %v2798 = vpop.f32.mrb[0].mxu0
        %v2799 = vadd.f32 0.0, %v2798
        %v2800 = vpop.f32.mrb[0].mxu0
        %2801 = vmatprep.mubr.bf16.mxu0 0
        %2802 = vmatmul.mubr.bf16.gmra.mrb[0].mxu0 %v2689
        %v2803 = vpop.f32.mrb[0].mxu0
        %v2804 = vadd.f32 0.0, %v2803
        %v2805 = vpop.f32.mrb[0].mxu0
        %v2806 = vpop.f32.mrb[0].mxu0
        %v2807 = vadd.f32 0.0, %v2806
        %v2808 = vpop.f32.mrb[0].mxu0
        %2809 = vmatprep.mubr.bf16.mxu0 0
        %2810 = vmatmul.mubr.bf16.gmra.mrb[0].mxu0 %v2692
        %v2811 = vpop.f32.mrb[0].mxu0
        %v2812 = vadd.f32 0.0, %v2811
        %v2813 = vpop.f32.mrb[0].mxu0
        %v2814 = vpop.f32.mrb[0].mxu0
        %v2815 = vadd.f32 0.0, %v2814
        %v2816 = vpop.f32.mrb[0].mxu0
        %2817 = vmatprep.mubr.bf16.mxu0 0
        %2818 = vmatmul.mubr.bf16.gmra.mrb[0].mxu0 %v2695
        %v2819 = vpop.f32.mrb[0].mxu0
        %v2820 = vadd.f32 0.0, %v2819
        %v2821 = vpop.f32.mrb[0].mxu0
        %v2822 = vpop.f32.mrb[0].mxu0
        %v2823 = vadd.f32 0.0, %v2822
        %v2824 = vpop.f32.mrb[0].mxu0
        %2825 = vmatprep.mubr.bf16.mxu0 0
        %2826 = vmatmul.mubr.bf16.gmra.mrb[0].mxu0 %v2698
        %v2827 = vpop.f32.mrb[0].mxu0
        %v2828 = vadd.f32 0.0, %v2827
        %v2829 = vpop.f32.mrb[0].mxu0
        %v2830 = vpop.f32.mrb[0].mxu0
        %v2831 = vadd.f32 0.0, %v2830
        %v2832 = vpop.f32.mrb[0].mxu0
        %2833 = vmatprep.mubr.bf16.mxu0 0
        %2834 = vmatmul.mubr.bf16.gmra.mrb[0].mxu0 %v2701
        %v2835 = vpop.f32.mrb[0].mxu0
        %v2836 = vadd.f32 0.0, %v2835
        %v2837 = vpop.f32.mrb[0].mxu0
        %v2838 = vpop.f32.mrb[0].mxu0
        %v2839 = vadd.f32 0.0, %v2838
        %v2840 = vpop.f32.mrb[0].mxu0
        %2841 = vmatprep.mubr.bf16.mxu0 0
        %2842 = vmatmul.mubr.bf16.gmra.mrb[0].mxu0 %v2704
        %v2843 = vpop.f32.mrb[0].mxu0
        %v2844 = vadd.f32 0.0, %v2843
        %v2845 = vpop.f32.mrb[0].mxu0
        %v2846 = vpop.f32.mrb[0].mxu0
        %v2847 = vadd.f32 0.0, %v2846
        %v2848 = vpop.f32.mrb[0].mxu0
        %2849 = vmatprep.mubr.bf16.mxu0 0
        %2850 = vmatmul.mubr.bf16.gmra.mrb[0].mxu0 %v2707
        %v2851 = vpop.f32.mrb[0].mxu0
        %v2852 = vadd.f32 0.0, %v2851
        %v2853 = vpop.f32.mrb[0].mxu0
        %v2854 = vpop.f32.mrb[0].mxu0
        %v2855 = vadd.f32 0.0, %v2854
        %v2856 = vpop.f32.mrb[0].mxu0
        %2857 = vmatprep.mubr.bf16.mxu0 0
        %2858 = vmatmul.mubr.bf16.gmra.mrb[0].mxu0 %v2710
        %v2859 = vpop.f32.mrb[0].mxu0
        %v2860 = vadd.f32 0.0, %v2859
        %v2861 = vpop.f32.mrb[0].mxu0
        %v2862 = vpop.f32.mrb[0].mxu0
        %v2863 = vadd.f32 0.0, %v2862
        %v2864 = vpop.f32.mrb[0].mxu0
        %2865 = vmatprep.mubr.bf16.mxu0 0
        %2866 = vmatmul.mubr.bf16.gmra.mrb[0].mxu0 %v2713
        %v2867 = vpop.f32.mrb[0].mxu0
        %v2868 = vadd.f32 0.0, %v2867
        %v2869 = vpop.f32.mrb[0].mxu0
        %v2870 = vpop.f32.mrb[0].mxu0
        %v2871 = vadd.f32 0.0, %v2870
        %v2872 = vpop.f32.mrb[0].mxu0
        %2873 = vmatprep.mubr.bf16.mxu0 0
        %2874 = vmatmul.mubr.bf16.gmra.mrb[0].mxu0 %v2716
        %v2875 = vpop.f32.mrb[0].mxu0
        %v2876 = vadd.f32 0.0, %v2875
        %v2877 = vpop.f32.mrb[0].mxu0
        %v2878 = vpop.f32.mrb[0].mxu0
        %v2879 = vadd.f32 0.0, %v2878
        %v2880 = vpop.f32.mrb[0].mxu0
        %2881 = vdwg.mxu0
        %v2882 = vadd.f32 %v2156, %v2756
        %v2883 = vadd.f32 %v2157, %v2759
        %v2884 = vadd.f32 %v2158, %v2764
        %v2885 = vadd.f32 %v2159, %v2767
        %v2886 = vadd.f32 %v2160, %v2772
        %v2887 = vadd.f32 %v2161, %v2775
        %v2888 = vadd.f32 %v2162, %v2780
        %v2889 = vadd.f32 %v2163, %v2783
        %v2890 = vadd.f32 %v2164, %v2788
        %v2891 = vadd.f32 %v2165, %v2791
        %v2892 = vadd.f32 %v2166, %v2796
        %v2893 = vadd.f32 %v2167, %v2799
        %v2894 = vadd.f32 %v2168, %v2804
        %v2895 = vadd.f32 %v2169, %v2807
        %v2896 = vadd.f32 %v2170, %v2812
        %v2897 = vadd.f32 %v2171, %v2815
        %v2898 = vadd.f32 %v2172, %v2820
        %v2899 = vadd.f32 %v2173, %v2823
        %v2900 = vadd.f32 %v2174, %v2828
        %v2901 = vadd.f32 %v2175, %v2831
        %v2902 = vadd.f32 %v2176, %v2836
        %v2903 = vadd.f32 %v2177, %v2839
        %v2904 = vadd.f32 %v2178, %v2844
        %v2905 = vadd.f32 %v2179, %v2847
        %v2906 = vadd.f32 %v2180, %v2852
        %v2907 = vadd.f32 %v2181, %v2855
        %v2908 = vadd.f32 %v2182, %v2860
        %v2909 = vadd.f32 %v2183, %v2863
        %v2910 = vadd.f32 %v2184, %v2868
        %v2911 = vadd.f32 %v2185, %v2871
        %v2912 = vadd.f32 %v2186, %v2876
        %v2913 = vadd.f32 %v2187, %v2879
        %v2914 = vld [vmem:[%s1829] sm:$0xe]
        %v2915 = vld [vmem:[%s1829 + $0xc] sm:$0xe]
        %v2916 = vld [vmem:[%s1829 + $0x18] sm:$0xe]
        %v2917 = vld [vmem:[%s1829 + $0x24] sm:$0xe]
        %v2918 = vld [vmem:[%s1829 + $0x30] sm:$0xe]
        %v2919 = vld [vmem:[%s1829 + $0x3c] sm:$0xe]
        %v2920 = vld [vmem:[%s1829 + $0x48] sm:$0xe]
        %v2921 = vld [vmem:[%s1829 + $0x54] sm:$0xe]
        %v2922 = vld [vmem:[%s1829 + $0x60] sm:$0xe]
        %v2923 = vld [vmem:[%s1829 + $0x6c] sm:$0xe]
        %v2924 = vld [vmem:[%s1829 + $0x78] sm:$0xe]
        %v2925 = vld [vmem:[%s1829 + $0x84] sm:$0xe]
        %v2926 = vld [vmem:[%s1829 + $0x90] sm:$0xe]
        %v2927 = vld [vmem:[%s1829 + $0x9c] sm:$0xe]
        %v2928 = vld [vmem:[%s1829 + $0xa8] sm:$0xe]
        %v2929 = vld [vmem:[%s1829 + $0xb4] sm:$0xe]
        %v2978 = vrot.slane %v2914, 5
        %v2979 = vrot.slane %v2978, 4
        %v2980 = vrot.slane %v2189, 5
        %v2981 = vsel %vm1422, %v2979, %v2980
        %v2982 = vrot.slane %v2980, 4
        %v2983 = vrot.slane %v2190, 5
        %v2984 = vsel %vm1422, %v2982, %v2983
        %v2985 = vrot.slane %v2915, 5
        %v2986 = vrot.slane %v2985, 4
        %v2987 = vrot.slane %v2192, 5
        %v2988 = vsel %vm1422, %v2986, %v2987
        %v2989 = vrot.slane %v2987, 4
        %v2990 = vrot.slane %v2193, 5
        %v2991 = vsel %vm1422, %v2989, %v2990
        %v2992 = vrot.slane %v2916, 5
        %v2993 = vrot.slane %v2992, 4
        %v2994 = vrot.slane %v2195, 5
        %v2995 = vsel %vm1422, %v2993, %v2994
        %v2996 = vrot.slane %v2994, 4
        %v2997 = vrot.slane %v2196, 5
        %v2998 = vsel %vm1422, %v2996, %v2997
        %v2999 = vrot.slane %v2917, 5
        %v3000 = vrot.slane %v2999, 4
        %v3001 = vrot.slane %v2198, 5
        %v3002 = vsel %vm1422, %v3000, %v3001
        %v3003 = vrot.slane %v3001, 4
        %v3004 = vrot.slane %v2199, 5
        %v3005 = vsel %vm1422, %v3003, %v3004
        %v3006 = vrot.slane %v2918, 5
        %v3007 = vrot.slane %v3006, 4
        %v3008 = vrot.slane %v2201, 5
        %v3009 = vsel %vm1422, %v3007, %v3008
        %v3010 = vrot.slane %v3008, 4
        %v3011 = vrot.slane %v2202, 5
        %v3012 = vsel %vm1422, %v3010, %v3011
        %v3013 = vrot.slane %v2919, 5
        %v3014 = vrot.slane %v3013, 4
        %v3015 = vrot.slane %v2204, 5
        %v3016 = vsel %vm1422, %v3014, %v3015
        %v3017 = vrot.slane %v3015, 4
        %v3018 = vrot.slane %v2205, 5
        %v3019 = vsel %vm1422, %v3017, %v3018
        %v3020 = vrot.slane %v2920, 5
        %v3021 = vrot.slane %v3020, 4
        %v3022 = vrot.slane %v2207, 5
        %v3023 = vsel %vm1422, %v3021, %v3022
        %v3024 = vrot.slane %v3022, 4
        %v3025 = vrot.slane %v2208, 5
        %v3026 = vsel %vm1422, %v3024, %v3025
        %v3027 = vrot.slane %v2921, 5
        %v3028 = vrot.slane %v3027, 4
        %v3029 = vrot.slane %v2210, 5
        %v3030 = vsel %vm1422, %v3028, %v3029
        %v3031 = vrot.slane %v3029, 4
        %v3032 = vrot.slane %v2211, 5
        %v3033 = vsel %vm1422, %v3031, %v3032
        %v3034 = vrot.slane %v2922, 5
        %v3035 = vrot.slane %v3034, 4
        %v3036 = vrot.slane %v2213, 5
        %v3037 = vsel %vm1422, %v3035, %v3036
        %v3038 = vrot.slane %v3036, 4
        %v3039 = vrot.slane %v2214, 5
        %v3040 = vsel %vm1422, %v3038, %v3039
        %v3041 = vrot.slane %v2923, 5
        %v3042 = vrot.slane %v3041, 4
        %v3043 = vrot.slane %v2216, 5
        %v3044 = vsel %vm1422, %v3042, %v3043
        %v3045 = vrot.slane %v3043, 4
        %v3046 = vrot.slane %v2217, 5
        %v3047 = vsel %vm1422, %v3045, %v3046
        %v3048 = vrot.slane %v2924, 5
        %v3049 = vrot.slane %v3048, 4
        %v3050 = vrot.slane %v2219, 5
        %v3051 = vsel %vm1422, %v3049, %v3050
        %v3052 = vrot.slane %v3050, 4
        %v3053 = vrot.slane %v2220, 5
        %v3054 = vsel %vm1422, %v3052, %v3053
        %v3055 = vrot.slane %v2925, 5
        %v3056 = vrot.slane %v3055, 4
        %v3057 = vrot.slane %v2222, 5
        %v3058 = vsel %vm1422, %v3056, %v3057
        %v3059 = vrot.slane %v3057, 4
        %v3060 = vrot.slane %v2223, 5
        %v3061 = vsel %vm1422, %v3059, %v3060
        %v3062 = vrot.slane %v2926, 5
        %v3063 = vrot.slane %v3062, 4
        %v3064 = vrot.slane %v2225, 5
        %v3065 = vsel %vm1422, %v3063, %v3064
        %v3066 = vrot.slane %v3064, 4
        %v3067 = vrot.slane %v2226, 5
        %v3068 = vsel %vm1422, %v3066, %v3067
        %v3069 = vrot.slane %v2927, 5
        %v3070 = vrot.slane %v3069, 4
        %v3071 = vrot.slane %v2228, 5
        %v3072 = vsel %vm1422, %v3070, %v3071
        %v3073 = vrot.slane %v3071, 4
        %v3074 = vrot.slane %v2229, 5
        %v3075 = vsel %vm1422, %v3073, %v3074
        %v3076 = vrot.slane %v2928, 5
        %v3077 = vrot.slane %v3076, 4
        %v3078 = vrot.slane %v2231, 5
        %v3079 = vsel %vm1422, %v3077, %v3078
        %v3080 = vrot.slane %v3078, 4
        %v3081 = vrot.slane %v2232, 5
        %v3082 = vsel %vm1422, %v3080, %v3081
        %v3083 = vrot.slane %v2929, 5
        %v3084 = vrot.slane %v3083, 4
        %v3085 = vrot.slane %v2234, 5
        %v3086 = vsel %vm1422, %v3084, %v3085
        %v3087 = vrot.slane %v3085, 4
        %v3088 = vrot.slane %v2235, 5
        %v3089 = vsel %vm1422, %v3087, %v3088
        %s3090 = scalar_lea.vmem %s1, 10
        %v3091 = vld [vmem:[%s3090] sm:$0x3]
        %v3092 = vunpack.c.l.b16 %v2981
        %v3093 = vunpack.c.l.b16 %v2984
        %v3094 = vunpack.c.l.b16 %v2988
        %v3095 = vunpack.c.l.b16 %v2991
        %v3096 = vunpack.c.l.b16 %v2995
        %v3097 = vunpack.c.l.b16 %v2998
        %v3098 = vunpack.c.l.b16 %v3002
        %v3099 = vunpack.c.l.b16 %v3005
        %v3100 = vunpack.c.l.b16 %v3009
        %v3101 = vunpack.c.l.b16 %v3012
        %v3102 = vunpack.c.l.b16 %v3016
        %v3103 = vunpack.c.l.b16 %v3019
        %v3104 = vunpack.c.l.b16 %v3023
        %v3105 = vunpack.c.l.b16 %v3026
        %v3106 = vunpack.c.l.b16 %v3030
        %v3107 = vunpack.c.l.b16 %v3033
        %v3108 = vunpack.c.l.b16 %v3037
        %v3109 = vunpack.c.l.b16 %v3040
        %v3110 = vunpack.c.l.b16 %v3044
        %v3111 = vunpack.c.l.b16 %v3047
        %v3112 = vunpack.c.l.b16 %v3051
        %v3113 = vunpack.c.l.b16 %v3054
        %v3114 = vunpack.c.l.b16 %v3058
        %v3115 = vunpack.c.l.b16 %v3061
        %v3116 = vunpack.c.l.b16 %v3065
        %v3117 = vunpack.c.l.b16 %v3068
        %v3118 = vunpack.c.l.b16 %v3072
        %v3119 = vunpack.c.l.b16 %v3075
        %v3120 = vunpack.c.l.b16 %v3079
        %v3121 = vunpack.c.l.b16 %v3082
        %v3122 = vunpack.c.l.b16 %v3086
        %v3123 = vunpack.c.l.b16 %v3089
        %v3124 = vpack.c.b16 %v3093, %v3092
        %v3125 = vpack.c.b16 %v3095, %v3094
        %v3126 = vpack.c.b16 %v3097, %v3096
        %v3127 = vpack.c.b16 %v3099, %v3098
        %v3128 = vpack.c.b16 %v3101, %v3100
        %v3129 = vpack.c.b16 %v3103, %v3102
        %v3130 = vpack.c.b16 %v3105, %v3104
        %v3131 = vpack.c.b16 %v3107, %v3106
        %v3132 = vpack.c.b16 %v3109, %v3108
        %v3133 = vpack.c.b16 %v3111, %v3110
        %v3134 = vpack.c.b16 %v3113, %v3112
        %v3135 = vpack.c.b16 %v3115, %v3114
        %v3136 = vpack.c.b16 %v3117, %v3116
        %v3137 = vpack.c.b16 %v3119, %v3118
        %v3138 = vpack.c.b16 %v3121, %v3120
        %v3139 = vpack.c.b16 %v3123, %v3122
        %v3141 = vsel %vm866, %v3124, 0
        %v3144 = vsel %vm866, %v3125, 0
        %v3147 = vsel %vm866, %v3126, 0
        %v3150 = vsel %vm866, %v3127, 0
        %v3153 = vsel %vm866, %v3128, 0
        %v3156 = vsel %vm866, %v3129, 0
        %v3159 = vsel %vm866, %v3130, 0
        %v3162 = vsel %vm866, %v3131, 0
        %v3165 = vsel %vm866, %v3132, 0
        %v3168 = vsel %vm866, %v3133, 0
        %v3171 = vsel %vm866, %v3134, 0
        %v3174 = vsel %vm866, %v3135, 0
        %v3177 = vsel %vm866, %v3136, 0
        %v3180 = vsel %vm866, %v3137, 0
        %v3183 = vsel %vm866, %v3138, 0
        %v3186 = vsel %vm866, %v3139, 0
        %v3189 = vsel %vm915, %v3091, 0
        %3191 = vmatprep.subr.bf16.mxu0 0
        %3192 = vmatpush1.bf16.msra.mxu0 %v3189
        %3193 = vmatprep.subr.bf16.mxu0 0
        %3194 = vmatpush1.bf16.msra.mxu0 0
        %3195 = vmatprep.subr.bf16.mxu0 0
        %3196 = vmatpush1.bf16.msra.mxu0 0
        %3197 = vmatprep.subr.bf16.mxu0 0
        %3198 = vmatpush1.bf16.msra.mxu0 0
        %3199 = vmatprep.subr.bf16.mxu0 0
        %3200 = vmatpush1.bf16.msra.mxu0 0
        %3201 = vmatprep.subr.bf16.mxu0 0
        %3202 = vmatpush1.bf16.msra.mxu0 0
        %3203 = vmatprep.subr.bf16.mxu0 0
        %3204 = vmatpush1.bf16.msra.mxu0 0
        %3205 = vmatprep.subr.bf16.mxu0 0
        %3206 = vmatpush1.bf16.msra.mxu0 0
        %3207 = vmatprep.subr.bf16.mxu0 0
        %3208 = vmatpush1.bf16.msra.mxu0 0
        %3209 = vmatprep.subr.bf16.mxu0 0
        %3210 = vmatpush1.bf16.msra.mxu0 0
        %3211 = vmatprep.subr.bf16.mxu0 0
        %3212 = vmatpush1.bf16.msra.mxu0 0
        %3213 = vmatprep.subr.bf16.mxu0 0
        %3214 = vmatpush1.bf16.msra.mxu0 0
        %3215 = vmatprep.subr.bf16.mxu0 0
        %3216 = vmatpush1.bf16.msra.mxu0 0
        %3217 = vmatprep.subr.bf16.mxu0 0
        %3218 = vmatpush1.bf16.msra.mxu0 0
        %3219 = vmatprep.subr.bf16.mxu0 0
        %3220 = vmatpush1.bf16.msra.mxu0 0
        %3221 = vmatprep.subr.bf16.mxu0 0
        %3222 = vmatpush1.bf16.msra.mxu0 0
        %3223 = vmatprep.mubr.bf16.mxu0 0
        %3224 = vmatmul.mubr.bf16.gmra.mrb[0].mxu0 %v3141
        %v3225 = vpop.f32.mrb[0].mxu0
        %v3226 = vadd.f32 0.0, %v3225
        %v3227 = vpop.f32.mrb[0].mxu0
        %v3228 = vpop.f32.mrb[0].mxu0
        %v3229 = vadd.f32 0.0, %v3228
        %v3230 = vpop.f32.mrb[0].mxu0
        %3231 = vmatprep.mubr.bf16.mxu0 0
        %3232 = vmatmul.mubr.bf16.gmra.mrb[0].mxu0 %v3144
        %v3233 = vpop.f32.mrb[0].mxu0
        %v3234 = vadd.f32 0.0, %v3233
        %v3235 = vpop.f32.mrb[0].mxu0
        %v3236 = vpop.f32.mrb[0].mxu0
        %v3237 = vadd.f32 0.0, %v3236
        %v3238 = vpop.f32.mrb[0].mxu0
        %3239 = vmatprep.mubr.bf16.mxu0 0
        %3240 = vmatmul.mubr.bf16.gmra.mrb[0].mxu0 %v3147
        %v3241 = vpop.f32.mrb[0].mxu0
        %v3242 = vadd.f32 0.0, %v3241
        %v3243 = vpop.f32.mrb[0].mxu0
        %v3244 = vpop.f32.mrb[0].mxu0
        %v3245 = vadd.f32 0.0, %v3244
        %v3246 = vpop.f32.mrb[0].mxu0
        %3247 = vmatprep.mubr.bf16.mxu0 0
        %3248 = vmatmul.mubr.bf16.gmra.mrb[0].mxu0 %v3150
        %v3249 = vpop.f32.mrb[0].mxu0
        %v3250 = vadd.f32 0.0, %v3249
        %v3251 = vpop.f32.mrb[0].mxu0
        %v3252 = vpop.f32.mrb[0].mxu0
        %v3253 = vadd.f32 0.0, %v3252
        %v3254 = vpop.f32.mrb[0].mxu0
        %3255 = vmatprep.mubr.bf16.mxu0 0
        %3256 = vmatmul.mubr.bf16.gmra.mrb[0].mxu0 %v3153
        %v3257 = vpop.f32.mrb[0].mxu0
        %v3258 = vadd.f32 0.0, %v3257
        %v3259 = vpop.f32.mrb[0].mxu0
        %v3260 = vpop.f32.mrb[0].mxu0
        %v3261 = vadd.f32 0.0, %v3260
        %v3262 = vpop.f32.mrb[0].mxu0
        %3263 = vmatprep.mubr.bf16.mxu0 0
        %3264 = vmatmul.mubr.bf16.gmra.mrb[0].mxu0 %v3156
        %v3265 = vpop.f32.mrb[0].mxu0
        %v3266 = vadd.f32 0.0, %v3265
        %v3267 = vpop.f32.mrb[0].mxu0
        %v3268 = vpop.f32.mrb[0].mxu0
        %v3269 = vadd.f32 0.0, %v3268
        %v3270 = vpop.f32.mrb[0].mxu0
        %3271 = vmatprep.mubr.bf16.mxu0 0
        %3272 = vmatmul.mubr.bf16.gmra.mrb[0].mxu0 %v3159
        %v3273 = vpop.f32.mrb[0].mxu0
        %v3274 = vadd.f32 0.0, %v3273
        %v3275 = vpop.f32.mrb[0].mxu0
        %v3276 = vpop.f32.mrb[0].mxu0
        %v3277 = vadd.f32 0.0, %v3276
        %v3278 = vpop.f32.mrb[0].mxu0
        %3279 = vmatprep.mubr.bf16.mxu0 0
        %3280 = vmatmul.mubr.bf16.gmra.mrb[0].mxu0 %v3162
        %v3281 = vpop.f32.mrb[0].mxu0
        %v3282 = vadd.f32 0.0, %v3281
        %v3283 = vpop.f32.mrb[0].mxu0
        %v3284 = vpop.f32.mrb[0].mxu0
        %v3285 = vadd.f32 0.0, %v3284
        %v3286 = vpop.f32.mrb[0].mxu0
        %3287 = vmatprep.mubr.bf16.mxu0 0
        %3288 = vmatmul.mubr.bf16.gmra.mrb[0].mxu0 %v3165
        %v3289 = vpop.f32.mrb[0].mxu0
        %v3290 = vadd.f32 0.0, %v3289
        %v3291 = vpop.f32.mrb[0].mxu0
        %v3292 = vpop.f32.mrb[0].mxu0
        %v3293 = vadd.f32 0.0, %v3292
        %v3294 = vpop.f32.mrb[0].mxu0
        %3295 = vmatprep.mubr.bf16.mxu0 0
        %3296 = vmatmul.mubr.bf16.gmra.mrb[0].mxu0 %v3168
        %v3297 = vpop.f32.mrb[0].mxu0
        %v3298 = vadd.f32 0.0, %v3297
        %v3299 = vpop.f32.mrb[0].mxu0
        %v3300 = vpop.f32.mrb[0].mxu0
        %v3301 = vadd.f32 0.0, %v3300
        %v3302 = vpop.f32.mrb[0].mxu0
        %3303 = vmatprep.mubr.bf16.mxu0 0
        %3304 = vmatmul.mubr.bf16.gmra.mrb[0].mxu0 %v3171
        %v3305 = vpop.f32.mrb[0].mxu0
        %v3306 = vadd.f32 0.0, %v3305
        %v3307 = vpop.f32.mrb[0].mxu0
        %v3308 = vpop.f32.mrb[0].mxu0
        %v3309 = vadd.f32 0.0, %v3308
        %v3310 = vpop.f32.mrb[0].mxu0
        %3311 = vmatprep.mubr.bf16.mxu0 0
        %3312 = vmatmul.mubr.bf16.gmra.mrb[0].mxu0 %v3174
        %v3313 = vpop.f32.mrb[0].mxu0
        %v3314 = vadd.f32 0.0, %v3313
        %v3315 = vpop.f32.mrb[0].mxu0
        %v3316 = vpop.f32.mrb[0].mxu0
        %v3317 = vadd.f32 0.0, %v3316
        %v3318 = vpop.f32.mrb[0].mxu0
        %3319 = vmatprep.mubr.bf16.mxu0 0
        %3320 = vmatmul.mubr.bf16.gmra.mrb[0].mxu0 %v3177
        %v3321 = vpop.f32.mrb[0].mxu0
        %v3322 = vadd.f32 0.0, %v3321
        %v3323 = vpop.f32.mrb[0].mxu0
        %v3324 = vpop.f32.mrb[0].mxu0
        %v3325 = vadd.f32 0.0, %v3324
        %v3326 = vpop.f32.mrb[0].mxu0
        %3327 = vmatprep.mubr.bf16.mxu0 0
        %3328 = vmatmul.mubr.bf16.gmra.mrb[0].mxu0 %v3180
        %v3329 = vpop.f32.mrb[0].mxu0
        %v3330 = vadd.f32 0.0, %v3329
        %v3331 = vpop.f32.mrb[0].mxu0
        %v3332 = vpop.f32.mrb[0].mxu0
        %v3333 = vadd.f32 0.0, %v3332
        %v3334 = vpop.f32.mrb[0].mxu0
        %3335 = vmatprep.mubr.bf16.mxu0 0
        %3336 = vmatmul.mubr.bf16.gmra.mrb[0].mxu0 %v3183
        %v3337 = vpop.f32.mrb[0].mxu0
        %v3338 = vadd.f32 0.0, %v3337
        %v3339 = vpop.f32.mrb[0].mxu0
        %v3340 = vpop.f32.mrb[0].mxu0
        %v3341 = vadd.f32 0.0, %v3340
        %v3342 = vpop.f32.mrb[0].mxu0
        %3343 = vmatprep.mubr.bf16.mxu0 0
        %3344 = vmatmul.mubr.bf16.gmra.mrb[0].mxu0 %v3186
        %v3345 = vpop.f32.mrb[0].mxu0
        %v3346 = vadd.f32 0.0, %v3345
        %v3347 = vpop.f32.mrb[0].mxu0
        %v3348 = vpop.f32.mrb[0].mxu0
        %v3349 = vadd.f32 0.0, %v3348
        %v3350 = vpop.f32.mrb[0].mxu0
        %3351 = vdwg.mxu0
        %v3352 = vadd.f32 %v2882, %v3226
        %v3353 = vadd.f32 %v2883, %v3229
        %v3354 = vadd.f32 %v2884, %v3234
        %v3355 = vadd.f32 %v2885, %v3237
        %v3356 = vadd.f32 %v2886, %v3242
        %v3357 = vadd.f32 %v2887, %v3245
        %v3358 = vadd.f32 %v2888, %v3250
        %v3359 = vadd.f32 %v2889, %v3253
        %v3360 = vadd.f32 %v2890, %v3258
        %v3361 = vadd.f32 %v2891, %v3261
        %v3362 = vadd.f32 %v2892, %v3266
        %v3363 = vadd.f32 %v2893, %v3269
        %v3364 = vadd.f32 %v2894, %v3274
        %v3365 = vadd.f32 %v2895, %v3277
        %v3366 = vadd.f32 %v2896, %v3282
        %v3367 = vadd.f32 %v2897, %v3285
        %v3368 = vadd.f32 %v2898, %v3290
        %v3369 = vadd.f32 %v2899, %v3293
        %v3370 = vadd.f32 %v2900, %v3298
        %v3371 = vadd.f32 %v2901, %v3301
        %v3372 = vadd.f32 %v2902, %v3306
        %v3373 = vadd.f32 %v2903, %v3309
        %v3374 = vadd.f32 %v2904, %v3314
        %v3375 = vadd.f32 %v2905, %v3317
        %v3376 = vadd.f32 %v2906, %v3322
        %v3377 = vadd.f32 %v2907, %v3325
        %v3378 = vadd.f32 %v2908, %v3330
        %v3379 = vadd.f32 %v2909, %v3333
        %v3380 = vadd.f32 %v2910, %v3338
        %v3381 = vadd.f32 %v2911, %v3341
        %v3382 = vadd.f32 %v2912, %v3346
        %v3383 = vadd.f32 %v2913, %v3349
        %s3384 = scalar_lea.vmem %s372, 24
        %v3385 = vld [vmem:[%s3384] sm:$0xf]
        %v3386 = vld [vmem:[%s3384 + $0x4] sm:$0xf]
        %v3387 = vld [vmem:[%s3384 + $0xc] sm:$0xf]
        %v3388 = vld [vmem:[%s3384 + $0x10] sm:$0xf]
        %v3389 = vld [vmem:[%s3384 + $0x18] sm:$0xf]
        %v3390 = vld [vmem:[%s3384 + $0x1c] sm:$0xf]
        %v3391 = vld [vmem:[%s3384 + $0x24] sm:$0xf]
        %v3392 = vld [vmem:[%s3384 + $0x28] sm:$0xf]
        %v3393 = vld [vmem:[%s3384 + $0x30] sm:$0xf]
        %v3394 = vld [vmem:[%s3384 + $0x34] sm:$0xf]
        %v3395 = vld [vmem:[%s3384 + $0x3c] sm:$0xf]
        %v3396 = vld [vmem:[%s3384 + $0x40] sm:$0xf]
        %v3397 = vld [vmem:[%s3384 + $0x48] sm:$0xf]
        %v3398 = vld [vmem:[%s3384 + $0x4c] sm:$0xf]
        %v3399 = vld [vmem:[%s3384 + $0x54] sm:$0xf]
        %v3400 = vld [vmem:[%s3384 + $0x58] sm:$0xf]
        %v3401 = vld [vmem:[%s3384 + $0x60] sm:$0xf]
        %v3402 = vld [vmem:[%s3384 + $0x64] sm:$0xf]
        %v3403 = vld [vmem:[%s3384 + $0x6c] sm:$0xf]
        %v3404 = vld [vmem:[%s3384 + $0x70] sm:$0xf]
        %v3405 = vld [vmem:[%s3384 + $0x78] sm:$0xf]
        %v3406 = vld [vmem:[%s3384 + $0x7c] sm:$0xf]
        %v3407 = vld [vmem:[%s3384 + $0x84] sm:$0xf]
        %v3408 = vld [vmem:[%s3384 + $0x88] sm:$0xf]
        %v3409 = vld [vmem:[%s3384 + $0x90] sm:$0xf]
        %v3410 = vld [vmem:[%s3384 + $0x94] sm:$0xf]
        %v3411 = vld [vmem:[%s3384 + $0x9c] sm:$0xf]
        %v3412 = vld [vmem:[%s3384 + $0xa0] sm:$0xf]
        %v3413 = vld [vmem:[%s3384 + $0xa8] sm:$0xf]
        %v3414 = vld [vmem:[%s3384 + $0xac] sm:$0xf]
        %v3415 = vld [vmem:[%s3384 + $0xb4] sm:$0xf]
        %v3416 = vld [vmem:[%s3384 + $0xb8] sm:$0xf]
        %s3417 = scalar_lea.vmem %s1, 12
        %v3418 = vld [vmem:[%s3417] sm:$0x3]
        %v3451 = vunpack.c.l.b16 %v3385
        %v3452 = vunpack.c.l.b16 %v3386
        %v3453 = vunpack.c.l.b16 %v3387
        %v3454 = vunpack.c.l.b16 %v3388
        %v3455 = vunpack.c.l.b16 %v3389
        %v3456 = vunpack.c.l.b16 %v3390
        %v3457 = vunpack.c.l.b16 %v3391
        %v3458 = vunpack.c.l.b16 %v3392
        %v3459 = vunpack.c.l.b16 %v3393
        %v3460 = vunpack.c.l.b16 %v3394
        %v3461 = vunpack.c.l.b16 %v3395
        %v3462 = vunpack.c.l.b16 %v3396
        %v3463 = vunpack.c.l.b16 %v3397
        %v3464 = vunpack.c.l.b16 %v3398
        %v3465 = vunpack.c.l.b16 %v3399
        %v3466 = vunpack.c.l.b16 %v3400
        %v3467 = vunpack.c.l.b16 %v3401
        %v3468 = vunpack.c.l.b16 %v3402
        %v3469 = vunpack.c.l.b16 %v3403
        %v3470 = vunpack.c.l.b16 %v3404
        %v3471 = vunpack.c.l.b16 %v3405
        %v3472 = vunpack.c.l.b16 %v3406
        %v3473 = vunpack.c.l.b16 %v3407
        %v3474 = vunpack.c.l.b16 %v3408
        %v3475 = vunpack.c.l.b16 %v3409
        %v3476 = vunpack.c.l.b16 %v3410
        %v3477 = vunpack.c.l.b16 %v3411
        %v3478 = vunpack.c.l.b16 %v3412
        %v3479 = vunpack.c.l.b16 %v3413
        %v3480 = vunpack.c.l.b16 %v3414
        %v3481 = vunpack.c.l.b16 %v3415
        %v3482 = vunpack.c.l.b16 %v3416
        %v3483 = vpack.c.b16 %v3452, %v3451
        %v3484 = vpack.c.b16 %v3454, %v3453
        %v3485 = vpack.c.b16 %v3456, %v3455
        %v3486 = vpack.c.b16 %v3458, %v3457
        %v3487 = vpack.c.b16 %v3460, %v3459
        %v3488 = vpack.c.b16 %v3462, %v3461
        %v3489 = vpack.c.b16 %v3464, %v3463
        %v3490 = vpack.c.b16 %v3466, %v3465
        %v3491 = vpack.c.b16 %v3468, %v3467
        %v3492 = vpack.c.b16 %v3470, %v3469
        %v3493 = vpack.c.b16 %v3472, %v3471
        %v3494 = vpack.c.b16 %v3474, %v3473
        %v3495 = vpack.c.b16 %v3476, %v3475
        %v3496 = vpack.c.b16 %v3478, %v3477
        %v3497 = vpack.c.b16 %v3480, %v3479
        %v3498 = vpack.c.b16 %v3482, %v3481
        %v3500 = vsel %vm866, %v3483, 0
        %v3503 = vsel %vm866, %v3484, 0
        %v3506 = vsel %vm866, %v3485, 0
        %v3509 = vsel %vm866, %v3486, 0
        %v3512 = vsel %vm866, %v3487, 0
        %v3515 = vsel %vm866, %v3488, 0
        %v3518 = vsel %vm866, %v3489, 0
        %v3521 = vsel %vm866, %v3490, 0
        %v3524 = vsel %vm866, %v3491, 0
        %v3527 = vsel %vm866, %v3492, 0
        %v3530 = vsel %vm866, %v3493, 0
        %v3533 = vsel %vm866, %v3494, 0
        %v3536 = vsel %vm866, %v3495, 0
        %v3539 = vsel %vm866, %v3496, 0
        %v3542 = vsel %vm866, %v3497, 0
        %v3545 = vsel %vm866, %v3498, 0
        %v3548 = vsel %vm915, %v3418, 0
        %3550 = vmatprep.subr.bf16.mxu0 0
        %3551 = vmatpush1.bf16.msra.mxu0 %v3548
        %3552 = vmatprep.subr.bf16.mxu0 0
        %3553 = vmatpush1.bf16.msra.mxu0 0
        %3554 = vmatprep.subr.bf16.mxu0 0
        %3555 = vmatpush1.bf16.msra.mxu0 0
        %3556 = vmatprep.subr.bf16.mxu0 0
        %3557 = vmatpush1.bf16.msra.mxu0 0
        %3558 = vmatprep.subr.bf16.mxu0 0
        %3559 = vmatpush1.bf16.msra.mxu0 0
        %3560 = vmatprep.subr.bf16.mxu0 0
        %3561 = vmatpush1.bf16.msra.mxu0 0
        %3562 = vmatprep.subr.bf16.mxu0 0
        %3563 = vmatpush1.bf16.msra.mxu0 0
        %3564 = vmatprep.subr.bf16.mxu0 0
        %3565 = vmatpush1.bf16.msra.mxu0 0
        %3566 = vmatprep.subr.bf16.mxu0 0
        %3567 = vmatpush1.bf16.msra.mxu0 0
        %3568 = vmatprep.subr.bf16.mxu0 0
        %3569 = vmatpush1.bf16.msra.mxu0 0
        %3570 = vmatprep.subr.bf16.mxu0 0
        %3571 = vmatpush1.bf16.msra.mxu0 0
        %3572 = vmatprep.subr.bf16.mxu0 0
        %3573 = vmatpush1.bf16.msra.mxu0 0
        %3574 = vmatprep.subr.bf16.mxu0 0
        %3575 = vmatpush1.bf16.msra.mxu0 0
        %3576 = vmatprep.subr.bf16.mxu0 0
        %3577 = vmatpush1.bf16.msra.mxu0 0
        %3578 = vmatprep.subr.bf16.mxu0 0
        %3579 = vmatpush1.bf16.msra.mxu0 0
        %3580 = vmatprep.subr.bf16.mxu0 0
        %3581 = vmatpush1.bf16.msra.mxu0 0
        %3582 = vmatprep.mubr.bf16.mxu0 0
        %3583 = vmatmul.mubr.bf16.gmra.mrb[0].mxu0 %v3500
        %v3584 = vpop.f32.mrb[0].mxu0
        %v3585 = vadd.f32 0.0, %v3584
        %v3586 = vpop.f32.mrb[0].mxu0
        %v3587 = vpop.f32.mrb[0].mxu0
        %v3588 = vadd.f32 0.0, %v3587
        %v3589 = vpop.f32.mrb[0].mxu0
        %3590 = vmatprep.mubr.bf16.mxu0 0
        %3591 = vmatmul.mubr.bf16.gmra.mrb[0].mxu0 %v3503
        %v3592 = vpop.f32.mrb[0].mxu0
        %v3593 = vadd.f32 0.0, %v3592
        %v3594 = vpop.f32.mrb[0].mxu0
        %v3595 = vpop.f32.mrb[0].mxu0
        %v3596 = vadd.f32 0.0, %v3595
        %v3597 = vpop.f32.mrb[0].mxu0
        %3598 = vmatprep.mubr.bf16.mxu0 0
        %3599 = vmatmul.mubr.bf16.gmra.mrb[0].mxu0 %v3506
        %v3600 = vpop.f32.mrb[0].mxu0
        %v3601 = vadd.f32 0.0, %v3600
        %v3602 = vpop.f32.mrb[0].mxu0
        %v3603 = vpop.f32.mrb[0].mxu0
        %v3604 = vadd.f32 0.0, %v3603
        %v3605 = vpop.f32.mrb[0].mxu0
        %3606 = vmatprep.mubr.bf16.mxu0 0
        %3607 = vmatmul.mubr.bf16.gmra.mrb[0].mxu0 %v3509
        %v3608 = vpop.f32.mrb[0].mxu0
        %v3609 = vadd.f32 0.0, %v3608
        %v3610 = vpop.f32.mrb[0].mxu0
        %v3611 = vpop.f32.mrb[0].mxu0
        %v3612 = vadd.f32 0.0, %v3611
        %v3613 = vpop.f32.mrb[0].mxu0
        %3614 = vmatprep.mubr.bf16.mxu0 0
        %3615 = vmatmul.mubr.bf16.gmra.mrb[0].mxu0 %v3512
        %v3616 = vpop.f32.mrb[0].mxu0
        %v3617 = vadd.f32 0.0, %v3616
        %v3618 = vpop.f32.mrb[0].mxu0
        %v3619 = vpop.f32.mrb[0].mxu0
        %v3620 = vadd.f32 0.0, %v3619
        %v3621 = vpop.f32.mrb[0].mxu0
        %3622 = vmatprep.mubr.bf16.mxu0 0
        %3623 = vmatmul.mubr.bf16.gmra.mrb[0].mxu0 %v3515
        %v3624 = vpop.f32.mrb[0].mxu0
        %v3625 = vadd.f32 0.0, %v3624
        %v3626 = vpop.f32.mrb[0].mxu0
        %v3627 = vpop.f32.mrb[0].mxu0
        %v3628 = vadd.f32 0.0, %v3627
        %v3629 = vpop.f32.mrb[0].mxu0
        %3630 = vmatprep.mubr.bf16.mxu0 0
        %3631 = vmatmul.mubr.bf16.gmra.mrb[0].mxu0 %v3518
        %v3632 = vpop.f32.mrb[0].mxu0
        %v3633 = vadd.f32 0.0, %v3632
        %v3634 = vpop.f32.mrb[0].mxu0
        %v3635 = vpop.f32.mrb[0].mxu0
        %v3636 = vadd.f32 0.0, %v3635
        %v3637 = vpop.f32.mrb[0].mxu0
        %3638 = vmatprep.mubr.bf16.mxu0 0
        %3639 = vmatmul.mubr.bf16.gmra.mrb[0].mxu0 %v3521
        %v3640 = vpop.f32.mrb[0].mxu0
        %v3641 = vadd.f32 0.0, %v3640
        %v3642 = vpop.f32.mrb[0].mxu0
        %v3643 = vpop.f32.mrb[0].mxu0
        %v3644 = vadd.f32 0.0, %v3643
        %v3645 = vpop.f32.mrb[0].mxu0
        %3646 = vmatprep.mubr.bf16.mxu0 0
        %3647 = vmatmul.mubr.bf16.gmra.mrb[0].mxu0 %v3524
        %v3648 = vpop.f32.mrb[0].mxu0
        %v3649 = vadd.f32 0.0, %v3648
        %v3650 = vpop.f32.mrb[0].mxu0
        %v3651 = vpop.f32.mrb[0].mxu0
        %v3652 = vadd.f32 0.0, %v3651
        %v3653 = vpop.f32.mrb[0].mxu0
        %3654 = vmatprep.mubr.bf16.mxu0 0
        %3655 = vmatmul.mubr.bf16.gmra.mrb[0].mxu0 %v3527
        %v3656 = vpop.f32.mrb[0].mxu0
        %v3657 = vadd.f32 0.0, %v3656
        %v3658 = vpop.f32.mrb[0].mxu0
        %v3659 = vpop.f32.mrb[0].mxu0
        %v3660 = vadd.f32 0.0, %v3659
        %v3661 = vpop.f32.mrb[0].mxu0
        %3662 = vmatprep.mubr.bf16.mxu0 0
        %3663 = vmatmul.mubr.bf16.gmra.mrb[0].mxu0 %v3530
        %v3664 = vpop.f32.mrb[0].mxu0
        %v3665 = vadd.f32 0.0, %v3664
        %v3666 = vpop.f32.mrb[0].mxu0
        %v3667 = vpop.f32.mrb[0].mxu0
        %v3668 = vadd.f32 0.0, %v3667
        %v3669 = vpop.f32.mrb[0].mxu0
        %3670 = vmatprep.mubr.bf16.mxu0 0
        %3671 = vmatmul.mubr.bf16.gmra.mrb[0].mxu0 %v3533
        %v3672 = vpop.f32.mrb[0].mxu0
        %v3673 = vadd.f32 0.0, %v3672
        %v3674 = vpop.f32.mrb[0].mxu0
        %v3675 = vpop.f32.mrb[0].mxu0
        %v3676 = vadd.f32 0.0, %v3675
        %v3677 = vpop.f32.mrb[0].mxu0
        %3678 = vmatprep.mubr.bf16.mxu0 0
        %3679 = vmatmul.mubr.bf16.gmra.mrb[0].mxu0 %v3536
        %v3680 = vpop.f32.mrb[0].mxu0
        %v3681 = vadd.f32 0.0, %v3680
        %v3682 = vpop.f32.mrb[0].mxu0
        %v3683 = vpop.f32.mrb[0].mxu0
        %v3684 = vadd.f32 0.0, %v3683
        %v3685 = vpop.f32.mrb[0].mxu0
        %3686 = vmatprep.mubr.bf16.mxu0 0
        %3687 = vmatmul.mubr.bf16.gmra.mrb[0].mxu0 %v3539
        %v3688 = vpop.f32.mrb[0].mxu0
        %v3689 = vadd.f32 0.0, %v3688
        %v3690 = vpop.f32.mrb[0].mxu0
        %v3691 = vpop.f32.mrb[0].mxu0
        %v3692 = vadd.f32 0.0, %v3691
        %v3693 = vpop.f32.mrb[0].mxu0
        %3694 = vmatprep.mubr.bf16.mxu0 0
        %3695 = vmatmul.mubr.bf16.gmra.mrb[0].mxu0 %v3542
        %v3696 = vpop.f32.mrb[0].mxu0
        %v3697 = vadd.f32 0.0, %v3696
        %v3698 = vpop.f32.mrb[0].mxu0
        %v3699 = vpop.f32.mrb[0].mxu0
        %v3700 = vadd.f32 0.0, %v3699
        %v3701 = vpop.f32.mrb[0].mxu0
        %3702 = vmatprep.mubr.bf16.mxu0 0
        %3703 = vmatmul.mubr.bf16.gmra.mrb[0].mxu0 %v3545
        %v3704 = vpop.f32.mrb[0].mxu0
        %v3705 = vadd.f32 0.0, %v3704
        %v3706 = vpop.f32.mrb[0].mxu0
        %v3707 = vpop.f32.mrb[0].mxu0
        %v3708 = vadd.f32 0.0, %v3707
        %v3709 = vpop.f32.mrb[0].mxu0
        %3710 = vdwg.mxu0
        %v3711 = vadd.f32 %v3352, %v3585
        %v3712 = vadd.f32 %v3353, %v3588
        %v3713 = vadd.f32 %v3354, %v3593
        %v3714 = vadd.f32 %v3355, %v3596
        %v3715 = vadd.f32 %v3356, %v3601
        %v3716 = vadd.f32 %v3357, %v3604
        %v3717 = vadd.f32 %v3358, %v3609
        %v3718 = vadd.f32 %v3359, %v3612
        %v3719 = vadd.f32 %v3360, %v3617
        %v3720 = vadd.f32 %v3361, %v3620
        %v3721 = vadd.f32 %v3362, %v3625
        %v3722 = vadd.f32 %v3363, %v3628
        %v3723 = vadd.f32 %v3364, %v3633
        %v3724 = vadd.f32 %v3365, %v3636
        %v3725 = vadd.f32 %v3366, %v3641
        %v3726 = vadd.f32 %v3367, %v3644
        %v3727 = vadd.f32 %v3368, %v3649
        %v3728 = vadd.f32 %v3369, %v3652
        %v3729 = vadd.f32 %v3370, %v3657
        %v3730 = vadd.f32 %v3371, %v3660
        %v3731 = vadd.f32 %v3372, %v3665
        %v3732 = vadd.f32 %v3373, %v3668
        %v3733 = vadd.f32 %v3374, %v3673
        %v3734 = vadd.f32 %v3375, %v3676
        %v3735 = vadd.f32 %v3376, %v3681
        %v3736 = vadd.f32 %v3377, %v3684
        %v3737 = vadd.f32 %v3378, %v3689
        %v3738 = vadd.f32 %v3379, %v3692
        %v3739 = vadd.f32 %v3380, %v3697
        %v3740 = vadd.f32 %v3381, %v3700
        %v3741 = vadd.f32 %v3382, %v3705
        %v3742 = vadd.f32 %v3383, %v3708
        %v3743 = vld [vmem:[%s3384] sm:$0xf]
        %v3744 = vld [vmem:[%s3384 + $0x4] sm:$0xf]
        %v3745 = vld [vmem:[%s3384 + $0x8] sm:$0x1]
        %v3746 = vld [vmem:[%s3384 + $0xc] sm:$0xf]
        %v3747 = vld [vmem:[%s3384 + $0x10] sm:$0xf]
        %v3748 = vld [vmem:[%s3384 + $0x14] sm:$0x1]
        %v3749 = vld [vmem:[%s3384 + $0x18] sm:$0xf]
        %v3750 = vld [vmem:[%s3384 + $0x1c] sm:$0xf]
        %v3751 = vld [vmem:[%s3384 + $0x20] sm:$0x1]
        %v3752 = vld [vmem:[%s3384 + $0x24] sm:$0xf]
        %v3753 = vld [vmem:[%s3384 + $0x28] sm:$0xf]
        %v3754 = vld [vmem:[%s3384 + $0x2c] sm:$0x1]
        %v3755 = vld [vmem:[%s3384 + $0x30] sm:$0xf]
        %v3756 = vld [vmem:[%s3384 + $0x34] sm:$0xf]
        %v3757 = vld [vmem:[%s3384 + $0x38] sm:$0x1]
        %v3758 = vld [vmem:[%s3384 + $0x3c] sm:$0xf]
        %v3759 = vld [vmem:[%s3384 + $0x40] sm:$0xf]
        %v3760 = vld [vmem:[%s3384 + $0x44] sm:$0x1]
        %v3761 = vld [vmem:[%s3384 + $0x48] sm:$0xf]
        %v3762 = vld [vmem:[%s3384 + $0x4c] sm:$0xf]
        %v3763 = vld [vmem:[%s3384 + $0x50] sm:$0x1]
        %v3764 = vld [vmem:[%s3384 + $0x54] sm:$0xf]
        %v3765 = vld [vmem:[%s3384 + $0x58] sm:$0xf]
        %v3766 = vld [vmem:[%s3384 + $0x5c] sm:$0x1]
        %v3767 = vld [vmem:[%s3384 + $0x60] sm:$0xf]
        %v3768 = vld [vmem:[%s3384 + $0x64] sm:$0xf]
        %v3769 = vld [vmem:[%s3384 + $0x68] sm:$0x1]
        %v3770 = vld [vmem:[%s3384 + $0x6c] sm:$0xf]
        %v3771 = vld [vmem:[%s3384 + $0x70] sm:$0xf]
        %v3772 = vld [vmem:[%s3384 + $0x74] sm:$0x1]
        %v3773 = vld [vmem:[%s3384 + $0x78] sm:$0xf]
        %v3774 = vld [vmem:[%s3384 + $0x7c] sm:$0xf]
        %v3775 = vld [vmem:[%s3384 + $0x80] sm:$0x1]
        %v3776 = vld [vmem:[%s3384 + $0x84] sm:$0xf]
        %v3777 = vld [vmem:[%s3384 + $0x88] sm:$0xf]
        %v3778 = vld [vmem:[%s3384 + $0x8c] sm:$0x1]
        %v3779 = vld [vmem:[%s3384 + $0x90] sm:$0xf]
        %v3780 = vld [vmem:[%s3384 + $0x94] sm:$0xf]
        %v3781 = vld [vmem:[%s3384 + $0x98] sm:$0x1]
        %v3782 = vld [vmem:[%s3384 + $0x9c] sm:$0xf]
        %v3783 = vld [vmem:[%s3384 + $0xa0] sm:$0xf]
        %v3784 = vld [vmem:[%s3384 + $0xa4] sm:$0x1]
        %v3785 = vld [vmem:[%s3384 + $0xa8] sm:$0xf]
        %v3786 = vld [vmem:[%s3384 + $0xac] sm:$0xf]
        %v3787 = vld [vmem:[%s3384 + $0xb0] sm:$0x1]
        %v3788 = vld [vmem:[%s3384 + $0xb4] sm:$0xf]
        %v3789 = vld [vmem:[%s3384 + $0xb8] sm:$0xf]
        %v3790 = vld [vmem:[%s3384 + $0xbc] sm:$0x1]
        %v3792 = vshrl.u32 %v3743, 16
        %v3794 = vrot.slane %v3792, 4
        %v3795 = vshll.u32 %v3743, 16
        %v3797 = vrot.slane %v3795, 5
        %v3798 = vor.u32 %v3794, %v3797
        %v3799 = vrot.slane %v3798, 4
        %v3801 = vshll.u32 %v3744, 16
        %v3803 = vrot.slane %v3801, 5
        %v3804 = vsel %vm431, %v3799, %v3803
        %v3805 = vshrl.u32 %v3744, 16
        %v3807 = vrot.slane %v3805, 4
        %v3808 = vor.u32 %v3807, %v3803
        %v3809 = vrot.slane %v3808, 4
        %v3811 = vshll.u32 %v3745, 16
        %v3813 = vrot.slane %v3811, 5
        %v3814 = vsel %vm431, %v3809, %v3813
        %v3816 = vshrl.u32 %v3746, 16
        %v3818 = vrot.slane %v3816, 4
        %v3819 = vshll.u32 %v3746, 16
        %v3821 = vrot.slane %v3819, 5
        %v3822 = vor.u32 %v3818, %v3821
        %v3823 = vrot.slane %v3822, 4
        %v3825 = vshll.u32 %v3747, 16
        %v3827 = vrot.slane %v3825, 5
        %v3828 = vsel %vm431, %v3823, %v3827
        %v3829 = vshrl.u32 %v3747, 16
        %v3831 = vrot.slane %v3829, 4
        %v3832 = vor.u32 %v3831, %v3827
        %v3833 = vrot.slane %v3832, 4
        %v3835 = vshll.u32 %v3748, 16
        %v3837 = vrot.slane %v3835, 5
        %v3838 = vsel %vm431, %v3833, %v3837
        %v3840 = vshrl.u32 %v3749, 16
        %v3842 = vrot.slane %v3840, 4
        %v3843 = vshll.u32 %v3749, 16
        %v3845 = vrot.slane %v3843, 5
        %v3846 = vor.u32 %v3842, %v3845
        %v3847 = vrot.slane %v3846, 4
        %v3849 = vshll.u32 %v3750, 16
        %v3851 = vrot.slane %v3849, 5
        %v3852 = vsel %vm431, %v3847, %v3851
        %v3853 = vshrl.u32 %v3750, 16
        %v3855 = vrot.slane %v3853, 4
        %v3856 = vor.u32 %v3855, %v3851
        %v3857 = vrot.slane %v3856, 4
        %v3859 = vshll.u32 %v3751, 16
        %v3861 = vrot.slane %v3859, 5
        %v3862 = vsel %vm431, %v3857, %v3861
        %v3864 = vshrl.u32 %v3752, 16
        %v3866 = vrot.slane %v3864, 4
        %v3867 = vshll.u32 %v3752, 16
        %v3869 = vrot.slane %v3867, 5
        %v3870 = vor.u32 %v3866, %v3869
        %v3871 = vrot.slane %v3870, 4
        %v3873 = vshll.u32 %v3753, 16
        %v3875 = vrot.slane %v3873, 5
        %v3876 = vsel %vm431, %v3871, %v3875
        %v3877 = vshrl.u32 %v3753, 16
        %v3879 = vrot.slane %v3877, 4
        %v3880 = vor.u32 %v3879, %v3875
        %v3881 = vrot.slane %v3880, 4
        %v3883 = vshll.u32 %v3754, 16
        %v3885 = vrot.slane %v3883, 5
        %v3886 = vsel %vm431, %v3881, %v3885
        %v3888 = vshrl.u32 %v3755, 16
        %v3890 = vrot.slane %v3888, 4
        %v3891 = vshll.u32 %v3755, 16
        %v3893 = vrot.slane %v3891, 5
        %v3894 = vor.u32 %v3890, %v3893
        %v3895 = vrot.slane %v3894, 4
        %v3897 = vshll.u32 %v3756, 16
        %v3899 = vrot.slane %v3897, 5
        %v3900 = vsel %vm431, %v3895, %v3899
        %v3901 = vshrl.u32 %v3756, 16
        %v3903 = vrot.slane %v3901, 4
        %v3904 = vor.u32 %v3903, %v3899
        %v3905 = vrot.slane %v3904, 4
        %v3907 = vshll.u32 %v3757, 16
        %v3909 = vrot.slane %v3907, 5
        %v3910 = vsel %vm431, %v3905, %v3909
        %v3912 = vshrl.u32 %v3758, 16
        %v3914 = vrot.slane %v3912, 4
        %v3915 = vshll.u32 %v3758, 16
        %v3917 = vrot.slane %v3915, 5
        %v3918 = vor.u32 %v3914, %v3917
        %v3919 = vrot.slane %v3918, 4
        %v3921 = vshll.u32 %v3759, 16
        %v3923 = vrot.slane %v3921, 5
        %v3924 = vsel %vm431, %v3919, %v3923
        %v3925 = vshrl.u32 %v3759, 16
        %v3927 = vrot.slane %v3925, 4
        %v3928 = vor.u32 %v3927, %v3923
        %v3929 = vrot.slane %v3928, 4
        %v3931 = vshll.u32 %v3760, 16
        %v3933 = vrot.slane %v3931, 5
        %v3934 = vsel %vm431, %v3929, %v3933
        %v3936 = vshrl.u32 %v3761, 16
        %v3938 = vrot.slane %v3936, 4
        %v3939 = vshll.u32 %v3761, 16
        %v3941 = vrot.slane %v3939, 5
        %v3942 = vor.u32 %v3938, %v3941
        %v3943 = vrot.slane %v3942, 4
        %v3945 = vshll.u32 %v3762, 16
        %v3947 = vrot.slane %v3945, 5
        %v3948 = vsel %vm431, %v3943, %v3947
        %v3949 = vshrl.u32 %v3762, 16
        %v3951 = vrot.slane %v3949, 4
        %v3952 = vor.u32 %v3951, %v3947
        %v3953 = vrot.slane %v3952, 4
        %v3955 = vshll.u32 %v3763, 16
        %v3957 = vrot.slane %v3955, 5
        %v3958 = vsel %vm431, %v3953, %v3957
        %v3960 = vshrl.u32 %v3764, 16
        %v3962 = vrot.slane %v3960, 4
        %v3963 = vshll.u32 %v3764, 16
        %v3965 = vrot.slane %v3963, 5
        %v3966 = vor.u32 %v3962, %v3965
        %v3967 = vrot.slane %v3966, 4
        %v3969 = vshll.u32 %v3765, 16
        %v3971 = vrot.slane %v3969, 5
        %v3972 = vsel %vm431, %v3967, %v3971
        %v3973 = vshrl.u32 %v3765, 16
        %v3975 = vrot.slane %v3973, 4
        %v3976 = vor.u32 %v3975, %v3971
        %v3977 = vrot.slane %v3976, 4
        %v3979 = vshll.u32 %v3766, 16
        %v3981 = vrot.slane %v3979, 5
        %v3982 = vsel %vm431, %v3977, %v3981
        %v3984 = vshrl.u32 %v3767, 16
        %v3986 = vrot.slane %v3984, 4
        %v3987 = vshll.u32 %v3767, 16
        %v3989 = vrot.slane %v3987, 5
        %v3990 = vor.u32 %v3986, %v3989
        %v3991 = vrot.slane %v3990, 4
        %v3993 = vshll.u32 %v3768, 16
        %v3995 = vrot.slane %v3993, 5
        %v3996 = vsel %vm431, %v3991, %v3995
        %v3997 = vshrl.u32 %v3768, 16
        %v3999 = vrot.slane %v3997, 4
        %v4000 = vor.u32 %v3999, %v3995
        %v4001 = vrot.slane %v4000, 4
        %v4003 = vshll.u32 %v3769, 16
        %v4005 = vrot.slane %v4003, 5
        %v4006 = vsel %vm431, %v4001, %v4005
        %v4008 = vshrl.u32 %v3770, 16
        %v4010 = vrot.slane %v4008, 4
        %v4011 = vshll.u32 %v3770, 16
        %v4013 = vrot.slane %v4011, 5
        %v4014 = vor.u32 %v4010, %v4013
        %v4015 = vrot.slane %v4014, 4
        %v4017 = vshll.u32 %v3771, 16
        %v4019 = vrot.slane %v4017, 5
        %v4020 = vsel %vm431, %v4015, %v4019
        %v4021 = vshrl.u32 %v3771, 16
        %v4023 = vrot.slane %v4021, 4
        %v4024 = vor.u32 %v4023, %v4019
        %v4025 = vrot.slane %v4024, 4
        %v4027 = vshll.u32 %v3772, 16
        %v4029 = vrot.slane %v4027, 5
        %v4030 = vsel %vm431, %v4025, %v4029
        %v4032 = vshrl.u32 %v3773, 16
        %v4034 = vrot.slane %v4032, 4
        %v4035 = vshll.u32 %v3773, 16
        %v4037 = vrot.slane %v4035, 5
        %v4038 = vor.u32 %v4034, %v4037
        %v4039 = vrot.slane %v4038, 4
        %v4041 = vshll.u32 %v3774, 16
        %v4043 = vrot.slane %v4041, 5
        %v4044 = vsel %vm431, %v4039, %v4043
        %v4045 = vshrl.u32 %v3774, 16
        %v4047 = vrot.slane %v4045, 4
        %v4048 = vor.u32 %v4047, %v4043
        %v4049 = vrot.slane %v4048, 4
        %v4051 = vshll.u32 %v3775, 16
        %v4053 = vrot.slane %v4051, 5
        %v4054 = vsel %vm431, %v4049, %v4053
        %v4056 = vshrl.u32 %v3776, 16
        %v4058 = vrot.slane %v4056, 4
        %v4059 = vshll.u32 %v3776, 16
        %v4061 = vrot.slane %v4059, 5
        %v4062 = vor.u32 %v4058, %v4061
        %v4063 = vrot.slane %v4062, 4
        %v4065 = vshll.u32 %v3777, 16
        %v4067 = vrot.slane %v4065, 5
        %v4068 = vsel %vm431, %v4063, %v4067
        %v4069 = vshrl.u32 %v3777, 16
        %v4071 = vrot.slane %v4069, 4
        %v4072 = vor.u32 %v4071, %v4067
        %v4073 = vrot.slane %v4072, 4
        %v4075 = vshll.u32 %v3778, 16
        %v4077 = vrot.slane %v4075, 5
        %v4078 = vsel %vm431, %v4073, %v4077
        %v4080 = vshrl.u32 %v3779, 16
        %v4082 = vrot.slane %v4080, 4
        %v4083 = vshll.u32 %v3779, 16
        %v4085 = vrot.slane %v4083, 5
        %v4086 = vor.u32 %v4082, %v4085
        %v4087 = vrot.slane %v4086, 4
        %v4089 = vshll.u32 %v3780, 16
        %v4091 = vrot.slane %v4089, 5
        %v4092 = vsel %vm431, %v4087, %v4091
        %v4093 = vshrl.u32 %v3780, 16
        %v4095 = vrot.slane %v4093, 4
        %v4096 = vor.u32 %v4095, %v4091
        %v4097 = vrot.slane %v4096, 4
        %v4099 = vshll.u32 %v3781, 16
        %v4101 = vrot.slane %v4099, 5
        %v4102 = vsel %vm431, %v4097, %v4101
        %v4104 = vshrl.u32 %v3782, 16
        %v4106 = vrot.slane %v4104, 4
        %v4107 = vshll.u32 %v3782, 16
        %v4109 = vrot.slane %v4107, 5
        %v4110 = vor.u32 %v4106, %v4109
        %v4111 = vrot.slane %v4110, 4
        %v4113 = vshll.u32 %v3783, 16
        %v4115 = vrot.slane %v4113, 5
        %v4116 = vsel %vm431, %v4111, %v4115
        %v4117 = vshrl.u32 %v3783, 16
        %v4119 = vrot.slane %v4117, 4
        %v4120 = vor.u32 %v4119, %v4115
        %v4121 = vrot.slane %v4120, 4
        %v4123 = vshll.u32 %v3784, 16
        %v4125 = vrot.slane %v4123, 5
        %v4126 = vsel %vm431, %v4121, %v4125
        %v4128 = vshrl.u32 %v3785, 16
        %v4130 = vrot.slane %v4128, 4
        %v4131 = vshll.u32 %v3785, 16
        %v4133 = vrot.slane %v4131, 5
        %v4134 = vor.u32 %v4130, %v4133
        %v4135 = vrot.slane %v4134, 4
        %v4137 = vshll.u32 %v3786, 16
        %v4139 = vrot.slane %v4137, 5
        %v4140 = vsel %vm431, %v4135, %v4139
        %v4141 = vshrl.u32 %v3786, 16
        %v4143 = vrot.slane %v4141, 4
        %v4144 = vor.u32 %v4143, %v4139
        %v4145 = vrot.slane %v4144, 4
        %v4147 = vshll.u32 %v3787, 16
        %v4149 = vrot.slane %v4147, 5
        %v4150 = vsel %vm431, %v4145, %v4149
        %v4152 = vshrl.u32 %v3788, 16
        %v4154 = vrot.slane %v4152, 4
        %v4155 = vshll.u32 %v3788, 16
        %v4157 = vrot.slane %v4155, 5
        %v4158 = vor.u32 %v4154, %v4157
        %v4159 = vrot.slane %v4158, 4
        %v4161 = vshll.u32 %v3789, 16
        %v4163 = vrot.slane %v4161, 5
        %v4164 = vsel %vm431, %v4159, %v4163
        %v4165 = vshrl.u32 %v3789, 16
        %v4167 = vrot.slane %v4165, 4
        %v4168 = vor.u32 %v4167, %v4163
        %v4169 = vrot.slane %v4168, 4
        %v4171 = vshll.u32 %v3790, 16
        %v4173 = vrot.slane %v4171, 5
        %v4174 = vsel %vm431, %v4169, %v4173
        %s4175 = scalar_lea.vmem %s1, 14
        %v4176 = vld [vmem:[%s4175] sm:$0x3]
        %v4177 = vunpack.c.l.b16 %v3804
        %v4178 = vunpack.c.l.b16 %v3814
        %v4179 = vunpack.c.l.b16 %v3828
        %v4180 = vunpack.c.l.b16 %v3838
        %v4181 = vunpack.c.l.b16 %v3852
        %v4182 = vunpack.c.l.b16 %v3862
        %v4183 = vunpack.c.l.b16 %v3876
        %v4184 = vunpack.c.l.b16 %v3886
        %v4185 = vunpack.c.l.b16 %v3900
        %v4186 = vunpack.c.l.b16 %v3910
        %v4187 = vunpack.c.l.b16 %v3924
        %v4188 = vunpack.c.l.b16 %v3934
        %v4189 = vunpack.c.l.b16 %v3948
        %v4190 = vunpack.c.l.b16 %v3958
        %v4191 = vunpack.c.l.b16 %v3972
        %v4192 = vunpack.c.l.b16 %v3982
        %v4193 = vunpack.c.l.b16 %v3996
        %v4194 = vunpack.c.l.b16 %v4006
        %v4195 = vunpack.c.l.b16 %v4020
        %v4196 = vunpack.c.l.b16 %v4030
        %v4197 = vunpack.c.l.b16 %v4044
        %v4198 = vunpack.c.l.b16 %v4054
        %v4199 = vunpack.c.l.b16 %v4068
        %v4200 = vunpack.c.l.b16 %v4078
        %v4201 = vunpack.c.l.b16 %v4092
        %v4202 = vunpack.c.l.b16 %v4102
        %v4203 = vunpack.c.l.b16 %v4116
        %v4204 = vunpack.c.l.b16 %v4126
        %v4205 = vunpack.c.l.b16 %v4140
        %v4206 = vunpack.c.l.b16 %v4150
        %v4207 = vunpack.c.l.b16 %v4164
        %v4208 = vunpack.c.l.b16 %v4174
        %v4209 = vpack.c.b16 %v4178, %v4177
        %v4210 = vpack.c.b16 %v4180, %v4179
        %v4211 = vpack.c.b16 %v4182, %v4181
        %v4212 = vpack.c.b16 %v4184, %v4183
        %v4213 = vpack.c.b16 %v4186, %v4185
        %v4214 = vpack.c.b16 %v4188, %v4187
        %v4215 = vpack.c.b16 %v4190, %v4189
        %v4216 = vpack.c.b16 %v4192, %v4191
        %v4217 = vpack.c.b16 %v4194, %v4193
        %v4218 = vpack.c.b16 %v4196, %v4195
        %v4219 = vpack.c.b16 %v4198, %v4197
        %v4220 = vpack.c.b16 %v4200, %v4199
        %v4221 = vpack.c.b16 %v4202, %v4201
        %v4222 = vpack.c.b16 %v4204, %v4203
        %v4223 = vpack.c.b16 %v4206, %v4205
        %v4224 = vpack.c.b16 %v4208, %v4207
        %v4226 = vsel %vm866, %v4209, 0
        %v4229 = vsel %vm866, %v4210, 0
        %v4232 = vsel %vm866, %v4211, 0
        %v4235 = vsel %vm866, %v4212, 0
        %v4238 = vsel %vm866, %v4213, 0
        %v4241 = vsel %vm866, %v4214, 0
        %v4244 = vsel %vm866, %v4215, 0
        %v4247 = vsel %vm866, %v4216, 0
        %v4250 = vsel %vm866, %v4217, 0
        %v4253 = vsel %vm866, %v4218, 0
        %v4256 = vsel %vm866, %v4219, 0
        %v4259 = vsel %vm866, %v4220, 0
        %v4262 = vsel %vm866, %v4221, 0
        %v4265 = vsel %vm866, %v4222, 0
        %v4268 = vsel %vm866, %v4223, 0
        %v4271 = vsel %vm866, %v4224, 0
        %v4274 = vsel %vm915, %v4176, 0
        %4276 = vmatprep.subr.bf16.mxu0 0
        %4277 = vmatpush1.bf16.msra.mxu0 %v4274
        %4278 = vmatprep.subr.bf16.mxu0 0
        %4279 = vmatpush1.bf16.msra.mxu0 0
        %4280 = vmatprep.subr.bf16.mxu0 0
        %4281 = vmatpush1.bf16.msra.mxu0 0
        %4282 = vmatprep.subr.bf16.mxu0 0
        %4283 = vmatpush1.bf16.msra.mxu0 0
        %4284 = vmatprep.subr.bf16.mxu0 0
        %4285 = vmatpush1.bf16.msra.mxu0 0
        %4286 = vmatprep.subr.bf16.mxu0 0
        %4287 = vmatpush1.bf16.msra.mxu0 0
        %4288 = vmatprep.subr.bf16.mxu0 0
        %4289 = vmatpush1.bf16.msra.mxu0 0
        %4290 = vmatprep.subr.bf16.mxu0 0
        %4291 = vmatpush1.bf16.msra.mxu0 0
        %4292 = vmatprep.subr.bf16.mxu0 0
        %4293 = vmatpush1.bf16.msra.mxu0 0
        %4294 = vmatprep.subr.bf16.mxu0 0
        %4295 = vmatpush1.bf16.msra.mxu0 0
        %4296 = vmatprep.subr.bf16.mxu0 0
        %4297 = vmatpush1.bf16.msra.mxu0 0
        %4298 = vmatprep.subr.bf16.mxu0 0
        %4299 = vmatpush1.bf16.msra.mxu0 0
        %4300 = vmatprep.subr.bf16.mxu0 0
        %4301 = vmatpush1.bf16.msra.mxu0 0
        %4302 = vmatprep.subr.bf16.mxu0 0
        %4303 = vmatpush1.bf16.msra.mxu0 0
        %4304 = vmatprep.subr.bf16.mxu0 0
        %4305 = vmatpush1.bf16.msra.mxu0 0
        %4306 = vmatprep.subr.bf16.mxu0 0
        %4307 = vmatpush1.bf16.msra.mxu0 0
        %4308 = vmatprep.mubr.bf16.mxu0 0
        %4309 = vmatmul.mubr.bf16.gmra.mrb[0].mxu0 %v4226
        %v4310 = vpop.f32.mrb[0].mxu0
        %v4311 = vadd.f32 0.0, %v4310
        %v4312 = vpop.f32.mrb[0].mxu0
        %v4313 = vpop.f32.mrb[0].mxu0
        %v4314 = vadd.f32 0.0, %v4313
        %v4315 = vpop.f32.mrb[0].mxu0
        %4316 = vmatprep.mubr.bf16.mxu0 0
        %4317 = vmatmul.mubr.bf16.gmra.mrb[0].mxu0 %v4229
        %v4318 = vpop.f32.mrb[0].mxu0
        %v4319 = vadd.f32 0.0, %v4318
        %v4320 = vpop.f32.mrb[0].mxu0
        %v4321 = vpop.f32.mrb[0].mxu0
        %v4322 = vadd.f32 0.0, %v4321
        %v4323 = vpop.f32.mrb[0].mxu0
        %4324 = vmatprep.mubr.bf16.mxu0 0
        %4325 = vmatmul.mubr.bf16.gmra.mrb[0].mxu0 %v4232
        %v4326 = vpop.f32.mrb[0].mxu0
        %v4327 = vadd.f32 0.0, %v4326
        %v4328 = vpop.f32.mrb[0].mxu0
        %v4329 = vpop.f32.mrb[0].mxu0
        %v4330 = vadd.f32 0.0, %v4329
        %v4331 = vpop.f32.mrb[0].mxu0
        %4332 = vmatprep.mubr.bf16.mxu0 0
        %4333 = vmatmul.mubr.bf16.gmra.mrb[0].mxu0 %v4235
        %v4334 = vpop.f32.mrb[0].mxu0
        %v4335 = vadd.f32 0.0, %v4334
        %v4336 = vpop.f32.mrb[0].mxu0
        %v4337 = vpop.f32.mrb[0].mxu0
        %v4338 = vadd.f32 0.0, %v4337
        %v4339 = vpop.f32.mrb[0].mxu0
        %4340 = vmatprep.mubr.bf16.mxu0 0
        %4341 = vmatmul.mubr.bf16.gmra.mrb[0].mxu0 %v4238
        %v4342 = vpop.f32.mrb[0].mxu0
        %v4343 = vadd.f32 0.0, %v4342
        %v4344 = vpop.f32.mrb[0].mxu0
        %v4345 = vpop.f32.mrb[0].mxu0
        %v4346 = vadd.f32 0.0, %v4345
        %v4347 = vpop.f32.mrb[0].mxu0
        %4348 = vmatprep.mubr.bf16.mxu0 0
        %4349 = vmatmul.mubr.bf16.gmra.mrb[0].mxu0 %v4241
        %v4350 = vpop.f32.mrb[0].mxu0
        %v4351 = vadd.f32 0.0, %v4350
        %v4352 = vpop.f32.mrb[0].mxu0
        %v4353 = vpop.f32.mrb[0].mxu0
        %v4354 = vadd.f32 0.0, %v4353
        %v4355 = vpop.f32.mrb[0].mxu0
        %4356 = vmatprep.mubr.bf16.mxu0 0
        %4357 = vmatmul.mubr.bf16.gmra.mrb[0].mxu0 %v4244
        %v4358 = vpop.f32.mrb[0].mxu0
        %v4359 = vadd.f32 0.0, %v4358
        %v4360 = vpop.f32.mrb[0].mxu0
        %v4361 = vpop.f32.mrb[0].mxu0
        %v4362 = vadd.f32 0.0, %v4361
        %v4363 = vpop.f32.mrb[0].mxu0
        %4364 = vmatprep.mubr.bf16.mxu0 0
        %4365 = vmatmul.mubr.bf16.gmra.mrb[0].mxu0 %v4247
        %v4366 = vpop.f32.mrb[0].mxu0
        %v4367 = vadd.f32 0.0, %v4366
        %v4368 = vpop.f32.mrb[0].mxu0
        %v4369 = vpop.f32.mrb[0].mxu0
        %v4370 = vadd.f32 0.0, %v4369
        %v4371 = vpop.f32.mrb[0].mxu0
        %4372 = vmatprep.mubr.bf16.mxu0 0
        %4373 = vmatmul.mubr.bf16.gmra.mrb[0].mxu0 %v4250
        %v4374 = vpop.f32.mrb[0].mxu0
        %v4375 = vadd.f32 0.0, %v4374
        %v4376 = vpop.f32.mrb[0].mxu0
        %v4377 = vpop.f32.mrb[0].mxu0
        %v4378 = vadd.f32 0.0, %v4377
        %v4379 = vpop.f32.mrb[0].mxu0
        %4380 = vmatprep.mubr.bf16.mxu0 0
        %4381 = vmatmul.mubr.bf16.gmra.mrb[0].mxu0 %v4253
        %v4382 = vpop.f32.mrb[0].mxu0
        %v4383 = vadd.f32 0.0, %v4382
        %v4384 = vpop.f32.mrb[0].mxu0
        %v4385 = vpop.f32.mrb[0].mxu0
        %v4386 = vadd.f32 0.0, %v4385
        %v4387 = vpop.f32.mrb[0].mxu0
        %4388 = vmatprep.mubr.bf16.mxu0 0
        %4389 = vmatmul.mubr.bf16.gmra.mrb[0].mxu0 %v4256
        %v4390 = vpop.f32.mrb[0].mxu0
        %v4391 = vadd.f32 0.0, %v4390
        %v4392 = vpop.f32.mrb[0].mxu0
        %v4393 = vpop.f32.mrb[0].mxu0
        %v4394 = vadd.f32 0.0, %v4393
        %v4395 = vpop.f32.mrb[0].mxu0
        %4396 = vmatprep.mubr.bf16.mxu0 0
        %4397 = vmatmul.mubr.bf16.gmra.mrb[0].mxu0 %v4259
        %v4398 = vpop.f32.mrb[0].mxu0
        %v4399 = vadd.f32 0.0, %v4398
        %v4400 = vpop.f32.mrb[0].mxu0
        %v4401 = vpop.f32.mrb[0].mxu0
        %v4402 = vadd.f32 0.0, %v4401
        %v4403 = vpop.f32.mrb[0].mxu0
        %4404 = vmatprep.mubr.bf16.mxu0 0
        %4405 = vmatmul.mubr.bf16.gmra.mrb[0].mxu0 %v4262
        %v4406 = vpop.f32.mrb[0].mxu0
        %v4407 = vadd.f32 0.0, %v4406
        %v4408 = vpop.f32.mrb[0].mxu0
        %v4409 = vpop.f32.mrb[0].mxu0
        %v4410 = vadd.f32 0.0, %v4409
        %v4411 = vpop.f32.mrb[0].mxu0
        %4412 = vmatprep.mubr.bf16.mxu0 0
        %4413 = vmatmul.mubr.bf16.gmra.mrb[0].mxu0 %v4265
        %v4414 = vpop.f32.mrb[0].mxu0
        %v4415 = vadd.f32 0.0, %v4414
        %v4416 = vpop.f32.mrb[0].mxu0
        %v4417 = vpop.f32.mrb[0].mxu0
        %v4418 = vadd.f32 0.0, %v4417
        %v4419 = vpop.f32.mrb[0].mxu0
        %4420 = vmatprep.mubr.bf16.mxu0 0
        %4421 = vmatmul.mubr.bf16.gmra.mrb[0].mxu0 %v4268
        %v4422 = vpop.f32.mrb[0].mxu0
        %v4423 = vadd.f32 0.0, %v4422
        %v4424 = vpop.f32.mrb[0].mxu0
        %v4425 = vpop.f32.mrb[0].mxu0
        %v4426 = vadd.f32 0.0, %v4425
        %v4427 = vpop.f32.mrb[0].mxu0
        %4428 = vmatprep.mubr.bf16.mxu0 0
        %4429 = vmatmul.mubr.bf16.gmra.mrb[0].mxu0 %v4271
        %v4430 = vpop.f32.mrb[0].mxu0
        %v4431 = vadd.f32 0.0, %v4430
        %v4432 = vpop.f32.mrb[0].mxu0
        %v4433 = vpop.f32.mrb[0].mxu0
        %v4434 = vadd.f32 0.0, %v4433
        %v4435 = vpop.f32.mrb[0].mxu0
        %4436 = vdwg.mxu0
        %v4437 = vadd.f32 %v3711, %v4311
        %v4438 = vadd.f32 %v3712, %v4314
        %v4439 = vadd.f32 %v3713, %v4319
        %v4440 = vadd.f32 %v3714, %v4322
        %v4441 = vadd.f32 %v3715, %v4327
        %v4442 = vadd.f32 %v3716, %v4330
        %v4443 = vadd.f32 %v3717, %v4335
        %v4444 = vadd.f32 %v3718, %v4338
        %v4445 = vadd.f32 %v3719, %v4343
        %v4446 = vadd.f32 %v3720, %v4346
        %v4447 = vadd.f32 %v3721, %v4351
        %v4448 = vadd.f32 %v3722, %v4354
        %v4449 = vadd.f32 %v3723, %v4359
        %v4450 = vadd.f32 %v3724, %v4362
        %v4451 = vadd.f32 %v3725, %v4367
        %v4452 = vadd.f32 %v3726, %v4370
        %v4453 = vadd.f32 %v3727, %v4375
        %v4454 = vadd.f32 %v3728, %v4378
        %v4455 = vadd.f32 %v3729, %v4383
        %v4456 = vadd.f32 %v3730, %v4386
        %v4457 = vadd.f32 %v3731, %v4391
        %v4458 = vadd.f32 %v3732, %v4394
        %v4459 = vadd.f32 %v3733, %v4399
        %v4460 = vadd.f32 %v3734, %v4402
        %v4461 = vadd.f32 %v3735, %v4407
        %v4462 = vadd.f32 %v3736, %v4410
        %v4463 = vadd.f32 %v3737, %v4415
        %v4464 = vadd.f32 %v3738, %v4418
        %v4465 = vadd.f32 %v3739, %v4423
        %v4466 = vadd.f32 %v3740, %v4426
        %v4467 = vadd.f32 %v3741, %v4431
        %v4468 = vadd.f32 %v3742, %v4434
        %v4469 = vld [vmem:[%s3384] sm:$0xe]
        %v4470 = vld [vmem:[%s3384 + $0xc] sm:$0xe]
        %v4471 = vld [vmem:[%s3384 + $0x18] sm:$0xe]
        %v4472 = vld [vmem:[%s3384 + $0x24] sm:$0xe]
        %v4473 = vld [vmem:[%s3384 + $0x30] sm:$0xe]
        %v4474 = vld [vmem:[%s3384 + $0x3c] sm:$0xe]
        %v4475 = vld [vmem:[%s3384 + $0x48] sm:$0xe]
        %v4476 = vld [vmem:[%s3384 + $0x54] sm:$0xe]
        %v4477 = vld [vmem:[%s3384 + $0x60] sm:$0xe]
        %v4478 = vld [vmem:[%s3384 + $0x6c] sm:$0xe]
        %v4479 = vld [vmem:[%s3384 + $0x78] sm:$0xe]
        %v4480 = vld [vmem:[%s3384 + $0x84] sm:$0xe]
        %v4481 = vld [vmem:[%s3384 + $0x90] sm:$0xe]
        %v4482 = vld [vmem:[%s3384 + $0x9c] sm:$0xe]
        %v4483 = vld [vmem:[%s3384 + $0xa8] sm:$0xe]
        %v4484 = vld [vmem:[%s3384 + $0xb4] sm:$0xe]
        %v4533 = vrot.slane %v4469, 5
        %v4534 = vrot.slane %v4533, 4
        %v4535 = vrot.slane %v3744, 5
        %v4536 = vsel %vm1422, %v4534, %v4535
        %v4537 = vrot.slane %v4535, 4
        %v4538 = vrot.slane %v3745, 5
        %v4539 = vsel %vm1422, %v4537, %v4538
        %v4540 = vrot.slane %v4470, 5
        %v4541 = vrot.slane %v4540, 4
        %v4542 = vrot.slane %v3747, 5
        %v4543 = vsel %vm1422, %v4541, %v4542
        %v4544 = vrot.slane %v4542, 4
        %v4545 = vrot.slane %v3748, 5
        %v4546 = vsel %vm1422, %v4544, %v4545
        %v4547 = vrot.slane %v4471, 5
        %v4548 = vrot.slane %v4547, 4
        %v4549 = vrot.slane %v3750, 5
        %v4550 = vsel %vm1422, %v4548, %v4549
        %v4551 = vrot.slane %v4549, 4
        %v4552 = vrot.slane %v3751, 5
        %v4553 = vsel %vm1422, %v4551, %v4552
        %v4554 = vrot.slane %v4472, 5
        %v4555 = vrot.slane %v4554, 4
        %v4556 = vrot.slane %v3753, 5
        %v4557 = vsel %vm1422, %v4555, %v4556
        %v4558 = vrot.slane %v4556, 4
        %v4559 = vrot.slane %v3754, 5
        %v4560 = vsel %vm1422, %v4558, %v4559
        %v4561 = vrot.slane %v4473, 5
        %v4562 = vrot.slane %v4561, 4
        %v4563 = vrot.slane %v3756, 5
        %v4564 = vsel %vm1422, %v4562, %v4563
        %v4565 = vrot.slane %v4563, 4
        %v4566 = vrot.slane %v3757, 5
        %v4567 = vsel %vm1422, %v4565, %v4566
        %v4568 = vrot.slane %v4474, 5
        %v4569 = vrot.slane %v4568, 4
        %v4570 = vrot.slane %v3759, 5
        %v4571 = vsel %vm1422, %v4569, %v4570
        %v4572 = vrot.slane %v4570, 4
        %v4573 = vrot.slane %v3760, 5
        %v4574 = vsel %vm1422, %v4572, %v4573
        %v4575 = vrot.slane %v4475, 5
        %v4576 = vrot.slane %v4575, 4
        %v4577 = vrot.slane %v3762, 5
        %v4578 = vsel %vm1422, %v4576, %v4577
        %v4579 = vrot.slane %v4577, 4
        %v4580 = vrot.slane %v3763, 5
        %v4581 = vsel %vm1422, %v4579, %v4580
        %v4582 = vrot.slane %v4476, 5
        %v4583 = vrot.slane %v4582, 4
        %v4584 = vrot.slane %v3765, 5
        %v4585 = vsel %vm1422, %v4583, %v4584
        %v4586 = vrot.slane %v4584, 4
        %v4587 = vrot.slane %v3766, 5
        %v4588 = vsel %vm1422, %v4586, %v4587
        %v4589 = vrot.slane %v4477, 5
        %v4590 = vrot.slane %v4589, 4
        %v4591 = vrot.slane %v3768, 5
        %v4592 = vsel %vm1422, %v4590, %v4591
        %v4593 = vrot.slane %v4591, 4
        %v4594 = vrot.slane %v3769, 5
        %v4595 = vsel %vm1422, %v4593, %v4594
        %v4596 = vrot.slane %v4478, 5
        %v4597 = vrot.slane %v4596, 4
        %v4598 = vrot.slane %v3771, 5
        %v4599 = vsel %vm1422, %v4597, %v4598
        %v4600 = vrot.slane %v4598, 4
        %v4601 = vrot.slane %v3772, 5
        %v4602 = vsel %vm1422, %v4600, %v4601
        %v4603 = vrot.slane %v4479, 5
        %v4604 = vrot.slane %v4603, 4
        %v4605 = vrot.slane %v3774, 5
        %v4606 = vsel %vm1422, %v4604, %v4605
        %v4607 = vrot.slane %v4605, 4
        %v4608 = vrot.slane %v3775, 5
        %v4609 = vsel %vm1422, %v4607, %v4608
        %v4610 = vrot.slane %v4480, 5
        %v4611 = vrot.slane %v4610, 4
        %v4612 = vrot.slane %v3777, 5
        %v4613 = vsel %vm1422, %v4611, %v4612
        %v4614 = vrot.slane %v4612, 4
        %v4615 = vrot.slane %v3778, 5
        %v4616 = vsel %vm1422, %v4614, %v4615
        %v4617 = vrot.slane %v4481, 5
        %v4618 = vrot.slane %v4617, 4
        %v4619 = vrot.slane %v3780, 5
        %v4620 = vsel %vm1422, %v4618, %v4619
        %v4621 = vrot.slane %v4619, 4
        %v4622 = vrot.slane %v3781, 5
        %v4623 = vsel %vm1422, %v4621, %v4622
        %v4624 = vrot.slane %v4482, 5
        %v4625 = vrot.slane %v4624, 4
        %v4626 = vrot.slane %v3783, 5
        %v4627 = vsel %vm1422, %v4625, %v4626
        %v4628 = vrot.slane %v4626, 4
        %v4629 = vrot.slane %v3784, 5
        %v4630 = vsel %vm1422, %v4628, %v4629
        %v4631 = vrot.slane %v4483, 5
        %v4632 = vrot.slane %v4631, 4
        %v4633 = vrot.slane %v3786, 5
        %v4634 = vsel %vm1422, %v4632, %v4633
        %v4635 = vrot.slane %v4633, 4
        %v4636 = vrot.slane %v3787, 5
        %v4637 = vsel %vm1422, %v4635, %v4636
        %v4638 = vrot.slane %v4484, 5
        %v4639 = vrot.slane %v4638, 4
        %v4640 = vrot.slane %v3789, 5
        %v4641 = vsel %vm1422, %v4639, %v4640
        %v4642 = vrot.slane %v4640, 4
        %v4643 = vrot.slane %v3790, 5
        %v4644 = vsel %vm1422, %v4642, %v4643
        %s4645 = scalar_lea.vmem %s1, 16
        %v4646 = vld [vmem:[%s4645] sm:$0x3]
        %v4647 = vunpack.c.l.b16 %v4536
        %v4648 = vunpack.c.l.b16 %v4539
        %v4649 = vunpack.c.l.b16 %v4543
        %v4650 = vunpack.c.l.b16 %v4546
        %v4651 = vunpack.c.l.b16 %v4550
        %v4652 = vunpack.c.l.b16 %v4553
        %v4653 = vunpack.c.l.b16 %v4557
        %v4654 = vunpack.c.l.b16 %v4560
        %v4655 = vunpack.c.l.b16 %v4564
        %v4656 = vunpack.c.l.b16 %v4567
        %v4657 = vunpack.c.l.b16 %v4571
        %v4658 = vunpack.c.l.b16 %v4574
        %v4659 = vunpack.c.l.b16 %v4578
        %v4660 = vunpack.c.l.b16 %v4581
        %v4661 = vunpack.c.l.b16 %v4585
        %v4662 = vunpack.c.l.b16 %v4588
        %v4663 = vunpack.c.l.b16 %v4592
        %v4664 = vunpack.c.l.b16 %v4595
        %v4665 = vunpack.c.l.b16 %v4599
        %v4666 = vunpack.c.l.b16 %v4602
        %v4667 = vunpack.c.l.b16 %v4606
        %v4668 = vunpack.c.l.b16 %v4609
        %v4669 = vunpack.c.l.b16 %v4613
        %v4670 = vunpack.c.l.b16 %v4616
        %v4671 = vunpack.c.l.b16 %v4620
        %v4672 = vunpack.c.l.b16 %v4623
        %v4673 = vunpack.c.l.b16 %v4627
        %v4674 = vunpack.c.l.b16 %v4630
        %v4675 = vunpack.c.l.b16 %v4634
        %v4676 = vunpack.c.l.b16 %v4637
        %v4677 = vunpack.c.l.b16 %v4641
        %v4678 = vunpack.c.l.b16 %v4644
        %v4679 = vpack.c.b16 %v4648, %v4647
        %v4680 = vpack.c.b16 %v4650, %v4649
        %v4681 = vpack.c.b16 %v4652, %v4651
        %v4682 = vpack.c.b16 %v4654, %v4653
        %v4683 = vpack.c.b16 %v4656, %v4655
        %v4684 = vpack.c.b16 %v4658, %v4657
        %v4685 = vpack.c.b16 %v4660, %v4659
        %v4686 = vpack.c.b16 %v4662, %v4661
        %v4687 = vpack.c.b16 %v4664, %v4663
        %v4688 = vpack.c.b16 %v4666, %v4665
        %v4689 = vpack.c.b16 %v4668, %v4667
        %v4690 = vpack.c.b16 %v4670, %v4669
        %v4691 = vpack.c.b16 %v4672, %v4671
        %v4692 = vpack.c.b16 %v4674, %v4673
        %v4693 = vpack.c.b16 %v4676, %v4675
        %v4694 = vpack.c.b16 %v4678, %v4677
        %v4696 = vsel %vm866, %v4679, 0
        %v4699 = vsel %vm866, %v4680, 0
        %v4702 = vsel %vm866, %v4681, 0
        %v4705 = vsel %vm866, %v4682, 0
        %v4708 = vsel %vm866, %v4683, 0
        %v4711 = vsel %vm866, %v4684, 0
        %v4714 = vsel %vm866, %v4685, 0
        %v4717 = vsel %vm866, %v4686, 0
        %v4720 = vsel %vm866, %v4687, 0
        %v4723 = vsel %vm866, %v4688, 0
        %v4726 = vsel %vm866, %v4689, 0
        %v4729 = vsel %vm866, %v4690, 0
        %v4732 = vsel %vm866, %v4691, 0
        %v4735 = vsel %vm866, %v4692, 0
        %v4738 = vsel %vm866, %v4693, 0
        %v4741 = vsel %vm866, %v4694, 0
        %v4744 = vsel %vm915, %v4646, 0
        %4746 = vmatprep.subr.bf16.mxu0 0
        %4747 = vmatpush1.bf16.msra.mxu0 %v4744
        %4748 = vmatprep.subr.bf16.mxu0 0
        %4749 = vmatpush1.bf16.msra.mxu0 0
        %4750 = vmatprep.subr.bf16.mxu0 0
        %4751 = vmatpush1.bf16.msra.mxu0 0
        %4752 = vmatprep.subr.bf16.mxu0 0
        %4753 = vmatpush1.bf16.msra.mxu0 0
        %4754 = vmatprep.subr.bf16.mxu0 0
        %4755 = vmatpush1.bf16.msra.mxu0 0
        %4756 = vmatprep.subr.bf16.mxu0 0
        %4757 = vmatpush1.bf16.msra.mxu0 0
        %4758 = vmatprep.subr.bf16.mxu0 0
        %4759 = vmatpush1.bf16.msra.mxu0 0
        %4760 = vmatprep.subr.bf16.mxu0 0
        %4761 = vmatpush1.bf16.msra.mxu0 0
        %4762 = vmatprep.subr.bf16.mxu0 0
        %4763 = vmatpush1.bf16.msra.mxu0 0
        %4764 = vmatprep.subr.bf16.mxu0 0
        %4765 = vmatpush1.bf16.msra.mxu0 0
        %4766 = vmatprep.subr.bf16.mxu0 0
        %4767 = vmatpush1.bf16.msra.mxu0 0
        %4768 = vmatprep.subr.bf16.mxu0 0
        %4769 = vmatpush1.bf16.msra.mxu0 0
        %4770 = vmatprep.subr.bf16.mxu0 0
        %4771 = vmatpush1.bf16.msra.mxu0 0
        %4772 = vmatprep.subr.bf16.mxu0 0
        %4773 = vmatpush1.bf16.msra.mxu0 0
        %4774 = vmatprep.subr.bf16.mxu0 0
        %4775 = vmatpush1.bf16.msra.mxu0 0
        %4776 = vmatprep.subr.bf16.mxu0 0
        %4777 = vmatpush1.bf16.msra.mxu0 0
        %4778 = vmatprep.mubr.bf16.mxu0 0
        %4779 = vmatmul.mubr.bf16.gmra.mrb[0].mxu0 %v4696
        %v4780 = vpop.f32.mrb[0].mxu0
        %v4781 = vadd.f32 0.0, %v4780
        %v4782 = vpop.f32.mrb[0].mxu0
        %v4783 = vpop.f32.mrb[0].mxu0
        %v4784 = vadd.f32 0.0, %v4783
        %v4785 = vpop.f32.mrb[0].mxu0
        %4786 = vmatprep.mubr.bf16.mxu0 0
        %4787 = vmatmul.mubr.bf16.gmra.mrb[0].mxu0 %v4699
        %v4788 = vpop.f32.mrb[0].mxu0
        %v4789 = vadd.f32 0.0, %v4788
        %v4790 = vpop.f32.mrb[0].mxu0
        %v4791 = vpop.f32.mrb[0].mxu0
        %v4792 = vadd.f32 0.0, %v4791
        %v4793 = vpop.f32.mrb[0].mxu0
        %4794 = vmatprep.mubr.bf16.mxu0 0
        %4795 = vmatmul.mubr.bf16.gmra.mrb[0].mxu0 %v4702
        %v4796 = vpop.f32.mrb[0].mxu0
        %v4797 = vadd.f32 0.0, %v4796
        %v4798 = vpop.f32.mrb[0].mxu0
        %v4799 = vpop.f32.mrb[0].mxu0
        %v4800 = vadd.f32 0.0, %v4799
        %v4801 = vpop.f32.mrb[0].mxu0
        %4802 = vmatprep.mubr.bf16.mxu0 0
        %4803 = vmatmul.mubr.bf16.gmra.mrb[0].mxu0 %v4705
        %v4804 = vpop.f32.mrb[0].mxu0
        %v4805 = vadd.f32 0.0, %v4804
        %v4806 = vpop.f32.mrb[0].mxu0
        %v4807 = vpop.f32.mrb[0].mxu0
        %v4808 = vadd.f32 0.0, %v4807
        %v4809 = vpop.f32.mrb[0].mxu0
        %4810 = vmatprep.mubr.bf16.mxu0 0
        %4811 = vmatmul.mubr.bf16.gmra.mrb[0].mxu0 %v4708
        %v4812 = vpop.f32.mrb[0].mxu0
        %v4813 = vadd.f32 0.0, %v4812
        %v4814 = vpop.f32.mrb[0].mxu0
        %v4815 = vpop.f32.mrb[0].mxu0
        %v4816 = vadd.f32 0.0, %v4815
        %v4817 = vpop.f32.mrb[0].mxu0
        %4818 = vmatprep.mubr.bf16.mxu0 0
        %4819 = vmatmul.mubr.bf16.gmra.mrb[0].mxu0 %v4711
        %v4820 = vpop.f32.mrb[0].mxu0
        %v4821 = vadd.f32 0.0, %v4820
        %v4822 = vpop.f32.mrb[0].mxu0
        %v4823 = vpop.f32.mrb[0].mxu0
        %v4824 = vadd.f32 0.0, %v4823
        %v4825 = vpop.f32.mrb[0].mxu0
        %4826 = vmatprep.mubr.bf16.mxu0 0
        %4827 = vmatmul.mubr.bf16.gmra.mrb[0].mxu0 %v4714
        %v4828 = vpop.f32.mrb[0].mxu0
        %v4829 = vadd.f32 0.0, %v4828
        %v4830 = vpop.f32.mrb[0].mxu0
        %v4831 = vpop.f32.mrb[0].mxu0
        %v4832 = vadd.f32 0.0, %v4831
        %v4833 = vpop.f32.mrb[0].mxu0
        %4834 = vmatprep.mubr.bf16.mxu0 0
        %4835 = vmatmul.mubr.bf16.gmra.mrb[0].mxu0 %v4717
        %v4836 = vpop.f32.mrb[0].mxu0
        %v4837 = vadd.f32 0.0, %v4836
        %v4838 = vpop.f32.mrb[0].mxu0
        %v4839 = vpop.f32.mrb[0].mxu0
        %v4840 = vadd.f32 0.0, %v4839
        %v4841 = vpop.f32.mrb[0].mxu0
        %4842 = vmatprep.mubr.bf16.mxu0 0
        %4843 = vmatmul.mubr.bf16.gmra.mrb[0].mxu0 %v4720
        %v4844 = vpop.f32.mrb[0].mxu0
        %v4845 = vadd.f32 0.0, %v4844
        %v4846 = vpop.f32.mrb[0].mxu0
        %v4847 = vpop.f32.mrb[0].mxu0
        %v4848 = vadd.f32 0.0, %v4847
        %v4849 = vpop.f32.mrb[0].mxu0
        %4850 = vmatprep.mubr.bf16.mxu0 0
        %4851 = vmatmul.mubr.bf16.gmra.mrb[0].mxu0 %v4723
        %v4852 = vpop.f32.mrb[0].mxu0
        %v4853 = vadd.f32 0.0, %v4852
        %v4854 = vpop.f32.mrb[0].mxu0
        %v4855 = vpop.f32.mrb[0].mxu0
        %v4856 = vadd.f32 0.0, %v4855
        %v4857 = vpop.f32.mrb[0].mxu0
        %4858 = vmatprep.mubr.bf16.mxu0 0
        %4859 = vmatmul.mubr.bf16.gmra.mrb[0].mxu0 %v4726
        %v4860 = vpop.f32.mrb[0].mxu0
        %v4861 = vadd.f32 0.0, %v4860
        %v4862 = vpop.f32.mrb[0].mxu0
        %v4863 = vpop.f32.mrb[0].mxu0
        %v4864 = vadd.f32 0.0, %v4863
        %v4865 = vpop.f32.mrb[0].mxu0
        %4866 = vmatprep.mubr.bf16.mxu0 0
        %4867 = vmatmul.mubr.bf16.gmra.mrb[0].mxu0 %v4729
        %v4868 = vpop.f32.mrb[0].mxu0
        %v4869 = vadd.f32 0.0, %v4868
        %v4870 = vpop.f32.mrb[0].mxu0
        %v4871 = vpop.f32.mrb[0].mxu0
        %v4872 = vadd.f32 0.0, %v4871
        %v4873 = vpop.f32.mrb[0].mxu0
        %4874 = vmatprep.mubr.bf16.mxu0 0
        %4875 = vmatmul.mubr.bf16.gmra.mrb[0].mxu0 %v4732
        %v4876 = vpop.f32.mrb[0].mxu0
        %v4877 = vadd.f32 0.0, %v4876
        %v4878 = vpop.f32.mrb[0].mxu0
        %v4879 = vpop.f32.mrb[0].mxu0
        %v4880 = vadd.f32 0.0, %v4879
        %v4881 = vpop.f32.mrb[0].mxu0
        %4882 = vmatprep.mubr.bf16.mxu0 0
        %4883 = vmatmul.mubr.bf16.gmra.mrb[0].mxu0 %v4735
        %v4884 = vpop.f32.mrb[0].mxu0
        %v4885 = vadd.f32 0.0, %v4884
        %v4886 = vpop.f32.mrb[0].mxu0
        %v4887 = vpop.f32.mrb[0].mxu0
        %v4888 = vadd.f32 0.0, %v4887
        %v4889 = vpop.f32.mrb[0].mxu0
        %4890 = vmatprep.mubr.bf16.mxu0 0
        %4891 = vmatmul.mubr.bf16.gmra.mrb[0].mxu0 %v4738
        %v4892 = vpop.f32.mrb[0].mxu0
        %v4893 = vadd.f32 0.0, %v4892
        %v4894 = vpop.f32.mrb[0].mxu0
        %v4895 = vpop.f32.mrb[0].mxu0
        %v4896 = vadd.f32 0.0, %v4895
        %v4897 = vpop.f32.mrb[0].mxu0
        %4898 = vmatprep.mubr.bf16.mxu0 0
        %4899 = vmatmul.mubr.bf16.gmra.mrb[0].mxu0 %v4741
        %v4900 = vpop.f32.mrb[0].mxu0
        %v4901 = vadd.f32 0.0, %v4900
        %v4902 = vpop.f32.mrb[0].mxu0
        %v4903 = vpop.f32.mrb[0].mxu0
        %v4904 = vadd.f32 0.0, %v4903
        %v4905 = vpop.f32.mrb[0].mxu0
        %4906 = vdwg.mxu0
        %v4907 = vadd.f32 %v4437, %v4781
        %v4908 = vadd.f32 %v4438, %v4784
        %v4909 = vadd.f32 %v4439, %v4789
        %v4910 = vadd.f32 %v4440, %v4792
        %v4911 = vadd.f32 %v4441, %v4797
        %v4912 = vadd.f32 %v4442, %v4800
        %v4913 = vadd.f32 %v4443, %v4805
        %v4914 = vadd.f32 %v4444, %v4808
        %v4915 = vadd.f32 %v4445, %v4813
        %v4916 = vadd.f32 %v4446, %v4816
        %v4917 = vadd.f32 %v4447, %v4821
        %v4918 = vadd.f32 %v4448, %v4824
        %v4919 = vadd.f32 %v4449, %v4829
        %v4920 = vadd.f32 %v4450, %v4832
        %v4921 = vadd.f32 %v4451, %v4837
        %v4922 = vadd.f32 %v4452, %v4840
        %v4923 = vadd.f32 %v4453, %v4845
        %v4924 = vadd.f32 %v4454, %v4848
        %v4925 = vadd.f32 %v4455, %v4853
        %v4926 = vadd.f32 %v4456, %v4856
        %v4927 = vadd.f32 %v4457, %v4861
        %v4928 = vadd.f32 %v4458, %v4864
        %v4929 = vadd.f32 %v4459, %v4869
        %v4930 = vadd.f32 %v4460, %v4872
        %v4931 = vadd.f32 %v4461, %v4877
        %v4932 = vadd.f32 %v4462, %v4880
        %v4933 = vadd.f32 %v4463, %v4885
        %v4934 = vadd.f32 %v4464, %v4888
        %v4935 = vadd.f32 %v4465, %v4893
        %v4936 = vadd.f32 %v4466, %v4896
        %v4937 = vadd.f32 %v4467, %v4901
        %v4938 = vadd.f32 %v4468, %v4904
        %v4939 = vld [vmem:[#allocation2] sm:$0x1]
        %v4940 = vadd.f32 %v4907, %v4908
        %v4941 = vadd.f32 %v4940, %v4909
        %v4942 = vadd.f32 %v4941, %v4910
        %v4943 = vadd.f32 %v4942, %v4911
        %v4944 = vadd.f32 %v4943, %v4912
        %v4945 = vadd.f32 %v4944, %v4913
        %v4946 = vadd.f32 %v4945, %v4914
        %v4947 = vadd.f32 %v4946, %v4915
        %v4948 = vadd.f32 %v4947, %v4916
        %v4949 = vadd.f32 %v4948, %v4917
        %v4950 = vadd.f32 %v4949, %v4918
        %v4951 = vadd.f32 %v4950, %v4919
        %v4952 = vadd.f32 %v4951, %v4920
        %v4953 = vadd.f32 %v4952, %v4921
        %v4954 = vadd.f32 %v4953, %v4922
        %v4955 = vadd.f32 %v4954, %v4923
        %v4956 = vadd.f32 %v4955, %v4924
        %v4957 = vadd.f32 %v4956, %v4925
        %v4958 = vadd.f32 %v4957, %v4926
        %v4959 = vadd.f32 %v4958, %v4927
        %v4960 = vadd.f32 %v4959, %v4928
        %v4961 = vadd.f32 %v4960, %v4929
        %v4962 = vadd.f32 %v4961, %v4930
        %v4963 = vadd.f32 %v4962, %v4931
        %v4964 = vadd.f32 %v4963, %v4932
        %v4965 = vadd.f32 %v4964, %v4933
        %v4966 = vadd.f32 %v4965, %v4934
        %v4967 = vadd.f32 %v4966, %v4935
        %v4968 = vadd.f32 %v4967, %v4936
        %v4969 = vadd.f32 %v4968, %v4937
        %v4970 = vadd.f32 %v4969, %v4938
        %v4971 = vrot.slane %v4970, 4
        %v4972 = vadd.f32 %v4970, %v4971
        %v4973 = vrot.slane %v4972, 2
        %v4974 = vadd.f32 %v4972, %v4973
        %v4975 = vrot.slane %v4974, 1
        %v4976 = vadd.f32 %v4974, %v4975
        %v4977 = vadd.f32 %v4939, %v4976
        %4978 = vst [vmem:[#allocation2] sm:$0x1] %v4977
        %v4979 = vld [vmem:[#allocation3] sm:$0x1]
        %v4980 = vmul.f32 %v4907, %v4907
        %v4981 = vmul.f32 %v4908, %v4908
        %v4982 = vmul.f32 %v4909, %v4909
        %v4983 = vmul.f32 %v4910, %v4910
        %v4984 = vmul.f32 %v4911, %v4911
        %v4985 = vmul.f32 %v4912, %v4912
        %v4986 = vmul.f32 %v4913, %v4913
        %v4987 = vmul.f32 %v4914, %v4914
        %v4988 = vmul.f32 %v4915, %v4915
        %v4989 = vmul.f32 %v4916, %v4916
        %v4990 = vmul.f32 %v4917, %v4917
        %v4991 = vmul.f32 %v4918, %v4918
        %v4992 = vmul.f32 %v4919, %v4919
        %v4993 = vmul.f32 %v4920, %v4920
        %v4994 = vmul.f32 %v4921, %v4921
        %v4995 = vmul.f32 %v4922, %v4922
        %v4996 = vmul.f32 %v4923, %v4923
        %v4997 = vmul.f32 %v4924, %v4924
        %v4998 = vmul.f32 %v4925, %v4925
        %v4999 = vmul.f32 %v4926, %v4926
        %v5000 = vmul.f32 %v4927, %v4927
        %v5001 = vmul.f32 %v4928, %v4928
        %v5002 = vmul.f32 %v4929, %v4929
        %v5003 = vmul.f32 %v4930, %v4930
        %v5004 = vmul.f32 %v4931, %v4931
        %v5005 = vmul.f32 %v4932, %v4932
        %v5006 = vmul.f32 %v4933, %v4933
        %v5007 = vmul.f32 %v4934, %v4934
        %v5008 = vmul.f32 %v4935, %v4935
        %v5009 = vmul.f32 %v4936, %v4936
        %v5010 = vmul.f32 %v4937, %v4937
        %v5011 = vmul.f32 %v4938, %v4938
        %v5012 = vadd.f32 %v4980, %v4981
        %v5013 = vadd.f32 %v5012, %v4982
        %v5014 = vadd.f32 %v5013, %v4983
        %v5015 = vadd.f32 %v5014, %v4984
        %v5016 = vadd.f32 %v5015, %v4985
        %v5017 = vadd.f32 %v5016, %v4986
        %v5018 = vadd.f32 %v5017, %v4987
        %v5019 = vadd.f32 %v5018, %v4988
        %v5020 = vadd.f32 %v5019, %v4989
        %v5021 = vadd.f32 %v5020, %v4990
        %v5022 = vadd.f32 %v5021, %v4991
        %v5023 = vadd.f32 %v5022, %v4992
        %v5024 = vadd.f32 %v5023, %v4993
        %v5025 = vadd.f32 %v5024, %v4994
        %v5026 = vadd.f32 %v5025, %v4995
        %v5027 = vadd.f32 %v5026, %v4996
        %v5028 = vadd.f32 %v5027, %v4997
        %v5029 = vadd.f32 %v5028, %v4998
        %v5030 = vadd.f32 %v5029, %v4999
        %v5031 = vadd.f32 %v5030, %v5000
        %v5032 = vadd.f32 %v5031, %v5001
        %v5033 = vadd.f32 %v5032, %v5002
        %v5034 = vadd.f32 %v5033, %v5003
        %v5035 = vadd.f32 %v5034, %v5004
        %v5036 = vadd.f32 %v5035, %v5005
        %v5037 = vadd.f32 %v5036, %v5006
        %v5038 = vadd.f32 %v5037, %v5007
        %v5039 = vadd.f32 %v5038, %v5008
        %v5040 = vadd.f32 %v5039, %v5009
        %v5041 = vadd.f32 %v5040, %v5010
        %v5042 = vadd.f32 %v5041, %v5011
        %v5043 = vrot.slane %v5042, 4
        %v5044 = vadd.f32 %v5042, %v5043
        %v5045 = vrot.slane %v5044, 2
        %v5046 = vadd.f32 %v5044, %v5045
        %v5047 = vrot.slane %v5046, 1
        %v5048 = vadd.f32 %v5046, %v5047
        %v5049 = vadd.f32 %v4979, %v5048
        %5050 = vst [vmem:[#allocation3] sm:$0x1] %v5049
        %s5051 = smul.u32 %s23, 256
        %s5052 = scalar_lea.vmem [#allocation4], %s5051
        %5053 = vst [vmem:[%s5052] sm:$0xff] %v4907
        %5054 = vst [vmem:[%s5052 + $0x8] sm:$0xff] %v4908
        %5055 = vst [vmem:[%s5052 + $0x10] sm:$0xff] %v4909
        %5056 = vst [vmem:[%s5052 + $0x18] sm:$0xff] %v4910
        %5057 = vst [vmem:[%s5052 + $0x20] sm:$0xff] %v4911
        %5058 = vst [vmem:[%s5052 + $0x28] sm:$0xff] %v4912
        %5059 = vst [vmem:[%s5052 + $0x30] sm:$0xff] %v4913
        %5060 = vst [vmem:[%s5052 + $0x38] sm:$0xff] %v4914
        %5061 = vst [vmem:[%s5052 + $0x40] sm:$0xff] %v4915
        %5062 = vst [vmem:[%s5052 + $0x48] sm:$0xff] %v4916
        %5063 = vst [vmem:[%s5052 + $0x50] sm:$0xff] %v4917
        %5064 = vst [vmem:[%s5052 + $0x58] sm:$0xff] %v4918
        %5065 = vst [vmem:[%s5052 + $0x60] sm:$0xff] %v4919
        %5066 = vst [vmem:[%s5052 + $0x68] sm:$0xff] %v4920
        %5067 = vst [vmem:[%s5052 + $0x70] sm:$0xff] %v4921
        %5068 = vst [vmem:[%s5052 + $0x78] sm:$0xff] %v4922
        %5069 = vst [vmem:[%s5052 + $0x80] sm:$0xff] %v4923
        %5070 = vst [vmem:[%s5052 + $0x88] sm:$0xff] %v4924
        %5071 = vst [vmem:[%s5052 + $0x90] sm:$0xff] %v4925
        %5072 = vst [vmem:[%s5052 + $0x98] sm:$0xff] %v4926
        %5073 = vst [vmem:[%s5052 + $0xa0] sm:$0xff] %v4927
        %5074 = vst [vmem:[%s5052 + $0xa8] sm:$0xff] %v4928
        %5075 = vst [vmem:[%s5052 + $0xb0] sm:$0xff] %v4929
        %5076 = vst [vmem:[%s5052 + $0xb8] sm:$0xff] %v4930
        %5077 = vst [vmem:[%s5052 + $0xc0] sm:$0xff] %v4931
        %5078 = vst [vmem:[%s5052 + $0xc8] sm:$0xff] %v4932
        %5079 = vst [vmem:[%s5052 + $0xd0] sm:$0xff] %v4933
        %5080 = vst [vmem:[%s5052 + $0xd8] sm:$0xff] %v4934
        %5081 = vst [vmem:[%s5052 + $0xe0] sm:$0xff] %v4935
        %5082 = vst [vmem:[%s5052 + $0xe8] sm:$0xff] %v4936
        %5083 = vst [vmem:[%s5052 + $0xf0] sm:$0xff] %v4937
        %5084 = vst [vmem:[%s5052 + $0xf8] sm:$0xff] %v4938
        %p5085 = scmp.eq.s32.totalorder %s23, 1
        // Predicated region
        $region69: #{tpu_custom_call.1} parent=63 // pred_check
          %p5086 = pneg %p5085
        $region70: #{tpu_custom_call.1} parent=63 // pred_check_branch
          %5088 = sbr.rel (%p5086) target = $region72
        $region71: #{tpu_custom_call.1} parent=63 // pred_region
          %v5089 = vld [vmem:[#allocation2] sm:$0x1]
          %v5090 = vmul.f32 %v5089, 0.001953125
          %v5091 = vld [vmem:[#allocation3] sm:$0x1]
          %v5092 = vmul.f32 %v5091, 0.001953125
          %v5093 = vmul.f32 %v5090, %v5090
          %v5094 = vsub.f32 %v5092, %v5093
          %v5095 = vmax.f32 %v5094, 0.0
          %v5096 = vadd.f32 %v5095, 1e-05
          %v5097 = vrsqrt.pop %v5096
          %v5098 = vld [vmem:[%s2] sm:$0x1]
          %v5099 = vmul.f32 %v5097, %v5098
          %v5100 = vld [vmem:[%s3] sm:$0x1]
          %v5101 = vmul.f32 %v5090, %v5099
          %v5102 = vsub.f32 %v5100, %v5101
          %v5103 = vld [vmem:[#allocation4] sm:$0xff]
          %v5104 = vld [vmem:[#allocation4 + $0x8] sm:$0xff]
          %v5105 = vld [vmem:[#allocation4 + $0x10] sm:$0xff]
          %v5106 = vld [vmem:[#allocation4 + $0x18] sm:$0xff]
          %v5107 = vld [vmem:[#allocation4 + $0x20] sm:$0xff]
          %v5108 = vld [vmem:[#allocation4 + $0x28] sm:$0xff]
          %v5109 = vld [vmem:[#allocation4 + $0x30] sm:$0xff]
          %v5110 = vld [vmem:[#allocation4 + $0x38] sm:$0xff]
          %v5111 = vld [vmem:[#allocation4 + $0x40] sm:$0xff]
          %v5112 = vld [vmem:[#allocation4 + $0x48] sm:$0xff]
          %v5113 = vld [vmem:[#allocation4 + $0x50] sm:$0xff]
          %v5114 = vld [vmem:[#allocation4 + $0x58] sm:$0xff]
          %v5115 = vld [vmem:[#allocation4 + $0x60] sm:$0xff]
          %v5116 = vld [vmem:[#allocation4 + $0x68] sm:$0xff]
          %v5117 = vld [vmem:[#allocation4 + $0x70] sm:$0xff]
          %v5118 = vld [vmem:[#allocation4 + $0x78] sm:$0xff]
          %v5119 = vld [vmem:[#allocation4 + $0x80] sm:$0xff]
          %v5120 = vld [vmem:[#allocation4 + $0x88] sm:$0xff]
          %v5121 = vld [vmem:[#allocation4 + $0x90] sm:$0xff]
          %v5122 = vld [vmem:[#allocation4 + $0x98] sm:$0xff]
          %v5123 = vld [vmem:[#allocation4 + $0xa0] sm:$0xff]
          %v5124 = vld [vmem:[#allocation4 + $0xa8] sm:$0xff]
          %v5125 = vld [vmem:[#allocation4 + $0xb0] sm:$0xff]
          %v5126 = vld [vmem:[#allocation4 + $0xb8] sm:$0xff]
          %v5127 = vld [vmem:[#allocation4 + $0xc0] sm:$0xff]
          %v5128 = vld [vmem:[#allocation4 + $0xc8] sm:$0xff]
          %v5129 = vld [vmem:[#allocation4 + $0xd0] sm:$0xff]
          %v5130 = vld [vmem:[#allocation4 + $0xd8] sm:$0xff]
          %v5131 = vld [vmem:[#allocation4 + $0xe0] sm:$0xff]
          %v5132 = vld [vmem:[#allocation4 + $0xe8] sm:$0xff]
          %v5133 = vld [vmem:[#allocation4 + $0xf0] sm:$0xff]
          %v5134 = vld [vmem:[#allocation4 + $0xf8] sm:$0xff]
          %v5136 = vlaneseq
          %v5137 = vshrl.u32 %v5136, 7
          %v5138 = vsub.s32 0, %v5137
          %v5139 = vrot.slane %v5099, %v5138
          %v5141 = vmul.f32 %v5103, %v5139
          %v5142 = vmul.f32 %v5104, %v5139
          %v5143 = vmul.f32 %v5105, %v5139
          %v5144 = vmul.f32 %v5106, %v5139
          %v5145 = vmul.f32 %v5107, %v5139
          %v5146 = vmul.f32 %v5108, %v5139
          %v5147 = vmul.f32 %v5109, %v5139
          %v5148 = vmul.f32 %v5110, %v5139
          %v5149 = vmul.f32 %v5111, %v5139
          %v5150 = vmul.f32 %v5112, %v5139
          %v5151 = vmul.f32 %v5113, %v5139
          %v5152 = vmul.f32 %v5114, %v5139
          %v5153 = vmul.f32 %v5115, %v5139
          %v5154 = vmul.f32 %v5116, %v5139
          %v5155 = vmul.f32 %v5117, %v5139
          %v5156 = vmul.f32 %v5118, %v5139
          %v5157 = vmul.f32 %v5119, %v5139
          %v5158 = vmul.f32 %v5120, %v5139
          %v5159 = vmul.f32 %v5121, %v5139
          %v5160 = vmul.f32 %v5122, %v5139
          %v5161 = vmul.f32 %v5123, %v5139
          %v5162 = vmul.f32 %v5124, %v5139
          %v5163 = vmul.f32 %v5125, %v5139
          %v5164 = vmul.f32 %v5126, %v5139
          %v5165 = vmul.f32 %v5127, %v5139
          %v5166 = vmul.f32 %v5128, %v5139
          %v5167 = vmul.f32 %v5129, %v5139
          %v5168 = vmul.f32 %v5130, %v5139
          %v5169 = vmul.f32 %v5131, %v5139
          %v5170 = vmul.f32 %v5132, %v5139
          %v5171 = vmul.f32 %v5133, %v5139
          %v5172 = vmul.f32 %v5134, %v5139
          %v5174 = vlaneseq
          %v5175 = vshrl.u32 %v5174, 7
          %v5176 = vsub.s32 0, %v5175
          %v5177 = vrot.slane %v5102, %v5176
          %v5179 = vadd.f32 %v5141, %v5177
          %v5180 = vadd.f32 %v5142, %v5177
          %v5181 = vadd.f32 %v5143, %v5177
          %v5182 = vadd.f32 %v5144, %v5177
          %v5183 = vadd.f32 %v5145, %v5177
          %v5184 = vadd.f32 %v5146, %v5177
          %v5185 = vadd.f32 %v5147, %v5177
          %v5186 = vadd.f32 %v5148, %v5177
          %v5187 = vadd.f32 %v5149, %v5177
          %v5188 = vadd.f32 %v5150, %v5177
          %v5189 = vadd.f32 %v5151, %v5177
          %v5190 = vadd.f32 %v5152, %v5177
          %v5191 = vadd.f32 %v5153, %v5177
          %v5192 = vadd.f32 %v5154, %v5177
          %v5193 = vadd.f32 %v5155, %v5177
          %v5194 = vadd.f32 %v5156, %v5177
          %v5195 = vadd.f32 %v5157, %v5177
          %v5196 = vadd.f32 %v5158, %v5177
          %v5197 = vadd.f32 %v5159, %v5177
          %v5198 = vadd.f32 %v5160, %v5177
          %v5199 = vadd.f32 %v5161, %v5177
          %v5200 = vadd.f32 %v5162, %v5177
          %v5201 = vadd.f32 %v5163, %v5177
          %v5202 = vadd.f32 %v5164, %v5177
          %v5203 = vadd.f32 %v5165, %v5177
          %v5204 = vadd.f32 %v5166, %v5177
          %v5205 = vadd.f32 %v5167, %v5177
          %v5206 = vadd.f32 %v5168, %v5177
          %v5207 = vadd.f32 %v5169, %v5177
          %v5208 = vadd.f32 %v5170, %v5177
          %v5209 = vadd.f32 %v5171, %v5177
          %v5210 = vadd.f32 %v5172, %v5177
          %v5211 = vmax.f32 %v5179, 0.0
          %v5212 = vmax.f32 %v5180, 0.0
          %v5213 = vmax.f32 %v5181, 0.0
          %v5214 = vmax.f32 %v5182, 0.0
          %v5215 = vmax.f32 %v5183, 0.0
          %v5216 = vmax.f32 %v5184, 0.0
          %v5217 = vmax.f32 %v5185, 0.0
          %v5218 = vmax.f32 %v5186, 0.0
          %v5219 = vmax.f32 %v5187, 0.0
          %v5220 = vmax.f32 %v5188, 0.0
          %v5221 = vmax.f32 %v5189, 0.0
          %v5222 = vmax.f32 %v5190, 0.0
          %v5223 = vmax.f32 %v5191, 0.0
          %v5224 = vmax.f32 %v5192, 0.0
          %v5225 = vmax.f32 %v5193, 0.0
          %v5226 = vmax.f32 %v5194, 0.0
          %v5227 = vmax.f32 %v5195, 0.0
          %v5228 = vmax.f32 %v5196, 0.0
          %v5229 = vmax.f32 %v5197, 0.0
          %v5230 = vmax.f32 %v5198, 0.0
          %v5231 = vmax.f32 %v5199, 0.0
          %v5232 = vmax.f32 %v5200, 0.0
          %v5233 = vmax.f32 %v5201, 0.0
          %v5234 = vmax.f32 %v5202, 0.0
          %v5235 = vmax.f32 %v5203, 0.0
          %v5236 = vmax.f32 %v5204, 0.0
          %v5237 = vmax.f32 %v5205, 0.0
          %v5238 = vmax.f32 %v5206, 0.0
          %v5239 = vmax.f32 %v5207, 0.0
          %v5240 = vmax.f32 %v5208, 0.0
          %v5241 = vmax.f32 %v5209, 0.0
          %v5242 = vmax.f32 %v5210, 0.0
          %v5243 = vadd.f32 %v5211, %v5212
          %v5244 = vadd.f32 %v5243, %v5213
          %v5245 = vadd.f32 %v5244, %v5214
          %v5246 = vadd.f32 %v5245, %v5215
          %v5247 = vadd.f32 %v5246, %v5216
          %v5248 = vadd.f32 %v5247, %v5217
          %v5249 = vadd.f32 %v5248, %v5218
          %v5250 = vadd.f32 %v5249, %v5219
          %v5251 = vadd.f32 %v5250, %v5220
          %v5252 = vadd.f32 %v5251, %v5221
          %v5253 = vadd.f32 %v5252, %v5222
          %v5254 = vadd.f32 %v5253, %v5223
          %v5255 = vadd.f32 %v5254, %v5224
          %v5256 = vadd.f32 %v5255, %v5225
          %v5257 = vadd.f32 %v5256, %v5226
          %v5258 = vadd.f32 %v5257, %v5227
          %v5259 = vadd.f32 %v5258, %v5228
          %v5260 = vadd.f32 %v5259, %v5229
          %v5261 = vadd.f32 %v5260, %v5230
          %v5262 = vadd.f32 %v5261, %v5231
          %v5263 = vadd.f32 %v5262, %v5232
          %v5264 = vadd.f32 %v5263, %v5233
          %v5265 = vadd.f32 %v5264, %v5234
          %v5266 = vadd.f32 %v5265, %v5235
          %v5267 = vadd.f32 %v5266, %v5236
          %v5268 = vadd.f32 %v5267, %v5237
          %v5269 = vadd.f32 %v5268, %v5238
          %v5270 = vadd.f32 %v5269, %v5239
          %v5271 = vadd.f32 %v5270, %v5240
          %v5272 = vadd.f32 %v5271, %v5241
          %v5273 = vadd.f32 %v5272, %v5242
          %v5274 = vrot.slane %v5273, 4
          %v5275 = vadd.f32 %v5273, %v5274
          %v5276 = vrot.slane %v5275, 2
          %v5277 = vadd.f32 %v5275, %v5276
          %v5278 = vrot.slane %v5277, 1
          %v5279 = vadd.f32 %v5277, %v5278
          %v5280 = vmul.f32 %v5279, 0.00390625
          %s5281 = scalar_lea.vmem [#allocation4], 256
          %v5282 = vld [vmem:[%s5281] sm:$0xff]
          %v5283 = vld [vmem:[%s5281 + $0x8] sm:$0xff]
          %v5284 = vld [vmem:[%s5281 + $0x10] sm:$0xff]
          %v5285 = vld [vmem:[%s5281 + $0x18] sm:$0xff]
          %v5286 = vld [vmem:[%s5281 + $0x20] sm:$0xff]
          %v5287 = vld [vmem:[%s5281 + $0x28] sm:$0xff]
          %v5288 = vld [vmem:[%s5281 + $0x30] sm:$0xff]
          %v5289 = vld [vmem:[%s5281 + $0x38] sm:$0xff]
          %v5290 = vld [vmem:[%s5281 + $0x40] sm:$0xff]
          %v5291 = vld [vmem:[%s5281 + $0x48] sm:$0xff]
          %v5292 = vld [vmem:[%s5281 + $0x50] sm:$0xff]
          %v5293 = vld [vmem:[%s5281 + $0x58] sm:$0xff]
          %v5294 = vld [vmem:[%s5281 + $0x60] sm:$0xff]
          %v5295 = vld [vmem:[%s5281 + $0x68] sm:$0xff]
          %v5296 = vld [vmem:[%s5281 + $0x70] sm:$0xff]
          %v5297 = vld [vmem:[%s5281 + $0x78] sm:$0xff]
          %v5298 = vld [vmem:[%s5281 + $0x80] sm:$0xff]
          %v5299 = vld [vmem:[%s5281 + $0x88] sm:$0xff]
          %v5300 = vld [vmem:[%s5281 + $0x90] sm:$0xff]
          %v5301 = vld [vmem:[%s5281 + $0x98] sm:$0xff]
          %v5302 = vld [vmem:[%s5281 + $0xa0] sm:$0xff]
          %v5303 = vld [vmem:[%s5281 + $0xa8] sm:$0xff]
          %v5304 = vld [vmem:[%s5281 + $0xb0] sm:$0xff]
          %v5305 = vld [vmem:[%s5281 + $0xb8] sm:$0xff]
          %v5306 = vld [vmem:[%s5281 + $0xc0] sm:$0xff]
          %v5307 = vld [vmem:[%s5281 + $0xc8] sm:$0xff]
          %v5308 = vld [vmem:[%s5281 + $0xd0] sm:$0xff]
          %v5309 = vld [vmem:[%s5281 + $0xd8] sm:$0xff]
          %v5310 = vld [vmem:[%s5281 + $0xe0] sm:$0xff]
          %v5311 = vld [vmem:[%s5281 + $0xe8] sm:$0xff]
          %v5312 = vld [vmem:[%s5281 + $0xf0] sm:$0xff]
          %v5313 = vld [vmem:[%s5281 + $0xf8] sm:$0xff]
          %v5314 = vmul.f32 %v5282, %v5139
          %v5315 = vmul.f32 %v5283, %v5139
          %v5316 = vmul.f32 %v5284, %v5139
          %v5317 = vmul.f32 %v5285, %v5139
          %v5318 = vmul.f32 %v5286, %v5139
          %v5319 = vmul.f32 %v5287, %v5139
          %v5320 = vmul.f32 %v5288, %v5139
          %v5321 = vmul.f32 %v5289, %v5139
          %v5322 = vmul.f32 %v5290, %v5139
          %v5323 = vmul.f32 %v5291, %v5139
          %v5324 = vmul.f32 %v5292, %v5139
          %v5325 = vmul.f32 %v5293, %v5139
          %v5326 = vmul.f32 %v5294, %v5139
          %v5327 = vmul.f32 %v5295, %v5139
          %v5328 = vmul.f32 %v5296, %v5139
          %v5329 = vmul.f32 %v5297, %v5139
          %v5330 = vmul.f32 %v5298, %v5139
          %v5331 = vmul.f32 %v5299, %v5139
          %v5332 = vmul.f32 %v5300, %v5139
          %v5333 = vmul.f32 %v5301, %v5139
          %v5334 = vmul.f32 %v5302, %v5139
          %v5335 = vmul.f32 %v5303, %v5139
          %v5336 = vmul.f32 %v5304, %v5139
          %v5337 = vmul.f32 %v5305, %v5139
          %v5338 = vmul.f32 %v5306, %v5139
          %v5339 = vmul.f32 %v5307, %v5139
          %v5340 = vmul.f32 %v5308, %v5139
          %v5341 = vmul.f32 %v5309, %v5139
          %v5342 = vmul.f32 %v5310, %v5139
          %v5343 = vmul.f32 %v5311, %v5139
          %v5344 = vmul.f32 %v5312, %v5139
          %v5345 = vmul.f32 %v5313, %v5139
          %v5346 = vadd.f32 %v5314, %v5177
          %v5347 = vadd.f32 %v5315, %v5177
          %v5348 = vadd.f32 %v5316, %v5177
          %v5349 = vadd.f32 %v5317, %v5177
          %v5350 = vadd.f32 %v5318, %v5177
          %v5351 = vadd.f32 %v5319, %v5177
          %v5352 = vadd.f32 %v5320, %v5177
          %v5353 = vadd.f32 %v5321, %v5177
          %v5354 = vadd.f32 %v5322, %v5177
          %v5355 = vadd.f32 %v5323, %v5177
          %v5356 = vadd.f32 %v5324, %v5177
          %v5357 = vadd.f32 %v5325, %v5177
          %v5358 = vadd.f32 %v5326, %v5177
          %v5359 = vadd.f32 %v5327, %v5177
          %v5360 = vadd.f32 %v5328, %v5177
          %v5361 = vadd.f32 %v5329, %v5177
          %v5362 = vadd.f32 %v5330, %v5177
          %v5363 = vadd.f32 %v5331, %v5177
          %v5364 = vadd.f32 %v5332, %v5177
          %v5365 = vadd.f32 %v5333, %v5177
          %v5366 = vadd.f32 %v5334, %v5177
          %v5367 = vadd.f32 %v5335, %v5177
          %v5368 = vadd.f32 %v5336, %v5177
          %v5369 = vadd.f32 %v5337, %v5177
          %v5370 = vadd.f32 %v5338, %v5177
          %v5371 = vadd.f32 %v5339, %v5177
          %v5372 = vadd.f32 %v5340, %v5177
          %v5373 = vadd.f32 %v5341, %v5177
          %v5374 = vadd.f32 %v5342, %v5177
          %v5375 = vadd.f32 %v5343, %v5177
          %v5376 = vadd.f32 %v5344, %v5177
          %v5377 = vadd.f32 %v5345, %v5177
          %v5378 = vmax.f32 %v5346, 0.0
          %v5379 = vmax.f32 %v5347, 0.0
          %v5380 = vmax.f32 %v5348, 0.0
          %v5381 = vmax.f32 %v5349, 0.0
          %v5382 = vmax.f32 %v5350, 0.0
          %v5383 = vmax.f32 %v5351, 0.0
          %v5384 = vmax.f32 %v5352, 0.0
          %v5385 = vmax.f32 %v5353, 0.0
          %v5386 = vmax.f32 %v5354, 0.0
          %v5387 = vmax.f32 %v5355, 0.0
          %v5388 = vmax.f32 %v5356, 0.0
          %v5389 = vmax.f32 %v5357, 0.0
          %v5390 = vmax.f32 %v5358, 0.0
          %v5391 = vmax.f32 %v5359, 0.0
          %v5392 = vmax.f32 %v5360, 0.0
          %v5393 = vmax.f32 %v5361, 0.0
          %v5394 = vmax.f32 %v5362, 0.0
          %v5395 = vmax.f32 %v5363, 0.0
          %v5396 = vmax.f32 %v5364, 0.0
          %v5397 = vmax.f32 %v5365, 0.0
          %v5398 = vmax.f32 %v5366, 0.0
          %v5399 = vmax.f32 %v5367, 0.0
          %v5400 = vmax.f32 %v5368, 0.0
          %v5401 = vmax.f32 %v5369, 0.0
          %v5402 = vmax.f32 %v5370, 0.0
          %v5403 = vmax.f32 %v5371, 0.0
          %v5404 = vmax.f32 %v5372, 0.0
          %v5405 = vmax.f32 %v5373, 0.0
          %v5406 = vmax.f32 %v5374, 0.0
          %v5407 = vmax.f32 %v5375, 0.0
          %v5408 = vmax.f32 %v5376, 0.0
          %v5409 = vmax.f32 %v5377, 0.0
          %v5410 = vadd.f32 %v5378, %v5379
          %v5411 = vadd.f32 %v5410, %v5380
          %v5412 = vadd.f32 %v5411, %v5381
          %v5413 = vadd.f32 %v5412, %v5382
          %v5414 = vadd.f32 %v5413, %v5383
          %v5415 = vadd.f32 %v5414, %v5384
          %v5416 = vadd.f32 %v5415, %v5385
          %v5417 = vadd.f32 %v5416, %v5386
          %v5418 = vadd.f32 %v5417, %v5387
          %v5419 = vadd.f32 %v5418, %v5388
          %v5420 = vadd.f32 %v5419, %v5389
          %v5421 = vadd.f32 %v5420, %v5390
          %v5422 = vadd.f32 %v5421, %v5391
          %v5423 = vadd.f32 %v5422, %v5392
          %v5424 = vadd.f32 %v5423, %v5393
          %v5425 = vadd.f32 %v5424, %v5394
          %v5426 = vadd.f32 %v5425, %v5395
          %v5427 = vadd.f32 %v5426, %v5396
          %v5428 = vadd.f32 %v5427, %v5397
          %v5429 = vadd.f32 %v5428, %v5398
          %v5430 = vadd.f32 %v5429, %v5399
          %v5431 = vadd.f32 %v5430, %v5400
          %v5432 = vadd.f32 %v5431, %v5401
          %v5433 = vadd.f32 %v5432, %v5402
          %v5434 = vadd.f32 %v5433, %v5403
          %v5435 = vadd.f32 %v5434, %v5404
          %v5436 = vadd.f32 %v5435, %v5405
          %v5437 = vadd.f32 %v5436, %v5406
          %v5438 = vadd.f32 %v5437, %v5407
          %v5439 = vadd.f32 %v5438, %v5408
          %v5440 = vadd.f32 %v5439, %v5409
          %v5441 = vrot.slane %v5440, 4
          %v5442 = vadd.f32 %v5440, %v5441
          %v5443 = vrot.slane %v5442, 2
          %v5444 = vadd.f32 %v5442, %v5443
          %v5445 = vrot.slane %v5444, 1
          %v5446 = vadd.f32 %v5444, %v5445
          %v5447 = vmul.f32 %v5446, 0.00390625
          %vm5448 = vcmask 1040384
          %v5449 = vsel %vm5448, %v5280, %v5447
          %v5450 = vpack.c.bf16 %v5449, %v5449
          %v5451 = vld [vmem:[%s4] sm:$0xf]
          %v5452 = vld [vmem:[%s4 + $0x4] sm:$0xf]
          %v5453 = vld [vmem:[%s4 + $0x8] sm:$0xf]
          %v5454 = vld [vmem:[%s4 + $0xc] sm:$0xf]
          %v5455 = vld [vmem:[%s4 + $0x10] sm:$0xf]
          %v5456 = vld [vmem:[%s4 + $0x14] sm:$0xf]
          %v5457 = vld [vmem:[%s4 + $0x18] sm:$0xf]
          %v5458 = vld [vmem:[%s4 + $0x1c] sm:$0xf]
          %v5459 = vld [vmem:[%s4 + $0x20] sm:$0xf]
          %v5460 = vld [vmem:[%s4 + $0x24] sm:$0xf]
          %v5461 = vld [vmem:[%s4 + $0x28] sm:$0xf]
          %v5462 = vld [vmem:[%s4 + $0x2c] sm:$0xf]
          %v5463 = vld [vmem:[%s4 + $0x30] sm:$0xf]
          %v5464 = vld [vmem:[%s4 + $0x34] sm:$0xf]
          %v5465 = vld [vmem:[%s4 + $0x38] sm:$0xf]
          %v5466 = vld [vmem:[%s4 + $0x3c] sm:$0xf]
          %v5483 = vunpack.c.l.b16 %v5451
          %v5484 = vunpack.c.l.b16 %v5452
          %v5485 = vunpack.c.l.b16 %v5453
          %v5486 = vunpack.c.l.b16 %v5454
          %v5487 = vunpack.c.l.b16 %v5455
          %v5488 = vunpack.c.l.b16 %v5456
          %v5489 = vunpack.c.l.b16 %v5457
          %v5490 = vunpack.c.l.b16 %v5458
          %v5491 = vunpack.c.l.b16 %v5459
          %v5492 = vunpack.c.l.b16 %v5460
          %v5493 = vunpack.c.l.b16 %v5461
          %v5494 = vunpack.c.l.b16 %v5462
          %v5495 = vunpack.c.l.b16 %v5463
          %v5496 = vunpack.c.l.b16 %v5464
          %v5497 = vunpack.c.l.b16 %v5465
          %v5498 = vunpack.c.l.b16 %v5466
          %v5499 = vpack.c.b16 %v5484, %v5483
          %v5500 = vpack.c.b16 %v5486, %v5485
          %v5501 = vpack.c.b16 %v5488, %v5487
          %v5502 = vpack.c.b16 %v5490, %v5489
          %v5503 = vpack.c.b16 %v5492, %v5491
          %v5504 = vpack.c.b16 %v5494, %v5493
          %v5505 = vpack.c.b16 %v5496, %v5495
          %v5506 = vpack.c.b16 %v5498, %v5497
          %5515 = vmatprep.subr.bf16.mxu0 0
          %5516 = vmatpush1.bf16.msra.mxu0 %v5499
          %5517 = vmatprep.subr.bf16.mxu0 0
          %5518 = vmatpush1.bf16.msra.mxu0 %v5500
          %5519 = vmatprep.subr.bf16.mxu0 0
          %5520 = vmatpush1.bf16.msra.mxu0 %v5501
          %5521 = vmatprep.subr.bf16.mxu0 0
          %5522 = vmatpush1.bf16.msra.mxu0 %v5502
          %5523 = vmatprep.subr.bf16.mxu0 0
          %5524 = vmatpush1.bf16.msra.mxu0 %v5503
          %5525 = vmatprep.subr.bf16.mxu0 0
          %5526 = vmatpush1.bf16.msra.mxu0 %v5504
          %5527 = vmatprep.subr.bf16.mxu0 0
          %5528 = vmatpush1.bf16.msra.mxu0 %v5505
          %5529 = vmatprep.subr.bf16.mxu0 0
          %5530 = vmatpush1.bf16.msra.mxu0 %v5506
          %5531 = vmatprep.subr.bf16.mxu0 0
          %5532 = vmatpush1.bf16.msra.mxu0 0
          %5533 = vmatprep.subr.bf16.mxu0 0
          %5534 = vmatpush1.bf16.msra.mxu0 0
          %5535 = vmatprep.subr.bf16.mxu0 0
          %5536 = vmatpush1.bf16.msra.mxu0 0
          %5537 = vmatprep.subr.bf16.mxu0 0
          %5538 = vmatpush1.bf16.msra.mxu0 0
          %5539 = vmatprep.subr.bf16.mxu0 0
          %5540 = vmatpush1.bf16.msra.mxu0 0
          %5541 = vmatprep.subr.bf16.mxu0 0
          %5542 = vmatpush1.bf16.msra.mxu0 0
          %5543 = vmatprep.subr.bf16.mxu0 0
          %5544 = vmatpush1.bf16.msra.mxu0 0
          %5545 = vmatprep.subr.bf16.mxu0 0
          %5546 = vmatpush1.bf16.msra.mxu0 0
          %5547 = vmatprep.mubr.bf16.mxu0 0
          %5548 = vmatmul.mubr.bf16.gmra.mrb[0].mxu0 %v5450
          %v5549 = vpop.f32.mrb[0].mxu0
          %v5550 = vadd.f32 0.0, %v5549
          %v5551 = vpop.f32.mrb[0].mxu0
          %v5552 = vpop.f32.mrb[0].mxu0
          %v5553 = vpop.f32.mrb[0].mxu0
          %5554 = vdwg.mxu0
          %v5555 = vsel %vm915, %v5550, 0.0
          %v5556 = vrot.slane %v5555, 4
          %v5557 = vadd.f32 %v5555, %v5556
          %v5558 = vrot.slane %v5557, 2
          %v5559 = vadd.f32 %v5557, %v5558
          %v5560 = vrot.slane %v5559, 1
          %v5561 = vadd.f32 %v5559, %v5560
          %v5562 = vrcp.pop 2.0
          %v5563 = vmul.f32 %v5561, %v5562
          %v5564 = vmul.f32 %v5550, %v5550
          %v5565 = vsel %vm915, %v5564, 0.0
          %v5566 = vrot.slane %v5565, 4
          %v5567 = vadd.f32 %v5565, %v5566
          %v5568 = vrot.slane %v5567, 2
          %v5569 = vadd.f32 %v5567, %v5568
          %v5570 = vrot.slane %v5569, 1
          %v5571 = vadd.f32 %v5569, %v5570
          %v5572 = vmul.f32 %v5571, %v5562
          %v5573 = vmul.f32 %v5563, %v5563
          %v5574 = vsub.f32 %v5572, %v5573
          %v5575 = vmax.f32 %v5574, 0.0
          %v5576 = vsub.f32 %v5550, %v5563
          %v5577 = vadd.f32 %v5575, 1e-05
          %v5578 = vrsqrt.pop %v5577
          %v5579 = vmul.f32 %v5576, %v5578
          %v5580 = vld [vmem:[%s5] sm:$0x1]
          %v5582 = vlaneseq
          %v5583 = vshrl.u32 %v5582, 7
          %v5584 = vsub.s32 0, %v5583
          %v5585 = vrot.slane %v5580, %v5584
          %v5587 = vmul.f32 %v5579, %v5585
          %v5588 = vld [vmem:[%s6] sm:$0x1]
          %v5590 = vlaneseq
          %v5591 = vshrl.u32 %v5590, 7
          %v5592 = vsub.s32 0, %v5591
          %v5593 = vrot.slane %v5588, %v5592
          %v5595 = vadd.f32 %v5587, %v5593
          %v5596 = vmax.f32 %v5595, 0.0
          %v5597 = vpack.c.bf16 %v5596, %v5596
          %v5598 = vld [vmem:[%s7] sm:$0xf]
          %v5599 = vld [vmem:[%s7 + $0x4] sm:$0xf]
          %v5600 = vld [vmem:[%s7 + $0x8] sm:$0xf]
          %v5601 = vld [vmem:[%s7 + $0xc] sm:$0xf]
          %v5602 = vld [vmem:[%s7 + $0x10] sm:$0xf]
          %v5603 = vld [vmem:[%s7 + $0x14] sm:$0xf]
          %v5604 = vld [vmem:[%s7 + $0x18] sm:$0xf]
          %v5605 = vld [vmem:[%s7 + $0x1c] sm:$0xf]
          %v5606 = vld [vmem:[%s7 + $0x20] sm:$0xf]
          %v5607 = vld [vmem:[%s7 + $0x24] sm:$0xf]
          %v5608 = vld [vmem:[%s7 + $0x28] sm:$0xf]
          %v5609 = vld [vmem:[%s7 + $0x2c] sm:$0xf]
          %v5610 = vld [vmem:[%s7 + $0x30] sm:$0xf]
          %v5611 = vld [vmem:[%s7 + $0x34] sm:$0xf]
          %v5612 = vld [vmem:[%s7 + $0x38] sm:$0xf]
          %v5613 = vld [vmem:[%s7 + $0x3c] sm:$0xf]
          %v5630 = vunpack.c.l.b16 %v5598
          %v5631 = vunpack.c.l.b16 %v5599
          %v5632 = vunpack.c.l.b16 %v5600
          %v5633 = vunpack.c.l.b16 %v5601
          %v5634 = vunpack.c.l.b16 %v5602
          %v5635 = vunpack.c.l.b16 %v5603
          %v5636 = vunpack.c.l.b16 %v5604
          %v5637 = vunpack.c.l.b16 %v5605
          %v5638 = vunpack.c.l.b16 %v5606
          %v5639 = vunpack.c.l.b16 %v5607
          %v5640 = vunpack.c.l.b16 %v5608
          %v5641 = vunpack.c.l.b16 %v5609
          %v5642 = vunpack.c.l.b16 %v5610
          %v5643 = vunpack.c.l.b16 %v5611
          %v5644 = vunpack.c.l.b16 %v5612
          %v5645 = vunpack.c.l.b16 %v5613
          %v5646 = vpack.c.b16 %v5631, %v5630
          %v5647 = vpack.c.b16 %v5633, %v5632
          %v5648 = vpack.c.b16 %v5635, %v5634
          %v5649 = vpack.c.b16 %v5637, %v5636
          %v5650 = vpack.c.b16 %v5639, %v5638
          %v5651 = vpack.c.b16 %v5641, %v5640
          %v5652 = vpack.c.b16 %v5643, %v5642
          %v5653 = vpack.c.b16 %v5645, %v5644
          %5662 = vmatprep.subr.bf16.mxu0 0
          %5663 = vmatpush1.bf16.msra.mxu0 %v5646
          %5664 = vmatprep.subr.bf16.mxu0 0
          %5665 = vmatpush1.bf16.msra.mxu0 %v5647
          %5666 = vmatprep.subr.bf16.mxu0 0
          %5667 = vmatpush1.bf16.msra.mxu0 %v5648
          %5668 = vmatprep.subr.bf16.mxu0 0
          %5669 = vmatpush1.bf16.msra.mxu0 %v5649
          %5670 = vmatprep.subr.bf16.mxu0 0
          %5671 = vmatpush1.bf16.msra.mxu0 %v5650
          %5672 = vmatprep.subr.bf16.mxu0 0
          %5673 = vmatpush1.bf16.msra.mxu0 %v5651
          %5674 = vmatprep.subr.bf16.mxu0 0
          %5675 = vmatpush1.bf16.msra.mxu0 %v5652
          %5676 = vmatprep.subr.bf16.mxu0 0
          %5677 = vmatpush1.bf16.msra.mxu0 %v5653
          %5678 = vmatprep.subr.bf16.mxu0 0
          %5679 = vmatpush1.bf16.msra.mxu0 0
          %5680 = vmatprep.subr.bf16.mxu0 0
          %5681 = vmatpush1.bf16.msra.mxu0 0
          %5682 = vmatprep.subr.bf16.mxu0 0
          %5683 = vmatpush1.bf16.msra.mxu0 0
          %5684 = vmatprep.subr.bf16.mxu0 0
          %5685 = vmatpush1.bf16.msra.mxu0 0
          %5686 = vmatprep.subr.bf16.mxu0 0
          %5687 = vmatpush1.bf16.msra.mxu0 0
          %5688 = vmatprep.subr.bf16.mxu0 0
          %5689 = vmatpush1.bf16.msra.mxu0 0
          %5690 = vmatprep.subr.bf16.mxu0 0
          %5691 = vmatpush1.bf16.msra.mxu0 0
          %5692 = vmatprep.subr.bf16.mxu0 0
          %5693 = vmatpush1.bf16.msra.mxu0 0
          %5694 = vmatprep.mubr.bf16.mxu0 0
          %5695 = vmatmul.mubr.bf16.gmra.mrb[0].mxu0 %v5597
          %v5696 = vpop.f32.mrb[0].mxu0
          %v5697 = vadd.f32 0.0, %v5696
          %v5698 = vpop.f32.mrb[0].mxu0
          %v5699 = vpop.f32.mrb[0].mxu0
          %v5700 = vpop.f32.mrb[0].mxu0
          %5701 = vdwg.mxu0
          %v5702 = vsel %vm915, %v5697, 0.0
          %v5703 = vrot.slane %v5702, 4
          %v5704 = vadd.f32 %v5702, %v5703
          %v5705 = vrot.slane %v5704, 2
          %v5706 = vadd.f32 %v5704, %v5705
          %v5707 = vrot.slane %v5706, 1
          %v5708 = vadd.f32 %v5706, %v5707
          %v5709 = vmul.f32 %v5708, %v5562
          %v5710 = vmul.f32 %v5697, %v5697
          %v5711 = vsel %vm915, %v5710, 0.0
          %v5712 = vrot.slane %v5711, 4
          %v5713 = vadd.f32 %v5711, %v5712
          %v5714 = vrot.slane %v5713, 2
          %v5715 = vadd.f32 %v5713, %v5714
          %v5716 = vrot.slane %v5715, 1
          %v5717 = vadd.f32 %v5715, %v5716
          %v5718 = vmul.f32 %v5717, %v5562
          %v5719 = vmul.f32 %v5709, %v5709
          %v5720 = vsub.f32 %v5718, %v5719
          %v5721 = vmax.f32 %v5720, 0.0
          %v5722 = vsub.f32 %v5697, %v5709
          %v5723 = vadd.f32 %v5721, 1e-05
          %v5724 = vrsqrt.pop %v5723
          %v5725 = vmul.f32 %v5722, %v5724
          %v5726 = vld [vmem:[%s8] sm:$0x1]
          %v5728 = vlaneseq
          %v5729 = vshrl.u32 %v5728, 7
          %v5730 = vsub.s32 0, %v5729
          %v5731 = vrot.slane %v5726, %v5730
          %v5733 = vmul.f32 %v5725, %v5731
          %v5734 = vld [vmem:[%s9] sm:$0x1]
          %v5736 = vlaneseq
          %v5737 = vshrl.u32 %v5736, 7
          %v5738 = vsub.s32 0, %v5737
          %v5739 = vrot.slane %v5734, %v5738
          %v5741 = vadd.f32 %v5733, %v5739
          %v5742 = vmax.f32 %v5741, 0.0
          %v5743 = vpack.c.bf16 %v5742, %v5742
          %v5744 = vld [vmem:[%s10] sm:$0xf]
          %v5745 = vld [vmem:[%s10 + $0x4] sm:$0xf]
          %v5746 = vld [vmem:[%s10 + $0x8] sm:$0xf]
          %v5747 = vld [vmem:[%s10 + $0xc] sm:$0xf]
          %v5748 = vld [vmem:[%s10 + $0x10] sm:$0xf]
          %v5749 = vld [vmem:[%s10 + $0x14] sm:$0xf]
          %v5750 = vld [vmem:[%s10 + $0x18] sm:$0xf]
          %v5751 = vld [vmem:[%s10 + $0x1c] sm:$0xf]
          %v5752 = vld [vmem:[%s10 + $0x20] sm:$0xf]
          %v5753 = vld [vmem:[%s10 + $0x24] sm:$0xf]
          %v5754 = vld [vmem:[%s10 + $0x28] sm:$0xf]
          %v5755 = vld [vmem:[%s10 + $0x2c] sm:$0xf]
          %v5756 = vld [vmem:[%s10 + $0x30] sm:$0xf]
          %v5757 = vld [vmem:[%s10 + $0x34] sm:$0xf]
          %v5758 = vld [vmem:[%s10 + $0x38] sm:$0xf]
          %v5759 = vld [vmem:[%s10 + $0x3c] sm:$0xf]
          %v5776 = vunpack.c.l.b16 %v5744
          %v5777 = vunpack.c.l.b16 %v5745
          %v5778 = vunpack.c.l.b16 %v5746
          %v5779 = vunpack.c.l.b16 %v5747
          %v5780 = vunpack.c.l.b16 %v5748
          %v5781 = vunpack.c.l.b16 %v5749
          %v5782 = vunpack.c.l.b16 %v5750
          %v5783 = vunpack.c.l.b16 %v5751
          %v5784 = vunpack.c.l.b16 %v5752
          %v5785 = vunpack.c.l.b16 %v5753
          %v5786 = vunpack.c.l.b16 %v5754
          %v5787 = vunpack.c.l.b16 %v5755
          %v5788 = vunpack.c.l.b16 %v5756
          %v5789 = vunpack.c.l.b16 %v5757
          %v5790 = vunpack.c.l.b16 %v5758
          %v5791 = vunpack.c.l.b16 %v5759
          %v5792 = vpack.c.b16 %v5777, %v5776
          %v5793 = vpack.c.b16 %v5779, %v5778
          %v5794 = vpack.c.b16 %v5781, %v5780
          %v5795 = vpack.c.b16 %v5783, %v5782
          %v5796 = vpack.c.b16 %v5785, %v5784
          %v5797 = vpack.c.b16 %v5787, %v5786
          %v5798 = vpack.c.b16 %v5789, %v5788
          %v5799 = vpack.c.b16 %v5791, %v5790
          %5808 = vmatprep.subr.bf16.mxu0 0
          %5809 = vmatpush1.bf16.msra.mxu0 %v5792
          %5810 = vmatprep.subr.bf16.mxu0 0
          %5811 = vmatpush1.bf16.msra.mxu0 %v5793
          %5812 = vmatprep.subr.bf16.mxu0 0
          %5813 = vmatpush1.bf16.msra.mxu0 %v5794
          %5814 = vmatprep.subr.bf16.mxu0 0
          %5815 = vmatpush1.bf16.msra.mxu0 %v5795
          %5816 = vmatprep.subr.bf16.mxu0 0
          %5817 = vmatpush1.bf16.msra.mxu0 %v5796
          %5818 = vmatprep.subr.bf16.mxu0 0
          %5819 = vmatpush1.bf16.msra.mxu0 %v5797
          %5820 = vmatprep.subr.bf16.mxu0 0
          %5821 = vmatpush1.bf16.msra.mxu0 %v5798
          %5822 = vmatprep.subr.bf16.mxu0 0
          %5823 = vmatpush1.bf16.msra.mxu0 %v5799
          %5824 = vmatprep.subr.bf16.mxu0 0
          %5825 = vmatpush1.bf16.msra.mxu0 0
          %5826 = vmatprep.subr.bf16.mxu0 0
          %5827 = vmatpush1.bf16.msra.mxu0 0
          %5828 = vmatprep.subr.bf16.mxu0 0
          %5829 = vmatpush1.bf16.msra.mxu0 0
          %5830 = vmatprep.subr.bf16.mxu0 0
          %5831 = vmatpush1.bf16.msra.mxu0 0
          %5832 = vmatprep.subr.bf16.mxu0 0
          %5833 = vmatpush1.bf16.msra.mxu0 0
          %5834 = vmatprep.subr.bf16.mxu0 0
          %5835 = vmatpush1.bf16.msra.mxu0 0
          %5836 = vmatprep.subr.bf16.mxu0 0
          %5837 = vmatpush1.bf16.msra.mxu0 0
          %5838 = vmatprep.subr.bf16.mxu0 0
          %5839 = vmatpush1.bf16.msra.mxu0 0
          %5840 = vmatprep.mubr.bf16.mxu0 0
          %5841 = vmatmul.mubr.bf16.gmra.mrb[0].mxu0 %v5743
          %v5842 = vpop.f32.mrb[0].mxu0
          %v5843 = vadd.f32 0.0, %v5842
          %v5844 = vpop.f32.mrb[0].mxu0
          %v5845 = vpop.f32.mrb[0].mxu0
          %v5846 = vpop.f32.mrb[0].mxu0
          %5847 = vdwg.mxu0
          %v5848 = vsel %vm915, %v5843, 0.0
          %v5849 = vrot.slane %v5848, 4
          %v5850 = vadd.f32 %v5848, %v5849
          %v5851 = vrot.slane %v5850, 2
          %v5852 = vadd.f32 %v5850, %v5851
          %v5853 = vrot.slane %v5852, 1
          %v5854 = vadd.f32 %v5852, %v5853
          %v5855 = vmul.f32 %v5854, %v5562
          %v5856 = vmul.f32 %v5843, %v5843
          %v5857 = vsel %vm915, %v5856, 0.0
          %v5858 = vrot.slane %v5857, 4
          %v5859 = vadd.f32 %v5857, %v5858
          %v5860 = vrot.slane %v5859, 2
          %v5861 = vadd.f32 %v5859, %v5860
          %v5862 = vrot.slane %v5861, 1
          %v5863 = vadd.f32 %v5861, %v5862
          %v5864 = vmul.f32 %v5863, %v5562
          %v5865 = vmul.f32 %v5855, %v5855
          %v5866 = vsub.f32 %v5864, %v5865
          %v5867 = vmax.f32 %v5866, 0.0
          %v5868 = vsub.f32 %v5843, %v5855
          %v5869 = vadd.f32 %v5867, 1e-05
          %v5870 = vrsqrt.pop %v5869
          %v5871 = vmul.f32 %v5868, %v5870
          %5872 = vst [vmem:[#allocation5] sm:$0x3] %v5871
        $region72: #{tpu_custom_call.1} parent=63 // pred_fallthru
          _
        // Predicated region
        $region73: #{tpu_custom_call.1} parent=63 // pred_check
          %p5873 = pneg %p272
        $region74: #{tpu_custom_call.1} parent=63 // pred_check_branch
          %5875 = sbr.rel (%p5873) target = $region76
        $region75: #{tpu_custom_call.1} parent=63 // pred_region
          %s5877 = ssub.s32 32, 32
          %5878 = vsyncadd [#allocation6], %s5877
          %s5880 = sshll.u32 [#allocation5], 4
          %s5881 = int_to_ptr.vmem [resolvable:$true] %s5880
          %5883 = dma.vmem_to_hbm [thread:$0]  %s5881, 32, %s11, [#allocation6]
        $region76: #{tpu_custom_call.1} parent=63 // pred_fallthru
          _
        // Predicated region
        $region77: #{tpu_custom_call.1} parent=63 // pred_check
          %p5884 = pneg %p272
        $region78: #{tpu_custom_call.1} parent=63 // pred_check_branch
          %5886 = sbr.rel (%p5884) target = $region80
        $region79: #{tpu_custom_call.1} parent=63 // pred_region
          %5887 = dma.done [#allocation6], 32
        $region80: #{tpu_custom_call.1} parent=63 // pred_fallthru
          _
      $region64: #{tpu_custom_call.1} parent=5 // pred_fallthru
        _
      %p5888 = scmp.le.s32.totalorder 2, %s18
      // Predicated region
      $region81: #{tpu_custom_call.1} parent=5 // pred_check
        %p5889 = pneg %p5888
      $region82: #{tpu_custom_call.1} parent=5 // pred_check_branch
        %5891 = sbr.rel (%p5889) target = $region84
      $region83: #{tpu_custom_call.1} parent=5 // pred_region
        %s5892 = ssub.s32 %s18, 2
      $region84: #{tpu_custom_call.1} parent=5 // pred_fallthru
        _
    $region6: #{tpu_custom_call.1} parent=1 // loop_footer
      %s22 = sadd.s32 1, %s18
    $region7: #{tpu_custom_call.1} parent=1 // loop_footer_branch
      %17 = sbr.rel target = $region3
    $region8: #{tpu_custom_call.1} parent=1 // loop_exit
      _
    %5893 = vsyncpa [#allocation6], 1
    %s5894 = scalar_lea.sflag [#allocation6], 1
    %5895 = vsyncpa %s5894, 1

</llo_original>
